<compile_context>
chip_gen: v6e
topology: v6e:2x2x1
jax: 0.10.0
libtpu: 0.0.40
codegen_flags: <defaults>
</compile_context>

<pallas_src>
import functools

import jax
import jax.numpy as jnp
from jax.experimental import pallas as pl
from jax.experimental.pallas import tpu as pltpu


def _attention_kernel(xq_ref, q_ref, k_ref, v_ref, wo_ref, bo_ref, o_ref,
                      acc_sc, *, compute_dtype):
    """Grid = (batch, query_tile, key_tile).

    xq_ref : (1, TQ, C)     f32   residual rows for this query tile
    q_ref  : (1, H, TQ, D)  cdt   Q projection rows (scale folded in)
    k_ref  : (1, H, TK, D)  cdt   K projection rows
    v_ref  : (1, H, TK, D)  cdt   V projection rows
    wo_ref : (H, D, C)      cdt   output weight (head-major rows)
    bo_ref : (1, C)         f32
    o_ref  : (1, TQ, C)     f32
    acc_sc : (H, TQ, D)     f32   PV accumulator across key tiles
    """
    ki = pl.program_id(2)
    cdt = compute_dtype

    @pl.when(ki == 0)
    def _():
        acc_sc[...] = jnp.zeros_like(acc_sc)

    q = q_ref[0]                                                    # (H, TQ, D)
    k = k_ref[0]                                                    # (H, TK, D)
    v = v_ref[0]                                                    # (H, TK, D)

    # Scores: one dot_general batched over heads, contracting D (no k.T).
    s = jnp.einsum('hqd,hkd->hqk', q, k,
                   preferred_element_type=jnp.float32)              # (H, TQ, TK)

    # Softmax over the HEADS axis (PyTorch quirk): elementwise max/exp/sum
    # over the leading H axis of lane-dense (TQ, TK) blocks, f32 throughout.
    # Single exp pass: `s` dies once `e` is formed (bounded live temporaries).
    m = jnp.max(s, axis=0, keepdims=True)                           # (1, TQ, TK)
    e = jnp.exp(s - m)                                              # (H, TQ, TK)
    inv = pl.reciprocal(jnp.sum(e, axis=0, keepdims=True), approx=True)
    p = (e * inv).astype(cdt)                                       # (H, TQ, TK)

    # PV: batched over heads, contracting TK; f32 accumulation across key tiles.
    acc_sc[...] += jnp.einsum('hqk,hkd->hqd', p, v,
                              preferred_element_type=jnp.float32)   # (H, TQ, D)

    # After the last key tile: output projection + residual, store.
    @pl.when(ki == pl.num_programs(2) - 1)
    def _():
        res = acc_sc[...].astype(cdt)                               # (H, TQ, D)
        out_h = jnp.einsum('hqd,hdc->hqc', res, wo_ref[...],
                           preferred_element_type=jnp.float32)      # (H, TQ, C)
        out = jnp.sum(out_h, axis=0) + bo_ref[...]                  # (TQ, C)
        o_ref[0] = (out + xq_ref[0]).astype(o_ref.dtype)


def _pick_tile(s, target):
    """Largest tile <= target that divides s and is a multiple of 8 (or full s)."""
    if s <= target:
        return s
    for t in range(target, 7, -1):
        if s % t == 0 and t % 8 == 0:
            return t
    return s


def _vmem_capacity_bytes():
    try:
        return int(pltpu.get_tpu_info().vmem_capacity_bytes)
    except Exception:
        return 64 * 1024 * 1024   # conservative (v7x-sized) fallback


def attention_block_pallas(x_nchw, w_proj, b_proj, w_out, b_out, *,
                           n_heads, d_k, use_bf16_mxu=True,
                           tile_q=None, tile_k=None):
    """x_nchw: (B, C, H, W) f32.  w_proj: (C, H*3*D) (pre-transposed vs torch,
    per-head column layout [q_h|k_h|v_h]).  w_out: (H*D, C).  Returns NCHW."""
    b, c, hh, ww = x_nchw.shape
    s = hh * ww
    hd = n_heads * d_k
    scale = d_k ** (-0.5)
    cdt = jnp.bfloat16 if use_bf16_mxu else jnp.float32

    # NCHW -> (B, S, C)   (== x.reshape(b, c, -1).permute(0, 2, 1) in torch)
    x_seq = jnp.transpose(x_nchw.reshape(b, c, s), (0, 2, 1))

    # Split the per-head-interleaved [q_h|k_h|v_h] projection columns into
    # head-major Q / K / V weights; fold 1/sqrt(d_k) into Q.
    wp = w_proj.reshape(c, n_heads, 3, d_k)
    bp = b_proj.reshape(n_heads, 3, d_k)
    w_q = (wp[:, :, 0, :] * scale).reshape(c, hd)
    w_k = wp[:, :, 1, :].reshape(c, hd)
    w_v = wp[:, :, 2, :].reshape(c, hd)
    b_q = (bp[:, 0, :] * scale).reshape(hd)
    b_k = bp[:, 1, :].reshape(hd)
    b_v = bp[:, 2, :].reshape(hd)

    # Hoisted Q/K/V projections (once per token, NOT once per query tile):
    # XLA matmul with cdt operands / f32 accumulation, then head-major
    # (B, H, S, D) layout cast to the MXU compute dtype for streaming.
    xc = x_seq.astype(cdt)

    def proj(w, bias):
        p = jnp.dot(xc, w.astype(cdt),
                    preferred_element_type=jnp.float32) + bias       # (B, S, HD)
        return jnp.transpose(p.reshape(b, s, n_heads, d_k),
                             (0, 2, 1, 3)).astype(cdt)               # (B, H, S, D)

    q_hm = proj(w_q, b_q)
    k_hm = proj(w_k, b_k)
    v_hm = proj(w_v, b_v)

    w_o = jnp.asarray(w_out).reshape(n_heads, d_k, c).astype(cdt)    # (H, D, C)
    b_o = jnp.asarray(b_out).reshape(1, c).astype(jnp.float32)

    # Generation-tuned tiling / VMEM budget.
    cap = _vmem_capacity_bytes()
    if cap >= 100 * 1024 * 1024:           # v5e / v6e: 128 MiB VMEM, mem-bound
        target, vmem_limit = 512, 96 * 1024 * 1024
    else:                                  # v7x: 64 MiB VMEM
        target, vmem_limit = 256, 48 * 1024 * 1024
    tq = _pick_tile(s, tile_q if tile_q is not None else target)
    tk = _pick_tile(s, tile_k if tile_k is not None else target)
    # Megacore guard: keep >= 2 parallel units of grid work when possible.
    while b * (s // tq) < 2 and tq % 16 == 0 and s % (tq // 2) == 0:
        tq //= 2
    grid = (b, s // tq, s // tk)

    kernel = functools.partial(_attention_kernel, compute_dtype=cdt)

    out_seq = pl.pallas_call(
        kernel,
        out_shape=jax.ShapeDtypeStruct((b, s, c), x_seq.dtype),
        grid_spec=pltpu.PrefetchScalarGridSpec(
            num_scalar_prefetch=0,
            grid=grid,
            in_specs=[
                pl.BlockSpec((1, tq, c),
                             lambda bi, qi, ki: (bi, qi, 0)),          # residual
                pl.BlockSpec((1, n_heads, tq, d_k),
                             lambda bi, qi, ki: (bi, 0, qi, 0)),       # Q rows
                pl.BlockSpec((1, n_heads, tk, d_k),
                             lambda bi, qi, ki: (bi, 0, ki, 0)),       # K rows
                pl.BlockSpec((1, n_heads, tk, d_k),
                             lambda bi, qi, ki: (bi, 0, ki, 0)),       # V rows
                pl.BlockSpec((n_heads, d_k, c),
                             lambda bi, qi, ki: (0, 0, 0)),            # W_out
                pl.BlockSpec((1, c),
                             lambda bi, qi, ki: (0, 0)),               # b_out
            ],
            out_specs=pl.BlockSpec((1, tq, c), lambda bi, qi, ki: (bi, qi, 0)),
            scratch_shapes=[
                pltpu.VMEM((n_heads, tq, d_k), jnp.float32),   # PV accumulator
            ],
        ),
        compiler_params=pltpu.CompilerParams(
            dimension_semantics=("parallel", "parallel", "arbitrary"),
            vmem_limit_bytes=vmem_limit,
        ),
    )(x_seq, q_hm, k_hm, v_hm, w_o, b_o)

    # (B, S, C) -> NCHW   (== res.permute(0, 2, 1).reshape(b, c, h, w))
    return jnp.transpose(out_seq, (0, 2, 1)).reshape(b, c, hh, ww)


def attention_block_ref(x_nchw, w_proj, b_proj, w_out, b_out, *, n_heads, d_k):
    """Pure-JAX reference mirroring the PyTorch forward (for validation)."""
    b, c, h, w = x_nchw.shape
    x = jnp.transpose(x_nchw.reshape(b, c, -1), (0, 2, 1))            # (B, S, C)
    qkv = (x @ w_proj + b_proj).reshape(b, -1, n_heads, 3 * d_k)
    q, k, v = jnp.split(qkv, 3, axis=-1)
    attn = jnp.einsum('bihd,bjhd->bijh', q, k) * (d_k ** -0.5)
    attn = jax.nn.softmax(attn, axis=-1)                              # over heads!
    res = jnp.einsum('bijh,bjhd->bihd', attn, v)
    res = res.reshape(b, -1, n_heads * d_k)
    res = res @ w_out + b_out
    res = res + x
    return jnp.transpose(res, (0, 2, 1)).reshape(b, c, h, w)


if __name__ == "__main__":
    def make_params(key, c, n_heads, d_k):
        hd3, hd = n_heads * d_k * 3, n_heads * d_k
        k1, k2, k3, k4 = jax.random.split(key, 4)
        bound_p = 1.0 / (c ** 0.5)
        w_proj = jax.random.uniform(k1, (c, hd3), jnp.float32, -bound_p, bound_p)
        b_proj = jax.random.uniform(k2, (hd3,), jnp.float32, -bound_p, bound_p)
        bound_o = 1.0 / (hd ** 0.5)
        w_out = jax.random.uniform(k3, (hd, c), jnp.float32, -bound_o, bound_o)
        b_out = jax.random.uniform(k4, (c,), jnp.float32, -bound_o, bound_o)
        return w_proj, b_proj, w_out, b_out

    key = jax.random.PRNGKey(0)
    kx, kp1, kp2 = jax.random.split(key, 3)

    B, C, H, W = 2, 64, 16, 16
    N_HEADS, D_K = 4, 16
    x = jax.random.normal(kx, (B, C, H, W), dtype=jnp.float32)
    p1 = make_params(kp1, C, N_HEADS, D_K)

    # Case 1: multi-head, f32 MXU path, forced small tiles to exercise the
    # query/key tiling + accumulator path (S=256 -> 2x2 tiles of 128).
    out1 = jax.block_until_ready(attention_block_pallas(
        x, *p1, n_heads=N_HEADS, d_k=D_K, use_bf16_mxu=False,
        tile_q=128, tile_k=128))
    ref1 = attention_block_ref(x, *p1, n_heads=N_HEADS, d_k=D_K)
    assert out1.shape == (B, C, H, W)
    # tolerance covers pl.reciprocal(approx=True); structural bugs are O(1).
    assert jnp.allclose(out1, ref1, atol=2e-2, rtol=2e-2), "multi-head mismatch"

    # Case 2: module defaults n_heads=1, d_k=n_channels, f32 path.
    N_HEADS2, D_K2 = 1, C
    p2 = make_params(kp2, C, N_HEADS2, D_K2)
    out2 = jax.block_until_ready(attention_block_pallas(
        x, *p2, n_heads=N_HEADS2, d_k=D_K2, use_bf16_mxu=False,
        tile_q=128, tile_k=128))
    ref2 = attention_block_ref(x, *p2, n_heads=N_HEADS2, d_k=D_K2)
    assert jnp.allclose(out2, ref2, atol=2e-2, rtol=2e-2), "single-head mismatch"

    # Case 3: default fast path (bf16 MXU operands, generation-tuned tiles);
    # softmax / accumulation / residual stay f32.
    out3 = jax.block_until_ready(attention_block_pallas(
        x, *p1, n_heads=N_HEADS, d_k=D_K))
    assert jnp.allclose(out3, ref1, atol=0.5, rtol=0.1), "bf16 path mismatch"

    print("KERNEL_OK")
</pallas_src>

<mosaic_0001>
module attributes {stable_mosaic.version = 11 : i64} {
  func.func @_attention_kernel(%arg0: i32, %arg1: i32, %arg2: i32, %arg3: memref<1x128x64xf32, #tpu.memory_space<vmem>>, %arg4: memref<1x4x128x16xf32, #tpu.memory_space<vmem>>, %arg5: memref<1x4x128x16xf32, #tpu.memory_space<vmem>>, %arg6: memref<1x4x128x16xf32, #tpu.memory_space<vmem>>, %arg7: memref<4x16x64xf32, #tpu.memory_space<vmem>>, %arg8: memref<1x64xf32, #tpu.memory_space<vmem>>, %arg9: memref<1x128x64xf32, #tpu.memory_space<vmem>>, %arg10: memref<4x128x16xf32, #tpu.memory_space<vmem>>) attributes {dimension_semantics = [#tpu.dimension_semantics<parallel>, #tpu.dimension_semantics<parallel>, #tpu.dimension_semantics<arbitrary>], iteration_bounds = array<i64: 2, 2, 2>, scalar_prefetch = 0 : i64, scratch_operands = 1 : i64, tpu.core_type = #tpu.core_type<tc>, window_params = [{transform_indices = @transform_0, window_bounds = array<i64: 1, 128, 64>}, {transform_indices = @transform_1, window_bounds = array<i64: 1, 4, 128, 16>}, {transform_indices = @transform_2, window_bounds = array<i64: 1, 4, 128, 16>}, {transform_indices = @transform_3, window_bounds = array<i64: 1, 4, 128, 16>}, {pipeline_mode = #tpu.pipeline_mode<synchronous>, transform_indices = @transform_4, window_bounds = array<i64: 4, 16, 64>}, {pipeline_mode = #tpu.pipeline_mode<synchronous>, transform_indices = @transform_5, window_bounds = array<i64: 1, 64>}, {transform_indices = @transform_6, window_bounds = array<i64: 1, 128, 64>}]} {
    %c0_i32 = arith.constant 0 : i32
    %0 = arith.cmpi eq, %arg2, %c0_i32 : i32
    %1 = arith.extui %0 : i1 to i32
    %c0_i32_0 = arith.constant 0 : i32
    %2 = arith.cmpi ne, %1, %c0_i32_0 : i32
    scf.if %2 {
      %cst_22 = arith.constant 0.000000e+00 : f32
      %27 = vector.broadcast %cst_22 : f32 to vector<4x128x16xf32>
      %c0_23 = arith.constant 0 : index
      %c0_24 = arith.constant 0 : index
      %c0_25 = arith.constant 0 : index
      %28 = vector.load %arg10[%c0_23, %c0_24, %c0_25] : memref<4x128x16xf32, #tpu.memory_space<vmem>>, vector<4x128x16xf32>
      tpu.vector_store %arg10[%c0_23, %c0_24, %c0_25], %27 {strides = array<i32>} : memref<4x128x16xf32, #tpu.memory_space<vmem>>, vector<4x128x16xf32>,
    } else {
    }
    %c0 = arith.constant 0 : index
    %c0_1 = arith.constant 0 : index
    %c0_2 = arith.constant 0 : index
    %c0_3 = arith.constant 0 : index
    %3 = vector.load %arg4[%c0, %c0_1, %c0_2, %c0_3] : memref<1x4x128x16xf32, #tpu.memory_space<vmem>>, vector<1x4x128x16xf32>
    %4 = vector.shape_cast %3 : vector<1x4x128x16xf32> to vector<4x128x16xf32>
    %c0_4 = arith.constant 0 : index
    %c0_5 = arith.constant 0 : index
    %c0_6 = arith.constant 0 : index
    %c0_7 = arith.constant 0 : index
    %5 = vector.load %arg5[%c0_4, %c0_5, %c0_6, %c0_7] : memref<1x4x128x16xf32, #tpu.memory_space<vmem>>, vector<1x4x128x16xf32>
    %6 = vector.shape_cast %5 : vector<1x4x128x16xf32> to vector<4x128x16xf32>
    %c0_8 = arith.constant 0 : index
    %c0_9 = arith.constant 0 : index
    %c0_10 = arith.constant 0 : index
    %c0_11 = arith.constant 0 : index
    %7 = vector.load %arg6[%c0_8, %c0_9, %c0_10, %c0_11] : memref<1x4x128x16xf32, #tpu.memory_space<vmem>>, vector<1x4x128x16xf32>
    %8 = vector.shape_cast %7 : vector<1x4x128x16xf32> to vector<4x128x16xf32>
    "tpu.trace_start"() <{level = 10 : i32, message = "hqd,hkd->hqk"}> : () -> ()
    %cst = arith.constant dense<0.000000e+00> : vector<4x128x128xf32>
    %9 = tpu.matmul %4, %6, %cst {dimension_numbers = #tpu.dot_dimension_numbers<[2], [2], [1], [1], [0, 0, 0, 1, 1, 1], [0], [0]>} : vector<4x128x16xf32>, vector<4x128x16xf32>, vector<4x128x128xf32> -> vector<4x128x128xf32>
    "tpu.trace_stop"() : () -> ()
    %cst_12 = arith.constant dense<0xFF800000> : vector<128x128xf32>
    %10 = vector.multi_reduction <maximumf>, %9, %cst_12 [0] : vector<4x128x128xf32> to vector<128x128xf32>
    %11 = vector.shape_cast %10 : vector<128x128xf32> to vector<1x128x128xf32>
    %12 = vector.broadcast %11 : vector<1x128x128xf32> to vector<4x128x128xf32>
    %13 = arith.subf %9, %12 : vector<4x128x128xf32>
    %14 = math.exp %13 : vector<4x128x128xf32>
    %cst_13 = arith.constant dense<0.000000e+00> : vector<128x128xf32>
    %15 = vector.multi_reduction <add>, %14, %cst_13 [0] : vector<4x128x128xf32> to vector<128x128xf32>
    %16 = vector.shape_cast %15 : vector<128x128xf32> to vector<1x128x128xf32>
    %17 = tpu.reciprocal %16 {approx = true} : vector<1x128x128xf32> -> vector<1x128x128xf32>
    %18 = vector.broadcast %17 : vector<1x128x128xf32> to vector<4x128x128xf32>
    %19 = arith.mulf %14, %18 : vector<4x128x128xf32>
    %c0_14 = arith.constant 0 : index
    %c0_15 = arith.constant 0 : index
    %c0_16 = arith.constant 0 : index
    %20 = vector.load %arg10[%c0_14, %c0_15, %c0_16] : memref<4x128x16xf32, #tpu.memory_space<vmem>>, vector<4x128x16xf32>
    "tpu.trace_start"() <{level = 10 : i32, message = "hqk,hkd->hqd"}> : () -> ()
    %cst_17 = arith.constant dense<0.000000e+00> : vector<4x128x16xf32>
    %21 = tpu.matmul %19, %8, %cst_17 {dimension_numbers = #tpu.dot_dimension_numbers<[2], [1], [1], [2], [0, 0, 0, 1, 1, 2], [0], [0]>} : vector<4x128x128xf32>, vector<4x128x16xf32>, vector<4x128x16xf32> -> vector<4x128x16xf32>
    "tpu.trace_stop"() : () -> ()
    %22 = arith.addf %20, %21 : vector<4x128x16xf32>
    %c0_18 = arith.constant 0 : index
    %c0_19 = arith.constant 0 : index
    %c0_20 = arith.constant 0 : index
    %23 = vector.load %arg10[%c0_18, %c0_19, %c0_20] : memref<4x128x16xf32, #tpu.memory_space<vmem>>, vector<4x128x16xf32>
    tpu.vector_store %arg10[%c0_18, %c0_19, %c0_20], %22 {strides = array<i32>} : memref<4x128x16xf32, #tpu.memory_space<vmem>>, vector<4x128x16xf32>,
    %c1_i32 = arith.constant 1 : i32
    %24 = arith.cmpi eq, %arg2, %c1_i32 : i32
    %25 = arith.extui %24 : i1 to i32
    %c0_i32_21 = arith.constant 0 : i32
    %26 = arith.cmpi ne, %25, %c0_i32_21 : i32
    scf.if %26 {
      %c0_22 = arith.constant 0 : index
      %c0_23 = arith.constant 0 : index
      %c0_24 = arith.constant 0 : index
      %27 = vector.load %arg10[%c0_22, %c0_23, %c0_24] : memref<4x128x16xf32, #tpu.memory_space<vmem>>, vector<4x128x16xf32>
      %c0_25 = arith.constant 0 : index
      %c0_26 = arith.constant 0 : index
      %c0_27 = arith.constant 0 : index
      %28 = vector.load %arg7[%c0_25, %c0_26, %c0_27] : memref<4x16x64xf32, #tpu.memory_space<vmem>>, vector<4x16x64xf32>
      "tpu.trace_start"() <{level = 10 : i32, message = "hqd,hdc->hqc"}> : () -> ()
      %cst_28 = arith.constant dense<0.000000e+00> : vector<4x128x64xf32>
      %29 = tpu.matmul %27, %28, %cst_28 {dimension_numbers = #tpu.dot_dimension_numbers<[2], [1], [1], [2], [0, 0, 0, 1, 1, 2], [0], [0]>} : vector<4x128x16xf32>, vector<4x16x64xf32>, vector<4x128x64xf32> -> vector<4x128x64xf32>
      "tpu.trace_stop"() : () -> ()
      %cst_29 = arith.constant dense<0.000000e+00> : vector<128x64xf32>
      %30 = vector.multi_reduction <add>, %29, %cst_29 [0] : vector<4x128x64xf32> to vector<128x64xf32>
      %c0_30 = arith.constant 0 : index
      %c0_31 = arith.constant 0 : index
      %31 = vector.load %arg8[%c0_30, %c0_31] : memref<1x64xf32, #tpu.memory_space<vmem>>, vector<1x64xf32>
      %32 = vector.broadcast %31 : vector<1x64xf32> to vector<128x64xf32>
      %33 = arith.addf %30, %32 : vector<128x64xf32>
      %c0_32 = arith.constant 0 : index
      %c0_33 = arith.constant 0 : index
      %c0_34 = arith.constant 0 : index
      %34 = vector.load %arg3[%c0_32, %c0_33, %c0_34] : memref<1x128x64xf32, #tpu.memory_space<vmem>>, vector<1x128x64xf32>
      %35 = vector.shape_cast %34 : vector<1x128x64xf32> to vector<128x64xf32>
      %36 = arith.addf %33, %35 : vector<128x64xf32>
      %c0_35 = arith.constant 0 : index
      %c0_36 = arith.constant 0 : index
      %c0_37 = arith.constant 0 : index
      %37 = vector.load %arg9[%c0_35, %c0_36, %c0_37] : memref<1x128x64xf32, #tpu.memory_space<vmem>>, vector<1x128x64xf32>
      %38 = vector.shape_cast %37 : vector<1x128x64xf32> to vector<128x64xf32>
      %39 = vector.shape_cast %36 : vector<128x64xf32> to vector<1x128x64xf32>
      tpu.vector_store %arg9[%c0_35, %c0_36, %c0_37], %39 {strides = array<i32>} : memref<1x128x64xf32, #tpu.memory_space<vmem>>, vector<1x128x64xf32>,
    } else {
    }
    return
  }
  func.func @transform_0(%arg0: i32, %arg1: i32, %arg2: i32) -> (i32, i32, i32) {
    %c0_i32 = arith.constant 0 : i32
    %c0_i32_0 = arith.constant 0 : i32
    return %arg0, %arg1, %c0_i32 : i32, i32, i32
  }
  func.func @transform_1(%arg0: i32, %arg1: i32, %arg2: i32) -> (i32, i32, i32, i32) {
    %c0_i32 = arith.constant 0 : i32
    %c0_i32_0 = arith.constant 0 : i32
    %c0_i32_1 = arith.constant 0 : i32
    return %arg0, %c0_i32, %arg1, %c0_i32_0 : i32, i32, i32, i32
  }
  func.func @transform_2(%arg0: i32, %arg1: i32, %arg2: i32) -> (i32, i32, i32, i32) {
    %c0_i32 = arith.constant 0 : i32
    %c0_i32_0 = arith.constant 0 : i32
    %c0_i32_1 = arith.constant 0 : i32
    return %arg0, %c0_i32, %arg2, %c0_i32_0 : i32, i32, i32, i32
  }
  func.func @transform_3(%arg0: i32, %arg1: i32, %arg2: i32) -> (i32, i32, i32, i32) {
    %c0_i32 = arith.constant 0 : i32
    %c0_i32_0 = arith.constant 0 : i32
    %c0_i32_1 = arith.constant 0 : i32
    return %arg0, %c0_i32, %arg2, %c0_i32_0 : i32, i32, i32, i32
  }
  func.func @transform_4(%arg0: i32, %arg1: i32, %arg2: i32) -> (i32, i32, i32) {
    %c0_i32 = arith.constant 0 : i32
    %c0_i32_0 = arith.constant 0 : i32
    %c0_i32_1 = arith.constant 0 : i32
    %c0_i32_2 = arith.constant 0 : i32
    return %c0_i32, %c0_i32_0, %c0_i32_1 : i32, i32, i32
  }
  func.func @transform_5(%arg0: i32, %arg1: i32, %arg2: i32) -> (i32, i32) {
    %c0_i32 = arith.constant 0 : i32
    %c0_i32_0 = arith.constant 0 : i32
    %c0_i32_1 = arith.constant 0 : i32
    return %c0_i32, %c0_i32_0 : i32, i32
  }
  func.func @transform_6(%arg0: i32, %arg1: i32, %arg2: i32) -> (i32, i32, i32) {
    %c0_i32 = arith.constant 0 : i32
    %c0_i32_0 = arith.constant 0 : i32
    return %arg0, %arg1, %c0_i32 : i32, i32, i32
  }
}

</mosaic_0001>

<llo_original>
// kernel: tpu_custom_call.1
$region0: #{tpu_custom_call.1}
  #allocation0 [shape = 'u32[]', space=smem, size = 0x4, offset = 0x4, fixed_abs, tag = 'smem constant byte address 0x4 - core index']
  #allocation1 [shape = 'u32[144,128]{1,0:T(1,128)}', space=vmem, size = 0x12000, scoped, tag = 'internal scratch']
  #allocation2 [shape = 'f32[4,128,16]{2,1,0:T(8,128)}', space=vmem, size = 0x40000, scoped, tag = 'scratch operand']
  %s0 = inlined_call_operand.vmem [shape: f32[2,256,64], index: 0, kind: input, shape index: {}]
  %s1 = inlined_call_operand.vmem [shape: f32[2,4,256,16], index: 1, kind: input, shape index: {}]
  %s2 = inlined_call_operand.vmem [shape: f32[2,4,256,16], index: 2, kind: input, shape index: {}]
  %s3 = inlined_call_operand.vmem [shape: f32[2,4,256,16], index: 3, kind: input, shape index: {}]
  %s4 = inlined_call_operand.vmem [shape: f32[4,16,64], index: 4, kind: input, shape index: {}]
  %s5 = inlined_call_operand.vmem [shape: f32[1,64], index: 5, kind: input, shape index: {}]
  %s6 = inlined_call_operand.vmem [shape: f32[2,256,64], index: 6, kind: output, shape index: {}]
  %s7 = sld [smem:[#allocation0]]
  $region179: #{tpu_custom_call.1} parent=0
    _
  %s9 = ssub.s32 1, %s7
  %s10 = scalar_select 0, %s9, %s7
  $region1: #{tpu_custom_call.1} parent=0
    #allocation3 [shape = 'u8[524288]{0}', space=vmem, size = 0x80000, scoped, tag = 'input window, operand 1']
    #allocation4 [shape = 'u8[524288]{0}', space=vmem, size = 0x80000, scoped, tag = 'input window, operand 2']
    #allocation5 [shape = 'u8[524288]{0}', space=vmem, size = 0x80000, scoped, tag = 'input window, operand 3']
    loop: start=0, step=1, limit=10
    $region2: #{tpu_custom_call.1} parent=1 // loop_pre_header
      _
    $region3: #{tpu_custom_call.1} parent=1 // loop_header
      %s12 = sphi 0, %s16
      %p13 = scmp.ge.s32.totalorder %s12, 10
      %s19 = sphi 0, %s38
      %s20 = sphi 0, %s34
      %s21 = sphi 0, %s30
      %s22 = sphi 0, %s19
      %s23 = sphi 0, %s20
      %s24 = sphi 0, %s21
      %s25 = sphi 0, %s22
      %s26 = sphi 0, %s23
      %s27 = sphi 0, %s24
      %s43 = sphi 0, %s45
      %s46 = sphi 0, %s43
      %s47 = sphi 0, %s46
      %s63 = sphi 0, %s47
      %s71 = sphi 0, %s73
      %s74 = sphi 0, %s71
      %s75 = sphi 0, %s74
      %s91 = sphi 0, %s75
      %s99 = sphi 0, %s101
      %s102 = sphi 0, %s99
      %s103 = sphi 0, %s102
      %s119 = sphi 0, %s103
      %s127 = sphi 0, %s129
      %s130 = sphi 0, %s127
      %s131 = sphi 0, %s130
      %s147 = sphi 0, %s131
      %s151 = sphi 0, %s151
      %s153 = sphi 0, %s151
      %s154 = sphi 0, %s153
      %s168 = sphi 0, %s154
      %s172 = sphi 0, %s172
      %s174 = sphi 0, %s172
      %s175 = sphi 0, %s174
      %s189 = sphi 0, %s175
      %s197 = sphi 0, %s199
      %s200 = sphi 0, %s197
      %s201 = sphi 0, %s200
      %s217 = sphi 0, %s201
    $region4: #{tpu_custom_call.1} parent=1 // loop_header_branch
      %15 = sbr.rel (%p13) target = $region8
    $region5: #{tpu_custom_call.1} parent=1 // loop_body
      %s17 = ssub.s32 %s12, 1
      %s18 = ssub.s32 %s12, 2
      %s28 = sadd.s32 1, %s21
      %p29 = scmp.ge.s32.totalorder %s28, 2
      %s30 = scalar_select %p29, 0, %s28
      %s31 = sadd.s32 1, %s20
      %s32 = scalar_select %p29, %s31, %s20
      %p33 = scmp.ge.s32.totalorder %s32, 2
      %s34 = scalar_select %p33, 0, %s32
      %s35 = sadd.s32 1, %s19
      %s36 = scalar_select %p33, %s35, %s19
      %p37 = scmp.ge.s32.totalorder %s36, 2
      %s38 = scalar_select %p37, 0, %s36
      %s39 = ssub.s32 %s19, %s38
      %s40 = ssub.s32 %s20, %s34
      %s41 = sor.u32 %s39, %s40
      %p42 = scmp.eq.s32.totalorder %s41, 0
      %s44 = sadd.s32 %s43, 1
      %s45 = scalar_select %p42, %s43, %s44
      %p48 = pneg %p42
      %p49 = scmp.eq.s32.totalorder %s12, 7
      %p50 = por %p48, %p49
      %p51 = scmp.ne.s32.totalorder %s43, %s46
      %p52 = scmp.eq.s32.totalorder %s12, 0
      %p53 = por %p51, %p52
      %p54 = scmp.ne.s32.totalorder %s43, %s46
      %p55 = scmp.eq.s32.totalorder %s17, 7
      %p56 = por %p54, %p55
      %p57 = scmp.ne.s32.totalorder %s46, %s47
      %p58 = scmp.eq.s32.totalorder %s17, 0
      %p59 = por %p57, %p58
      %p60 = scmp.ne.s32.totalorder %s46, %s47
      %p61 = scmp.eq.s32.totalorder %s18, 7
      %p62 = por %p60, %p61
      %p64 = scmp.ne.s32.totalorder %s47, %s63
      %p65 = scmp.eq.s32.totalorder %s18, 0
      %p66 = por %p64, %p65
      %s67 = ssub.s32 %s19, %s38
      %s68 = ssub.s32 %s20, %s34
      %s69 = sor.u32 %s67, %s68
      %p70 = scmp.eq.s32.totalorder %s69, 0
      %s72 = sadd.s32 %s71, 1
      %s73 = scalar_select %p70, %s71, %s72
      %p76 = pneg %p70
      %p77 = scmp.eq.s32.totalorder %s12, 7
      %p78 = por %p76, %p77
      %p79 = scmp.ne.s32.totalorder %s71, %s74
      %p80 = scmp.eq.s32.totalorder %s12, 0
      %p81 = por %p79, %p80
      %p82 = scmp.ne.s32.totalorder %s71, %s74
      %p83 = scmp.eq.s32.totalorder %s17, 7
      %p84 = por %p82, %p83
      %p85 = scmp.ne.s32.totalorder %s74, %s75
      %p86 = scmp.eq.s32.totalorder %s17, 0
      %p87 = por %p85, %p86
      %p88 = scmp.ne.s32.totalorder %s74, %s75
      %p89 = scmp.eq.s32.totalorder %s18, 7
      %p90 = por %p88, %p89
      %p92 = scmp.ne.s32.totalorder %s75, %s91
      %p93 = scmp.eq.s32.totalorder %s18, 0
      %p94 = por %p92, %p93
      %s95 = ssub.s32 %s19, %s38
      %s96 = ssub.s32 %s21, %s30
      %s97 = sor.u32 %s95, %s96
      %p98 = scmp.eq.s32.totalorder %s97, 0
      %s100 = sadd.s32 %s99, 1
      %s101 = scalar_select %p98, %s99, %s100
      %p104 = pneg %p98
      %p105 = scmp.eq.s32.totalorder %s12, 7
      %p106 = por %p104, %p105
      %p107 = scmp.ne.s32.totalorder %s99, %s102
      %p108 = scmp.eq.s32.totalorder %s12, 0
      %p109 = por %p107, %p108
      %p110 = scmp.ne.s32.totalorder %s99, %s102
      %p111 = scmp.eq.s32.totalorder %s17, 7
      %p112 = por %p110, %p111
      %p113 = scmp.ne.s32.totalorder %s102, %s103
      %p114 = scmp.eq.s32.totalorder %s17, 0
      %p115 = por %p113, %p114
      %p116 = scmp.ne.s32.totalorder %s102, %s103
      %p117 = scmp.eq.s32.totalorder %s18, 7
      %p118 = por %p116, %p117
      %p120 = scmp.ne.s32.totalorder %s103, %s119
      %p121 = scmp.eq.s32.totalorder %s18, 0
      %p122 = por %p120, %p121
      %s123 = ssub.s32 %s19, %s38
      %s124 = ssub.s32 %s21, %s30
      %s125 = sor.u32 %s123, %s124
      %p126 = scmp.eq.s32.totalorder %s125, 0
      %s128 = sadd.s32 %s127, 1
      %s129 = scalar_select %p126, %s127, %s128
      %p132 = pneg %p126
      %p133 = scmp.eq.s32.totalorder %s12, 7
      %p134 = por %p132, %p133
      %p135 = scmp.ne.s32.totalorder %s127, %s130
      %p136 = scmp.eq.s32.totalorder %s12, 0
      %p137 = por %p135, %p136
      %p138 = scmp.ne.s32.totalorder %s127, %s130
      %p139 = scmp.eq.s32.totalorder %s17, 7
      %p140 = por %p138, %p139
      %p141 = scmp.ne.s32.totalorder %s130, %s131
      %p142 = scmp.eq.s32.totalorder %s17, 0
      %p143 = por %p141, %p142
      %p144 = scmp.ne.s32.totalorder %s130, %s131
      %p145 = scmp.eq.s32.totalorder %s18, 7
      %p146 = por %p144, %p145
      %p148 = scmp.ne.s32.totalorder %s131, %s147
      %p149 = scmp.eq.s32.totalorder %s18, 0
      %p150 = por %p148, %p149
      %s152 = sadd.s32 %s151, 1
      %p155 = scmp.eq.s32.totalorder %s12, 7
      %p156 = scmp.ne.s32.totalorder %s151, %s153
      %p157 = scmp.eq.s32.totalorder %s12, 0
      %p158 = por %p156, %p157
      %p159 = scmp.ne.s32.totalorder %s151, %s153
      %p160 = scmp.eq.s32.totalorder %s17, 7
      %p161 = por %p159, %p160
      %p162 = scmp.ne.s32.totalorder %s153, %s154
      %p163 = scmp.eq.s32.totalorder %s17, 0
      %p164 = por %p162, %p163
      %p165 = scmp.ne.s32.totalorder %s153, %s154
      %p166 = scmp.eq.s32.totalorder %s18, 7
      %p167 = por %p165, %p166
      %p169 = scmp.ne.s32.totalorder %s154, %s168
      %p170 = scmp.eq.s32.totalorder %s18, 0
      %p171 = por %p169, %p170
      %s173 = sadd.s32 %s172, 1
      %p176 = scmp.eq.s32.totalorder %s12, 7
      %p177 = scmp.ne.s32.totalorder %s172, %s174
      %p178 = scmp.eq.s32.totalorder %s12, 0
      %p179 = por %p177, %p178
      %p180 = scmp.ne.s32.totalorder %s172, %s174
      %p181 = scmp.eq.s32.totalorder %s17, 7
      %p182 = por %p180, %p181
      %p183 = scmp.ne.s32.totalorder %s174, %s175
      %p184 = scmp.eq.s32.totalorder %s17, 0
      %p185 = por %p183, %p184
      %p186 = scmp.ne.s32.totalorder %s174, %s175
      %p187 = scmp.eq.s32.totalorder %s18, 7
      %p188 = por %p186, %p187
      %p190 = scmp.ne.s32.totalorder %s175, %s189
      %p191 = scmp.eq.s32.totalorder %s18, 0
      %p192 = por %p190, %p191
      %s193 = ssub.s32 %s19, %s38
      %s194 = ssub.s32 %s20, %s34
      %s195 = sor.u32 %s193, %s194
      %p196 = scmp.eq.s32.totalorder %s195, 0
      %s198 = sadd.s32 %s197, 1
      %s199 = scalar_select %p196, %s197, %s198
      %p202 = pneg %p196
      %p203 = scmp.eq.s32.totalorder %s12, 7
      %p204 = por %p202, %p203
      %p205 = scmp.ne.s32.totalorder %s197, %s200
      %p206 = scmp.eq.s32.totalorder %s12, 0
      %p207 = por %p205, %p206
      %p208 = scmp.ne.s32.totalorder %s197, %s200
      %p209 = scmp.eq.s32.totalorder %s17, 7
      %p210 = por %p208, %p209
      %p211 = scmp.ne.s32.totalorder %s200, %s201
      %p212 = scmp.eq.s32.totalorder %s17, 0
      %p213 = por %p211, %p212
      %p214 = scmp.ne.s32.totalorder %s200, %s201
      %p215 = scmp.eq.s32.totalorder %s18, 7
      %p216 = por %p214, %p215
      %p218 = scmp.ne.s32.totalorder %s201, %s217
      %p219 = scmp.eq.s32.totalorder %s18, 0
      %p220 = por %p218, %p219
      %p221 = scmp.le.s32.totalorder 1, %s12
      %p222 = scmp.lt.s32.totalorder %s12, 9
      %p223 = pnand %p221, %p222
      %p224 = pneg %p223
      // Predicated region
      $region9: #{tpu_custom_call.1} parent=5 // pred_check
        _
      $region10: #{tpu_custom_call.1} parent=5 // pred_check_branch
        %226 = sbr.rel (%p223) target = $region12
      $region11: #{tpu_custom_call.1} parent=5 // pred_region
        %s227 = ssub.s32 %s12, 1
        // Predicated region
        $region13: #{tpu_custom_call.1} parent=11 // pred_check
          %p228 = pneg %p164
        $region14: #{tpu_custom_call.1} parent=11 // pred_check_branch
          %230 = sbr.rel (%p228) target = $region16
        $region15: #{tpu_custom_call.1} parent=11 // pred_region
          _
        $region16: #{tpu_custom_call.1} parent=11 // pred_fallthru
          _
        // Predicated region
        $region17: #{tpu_custom_call.1} parent=11 // pred_check
          %p231 = pneg %p185
        $region18: #{tpu_custom_call.1} parent=11 // pred_check_branch
          %233 = sbr.rel (%p231) target = $region20
        $region19: #{tpu_custom_call.1} parent=11 // pred_region
          _
        $region20: #{tpu_custom_call.1} parent=11 // pred_fallthru
          _
      $region12: #{tpu_custom_call.1} parent=5 // pred_fallthru
        _
      %p234 = scmp.lt.s32.totalorder %s12, 8
      // Predicated region
      $region21: #{tpu_custom_call.1} parent=5 // pred_check
        %p235 = pneg %p234
      $region22: #{tpu_custom_call.1} parent=5 // pred_check_branch
        %237 = sbr.rel (%p235) target = $region24
      $region23: #{tpu_custom_call.1} parent=5 // pred_region
        // Predicated region
        $region25: #{tpu_custom_call.1} parent=23 // pred_check
          %p238 = pneg %p53
        $region26: #{tpu_custom_call.1} parent=23 // pred_check_branch
          %240 = sbr.rel (%p238) target = $region28
        $region27: #{tpu_custom_call.1} parent=23 // pred_region
          %s241 = smul.u32 16, %s20
          %p242 = scmp.lt.s32.totalorder %s19, 1
          %s243 = scalar_select %p242, %s19, 1
          %p244 = scmp.lt.s32.totalorder %s241, 31
          %s245 = scalar_select %p244, %s241, 31
          %s246 = smul.addr %s243, 32
          %s247 = sadd.s32 %s245, %s246
          %s248 = smul.addr %s247, 8
          %s249 = scalar_lea.vmem %s0, %s248
          %s250 = smul.u32 16, %s20
        $region28: #{tpu_custom_call.1} parent=23 // pred_fallthru
          _
        // Predicated region
        $region29: #{tpu_custom_call.1} parent=23 // pred_check
          %p251 = pneg %p81
        $region30: #{tpu_custom_call.1} parent=23 // pred_check_branch
          %253 = sbr.rel (%p251) target = $region32
        $region31: #{tpu_custom_call.1} parent=23 // pred_region
          %s254 = sand.u32 %s71, 1
          %s255 = sand.u32 %s71, 1
          %s256 = smul.addr %s255, 512
          %s257 = scalar_lea.vmem [#allocation3], %s256
          %s258 = smul.u32 16, %s20
          %s259 = smul.addr %s19, 128
          %s260 = sadd.s32 %s258, %s259
          %s261 = smul.addr %s260, 8
          %s262 = scalar_lea.vmem %s1, %s261
          // Predicated region
          $region33: #{tpu_custom_call.1} parent=31 // pred_check
            _
          $region34: #{tpu_custom_call.1} parent=31 // pred_check_branch
            %264 = sbr.rel (0) target = $region36
          $region35: #{tpu_custom_call.1} parent=31 // pred_region
            // Predicated region
            $region37: #{tpu_custom_call.1} parent=35 // pred_check
              _
            $region38: #{tpu_custom_call.1} parent=35 // pred_check_branch
              %266 = sbr.rel (0) target = $region40
            $region39: #{tpu_custom_call.1} parent=35 // pred_region
              // Predicated region
              $region52: #{tpu_custom_call.1} parent=39 // pred_check
                _
              $region53: #{tpu_custom_call.1} parent=39 // pred_check_branch
                %408 = sbr.rel (0) target = $region55
              $region54: #{tpu_custom_call.1} parent=39 // pred_region
                loop: start=0, step=1, limit=1
                $region56: #{tpu_custom_call.1} parent=54 // loop_pre_header
                  _
                $region57: #{tpu_custom_call.1} parent=54 // loop_header
                  %s410 = sphi 0, %s414
                  %p411 = scmp.ge.s32.totalorder %s410, 1
                  %s415 = sphi %s262, %s262
                  %s416 = sphi %s257, %s257
                $region58: #{tpu_custom_call.1} parent=54 // loop_header_branch
                  %413 = sbr.rel (%p411) target = $region62
                $region59: #{tpu_custom_call.1} parent=54 // loop_body
                  %v417 = vld [vmem:[%s415] sm:$0xff]
                  %418 = vst [vmem:[%s416] sm:$0xff] %v417
                  %v419 = vld [vmem:[%s415 + $0x8] sm:$0xff]
                  %420 = vst [vmem:[%s416 + $0x8] sm:$0xff] %v419
                  %v421 = vld [vmem:[%s415 + $0x10] sm:$0xff]
                  %422 = vst [vmem:[%s416 + $0x10] sm:$0xff] %v421
                  %v423 = vld [vmem:[%s415 + $0x18] sm:$0xff]
                  %424 = vst [vmem:[%s416 + $0x18] sm:$0xff] %v423
                  %v425 = vld [vmem:[%s415 + $0x20] sm:$0xff]
                  %426 = vst [vmem:[%s416 + $0x20] sm:$0xff] %v425
                  %v427 = vld [vmem:[%s415 + $0x28] sm:$0xff]
                  %428 = vst [vmem:[%s416 + $0x28] sm:$0xff] %v427
                  %v429 = vld [vmem:[%s415 + $0x30] sm:$0xff]
                  %430 = vst [vmem:[%s416 + $0x30] sm:$0xff] %v429
                  %v431 = vld [vmem:[%s415 + $0x38] sm:$0xff]
                  %432 = vst [vmem:[%s416 + $0x38] sm:$0xff] %v431
                  %v433 = vld [vmem:[%s415 + $0x40] sm:$0xff]
                  %434 = vst [vmem:[%s416 + $0x40] sm:$0xff] %v433
                  %v435 = vld [vmem:[%s415 + $0x48] sm:$0xff]
                  %436 = vst [vmem:[%s416 + $0x48] sm:$0xff] %v435
                  %v437 = vld [vmem:[%s415 + $0x50] sm:$0xff]
                  %438 = vst [vmem:[%s416 + $0x50] sm:$0xff] %v437
                  %v439 = vld [vmem:[%s415 + $0x58] sm:$0xff]
                  %440 = vst [vmem:[%s416 + $0x58] sm:$0xff] %v439
                  %v441 = vld [vmem:[%s415 + $0x60] sm:$0xff]
                  %442 = vst [vmem:[%s416 + $0x60] sm:$0xff] %v441
                  %v443 = vld [vmem:[%s415 + $0x68] sm:$0xff]
                  %444 = vst [vmem:[%s416 + $0x68] sm:$0xff] %v443
                  %v445 = vld [vmem:[%s415 + $0x70] sm:$0xff]
                  %446 = vst [vmem:[%s416 + $0x70] sm:$0xff] %v445
                  %v447 = vld [vmem:[%s415 + $0x78] sm:$0xff]
                  %448 = vst [vmem:[%s416 + $0x78] sm:$0xff] %v447
                  %v449 = vld [vmem:[%s415 + $0x100] sm:$0xff]
                  %450 = vst [vmem:[%s416 + $0x80] sm:$0xff] %v449
                  %v451 = vld [vmem:[%s415 + $0x108] sm:$0xff]
                  %452 = vst [vmem:[%s416 + $0x88] sm:$0xff] %v451
                  %v453 = vld [vmem:[%s415 + $0x110] sm:$0xff]
                  %454 = vst [vmem:[%s416 + $0x90] sm:$0xff] %v453
                  %v455 = vld [vmem:[%s415 + $0x118] sm:$0xff]
                  %456 = vst [vmem:[%s416 + $0x98] sm:$0xff] %v455
                  %v457 = vld [vmem:[%s415 + $0x120] sm:$0xff]
                  %458 = vst [vmem:[%s416 + $0xa0] sm:$0xff] %v457
                  %v459 = vld [vmem:[%s415 + $0x128] sm:$0xff]
                  %460 = vst [vmem:[%s416 + $0xa8] sm:$0xff] %v459
                  %v461 = vld [vmem:[%s415 + $0x130] sm:$0xff]
                  %462 = vst [vmem:[%s416 + $0xb0] sm:$0xff] %v461
                  %v463 = vld [vmem:[%s415 + $0x138] sm:$0xff]
                  %464 = vst [vmem:[%s416 + $0xb8] sm:$0xff] %v463
                  %v465 = vld [vmem:[%s415 + $0x140] sm:$0xff]
                  %466 = vst [vmem:[%s416 + $0xc0] sm:$0xff] %v465
                  %v467 = vld [vmem:[%s415 + $0x148] sm:$0xff]
                  %468 = vst [vmem:[%s416 + $0xc8] sm:$0xff] %v467
                  %v469 = vld [vmem:[%s415 + $0x150] sm:$0xff]
                  %470 = vst [vmem:[%s416 + $0xd0] sm:$0xff] %v469
                  %v471 = vld [vmem:[%s415 + $0x158] sm:$0xff]
                  %472 = vst [vmem:[%s416 + $0xd8] sm:$0xff] %v471
                  %v473 = vld [vmem:[%s415 + $0x160] sm:$0xff]
                  %474 = vst [vmem:[%s416 + $0xe0] sm:$0xff] %v473
                  %v475 = vld [vmem:[%s415 + $0x168] sm:$0xff]
                  %476 = vst [vmem:[%s416 + $0xe8] sm:$0xff] %v475
                  %v477 = vld [vmem:[%s415 + $0x170] sm:$0xff]
                  %478 = vst [vmem:[%s416 + $0xf0] sm:$0xff] %v477
                  %v479 = vld [vmem:[%s415 + $0x178] sm:$0xff]
                  %480 = vst [vmem:[%s416 + $0xf8] sm:$0xff] %v479
                  %v481 = vld [vmem:[%s415 + $0x200] sm:$0xff]
                  %482 = vst [vmem:[%s416 + $0x100] sm:$0xff] %v481
                  %v483 = vld [vmem:[%s415 + $0x208] sm:$0xff]
                  %484 = vst [vmem:[%s416 + $0x108] sm:$0xff] %v483
                  %v485 = vld [vmem:[%s415 + $0x210] sm:$0xff]
                  %486 = vst [vmem:[%s416 + $0x110] sm:$0xff] %v485
                  %v487 = vld [vmem:[%s415 + $0x218] sm:$0xff]
                  %488 = vst [vmem:[%s416 + $0x118] sm:$0xff] %v487
                  %v489 = vld [vmem:[%s415 + $0x220] sm:$0xff]
                  %490 = vst [vmem:[%s416 + $0x120] sm:$0xff] %v489
                  %v491 = vld [vmem:[%s415 + $0x228] sm:$0xff]
                  %492 = vst [vmem:[%s416 + $0x128] sm:$0xff] %v491
                  %v493 = vld [vmem:[%s415 + $0x230] sm:$0xff]
                  %494 = vst [vmem:[%s416 + $0x130] sm:$0xff] %v493
                  %v495 = vld [vmem:[%s415 + $0x238] sm:$0xff]
                  %496 = vst [vmem:[%s416 + $0x138] sm:$0xff] %v495
                  %v497 = vld [vmem:[%s415 + $0x240] sm:$0xff]
                  %498 = vst [vmem:[%s416 + $0x140] sm:$0xff] %v497
                  %v499 = vld [vmem:[%s415 + $0x248] sm:$0xff]
                  %500 = vst [vmem:[%s416 + $0x148] sm:$0xff] %v499
                  %v501 = vld [vmem:[%s415 + $0x250] sm:$0xff]
                  %502 = vst [vmem:[%s416 + $0x150] sm:$0xff] %v501
                  %v503 = vld [vmem:[%s415 + $0x258] sm:$0xff]
                  %504 = vst [vmem:[%s416 + $0x158] sm:$0xff] %v503
                  %v505 = vld [vmem:[%s415 + $0x260] sm:$0xff]
                  %506 = vst [vmem:[%s416 + $0x160] sm:$0xff] %v505
                  %v507 = vld [vmem:[%s415 + $0x268] sm:$0xff]
                  %508 = vst [vmem:[%s416 + $0x168] sm:$0xff] %v507
                  %v509 = vld [vmem:[%s415 + $0x270] sm:$0xff]
                  %510 = vst [vmem:[%s416 + $0x170] sm:$0xff] %v509
                  %v511 = vld [vmem:[%s415 + $0x278] sm:$0xff]
                  %512 = vst [vmem:[%s416 + $0x178] sm:$0xff] %v511
                  %v513 = vld [vmem:[%s415 + $0x300] sm:$0xff]
                  %514 = vst [vmem:[%s416 + $0x180] sm:$0xff] %v513
                  %v515 = vld [vmem:[%s415 + $0x308] sm:$0xff]
                  %516 = vst [vmem:[%s416 + $0x188] sm:$0xff] %v515
                  %v517 = vld [vmem:[%s415 + $0x310] sm:$0xff]
                  %518 = vst [vmem:[%s416 + $0x190] sm:$0xff] %v517
                  %v519 = vld [vmem:[%s415 + $0x318] sm:$0xff]
                  %520 = vst [vmem:[%s416 + $0x198] sm:$0xff] %v519
                  %v521 = vld [vmem:[%s415 + $0x320] sm:$0xff]
                  %522 = vst [vmem:[%s416 + $0x1a0] sm:$0xff] %v521
                  %v523 = vld [vmem:[%s415 + $0x328] sm:$0xff]
                  %524 = vst [vmem:[%s416 + $0x1a8] sm:$0xff] %v523
                  %v525 = vld [vmem:[%s415 + $0x330] sm:$0xff]
                  %526 = vst [vmem:[%s416 + $0x1b0] sm:$0xff] %v525
                  %v527 = vld [vmem:[%s415 + $0x338] sm:$0xff]
                  %528 = vst [vmem:[%s416 + $0x1b8] sm:$0xff] %v527
                  %v529 = vld [vmem:[%s415 + $0x340] sm:$0xff]
                  %530 = vst [vmem:[%s416 + $0x1c0] sm:$0xff] %v529
                  %v531 = vld [vmem:[%s415 + $0x348] sm:$0xff]
                  %532 = vst [vmem:[%s416 + $0x1c8] sm:$0xff] %v531
                  %v533 = vld [vmem:[%s415 + $0x350] sm:$0xff]
                  %534 = vst [vmem:[%s416 + $0x1d0] sm:$0xff] %v533
                  %v535 = vld [vmem:[%s415 + $0x358] sm:$0xff]
                  %536 = vst [vmem:[%s416 + $0x1d8] sm:$0xff] %v535
                  %v537 = vld [vmem:[%s415 + $0x360] sm:$0xff]
                  %538 = vst [vmem:[%s416 + $0x1e0] sm:$0xff] %v537
                  %v539 = vld [vmem:[%s415 + $0x368] sm:$0xff]
                  %540 = vst [vmem:[%s416 + $0x1e8] sm:$0xff] %v539
                  %v541 = vld [vmem:[%s415 + $0x370] sm:$0xff]
                  %542 = vst [vmem:[%s416 + $0x1f0] sm:$0xff] %v541
                  %v543 = vld [vmem:[%s415 + $0x378] sm:$0xff]
                  %544 = vst [vmem:[%s416 + $0x1f8] sm:$0xff] %v543
                $region60: #{tpu_custom_call.1} parent=54 // loop_footer
                  %s414 = sadd.s32 1, %s410
                $region61: #{tpu_custom_call.1} parent=54 // loop_footer_branch
                  %409 = sbr.rel target = $region57
                $region62: #{tpu_custom_call.1} parent=54 // loop_exit
                  _
              $region55: #{tpu_custom_call.1} parent=39 // pred_fallthru
                _
              // Predicated region
              $region63: #{tpu_custom_call.1} parent=39 // pred_check
                _
              $region64: #{tpu_custom_call.1} parent=39 // pred_check_branch
                %546 = sbr.rel target = $region66
              $region65: #{tpu_custom_call.1} parent=39 // pred_region
                _
              $region66: #{tpu_custom_call.1} parent=39 // pred_fallthru
                _
            $region40: #{tpu_custom_call.1} parent=35 // pred_fallthru
              _
            // Predicated region
            $region41: #{tpu_custom_call.1} parent=35 // pred_check
              _
            $region42: #{tpu_custom_call.1} parent=35 // pred_check_branch
              %268 = sbr.rel target = $region44
            $region43: #{tpu_custom_call.1} parent=35 // pred_region
              %s270 = ssub.s32 256, 1
              loop: start=0, step=1, limit=1
              $region45: #{tpu_custom_call.1} parent=43 // loop_pre_header
                _
              $region46: #{tpu_custom_call.1} parent=43 // loop_header
                %s272 = sphi 0, %s276
                %p273 = scmp.ge.s32.totalorder %s272, 1
                %s277 = sphi %s262, %s262
                %s278 = sphi %s257, %s257
              $region47: #{tpu_custom_call.1} parent=43 // loop_header_branch
                %275 = sbr.rel (%p273) target = $region51
              $region48: #{tpu_custom_call.1} parent=43 // loop_body
                %v279 = vld [vmem:[%s277] sm:%s270]
                %280 = vst [vmem:[%s278] sm:%s270] %v279
                %v281 = vld [vmem:[%s277 + $0x8] sm:%s270]
                %282 = vst [vmem:[%s278 + $0x8] sm:%s270] %v281
                %v283 = vld [vmem:[%s277 + $0x10] sm:%s270]
                %284 = vst [vmem:[%s278 + $0x10] sm:%s270] %v283
                %v285 = vld [vmem:[%s277 + $0x18] sm:%s270]
                %286 = vst [vmem:[%s278 + $0x18] sm:%s270] %v285
                %v287 = vld [vmem:[%s277 + $0x20] sm:%s270]
                %288 = vst [vmem:[%s278 + $0x20] sm:%s270] %v287
                %v289 = vld [vmem:[%s277 + $0x28] sm:%s270]
                %290 = vst [vmem:[%s278 + $0x28] sm:%s270] %v289
                %v291 = vld [vmem:[%s277 + $0x30] sm:%s270]
                %292 = vst [vmem:[%s278 + $0x30] sm:%s270] %v291
                %v293 = vld [vmem:[%s277 + $0x38] sm:%s270]
                %294 = vst [vmem:[%s278 + $0x38] sm:%s270] %v293
                %v295 = vld [vmem:[%s277 + $0x40] sm:%s270]
                %296 = vst [vmem:[%s278 + $0x40] sm:%s270] %v295
                %v297 = vld [vmem:[%s277 + $0x48] sm:%s270]
                %298 = vst [vmem:[%s278 + $0x48] sm:%s270] %v297
                %v299 = vld [vmem:[%s277 + $0x50] sm:%s270]
                %300 = vst [vmem:[%s278 + $0x50] sm:%s270] %v299
                %v301 = vld [vmem:[%s277 + $0x58] sm:%s270]
                %302 = vst [vmem:[%s278 + $0x58] sm:%s270] %v301
                %v303 = vld [vmem:[%s277 + $0x60] sm:%s270]
                %304 = vst [vmem:[%s278 + $0x60] sm:%s270] %v303
                %v305 = vld [vmem:[%s277 + $0x68] sm:%s270]
                %306 = vst [vmem:[%s278 + $0x68] sm:%s270] %v305
                %v307 = vld [vmem:[%s277 + $0x70] sm:%s270]
                %308 = vst [vmem:[%s278 + $0x70] sm:%s270] %v307
                %v309 = vld [vmem:[%s277 + $0x78] sm:%s270]
                %310 = vst [vmem:[%s278 + $0x78] sm:%s270] %v309
                %v311 = vld [vmem:[%s277 + $0x100] sm:%s270]
                %312 = vst [vmem:[%s278 + $0x80] sm:%s270] %v311
                %v313 = vld [vmem:[%s277 + $0x108] sm:%s270]
                %314 = vst [vmem:[%s278 + $0x88] sm:%s270] %v313
                %v315 = vld [vmem:[%s277 + $0x110] sm:%s270]
                %316 = vst [vmem:[%s278 + $0x90] sm:%s270] %v315
                %v317 = vld [vmem:[%s277 + $0x118] sm:%s270]
                %318 = vst [vmem:[%s278 + $0x98] sm:%s270] %v317
                %v319 = vld [vmem:[%s277 + $0x120] sm:%s270]
                %320 = vst [vmem:[%s278 + $0xa0] sm:%s270] %v319
                %v321 = vld [vmem:[%s277 + $0x128] sm:%s270]
                %322 = vst [vmem:[%s278 + $0xa8] sm:%s270] %v321
                %v323 = vld [vmem:[%s277 + $0x130] sm:%s270]
                %324 = vst [vmem:[%s278 + $0xb0] sm:%s270] %v323
                %v325 = vld [vmem:[%s277 + $0x138] sm:%s270]
                %326 = vst [vmem:[%s278 + $0xb8] sm:%s270] %v325
                %v327 = vld [vmem:[%s277 + $0x140] sm:%s270]
                %328 = vst [vmem:[%s278 + $0xc0] sm:%s270] %v327
                %v329 = vld [vmem:[%s277 + $0x148] sm:%s270]
                %330 = vst [vmem:[%s278 + $0xc8] sm:%s270] %v329
                %v331 = vld [vmem:[%s277 + $0x150] sm:%s270]
                %332 = vst [vmem:[%s278 + $0xd0] sm:%s270] %v331
                %v333 = vld [vmem:[%s277 + $0x158] sm:%s270]
                %334 = vst [vmem:[%s278 + $0xd8] sm:%s270] %v333
                %v335 = vld [vmem:[%s277 + $0x160] sm:%s270]
                %336 = vst [vmem:[%s278 + $0xe0] sm:%s270] %v335
                %v337 = vld [vmem:[%s277 + $0x168] sm:%s270]
                %338 = vst [vmem:[%s278 + $0xe8] sm:%s270] %v337
                %v339 = vld [vmem:[%s277 + $0x170] sm:%s270]
                %340 = vst [vmem:[%s278 + $0xf0] sm:%s270] %v339
                %v341 = vld [vmem:[%s277 + $0x178] sm:%s270]
                %342 = vst [vmem:[%s278 + $0xf8] sm:%s270] %v341
                %v343 = vld [vmem:[%s277 + $0x200] sm:%s270]
                %344 = vst [vmem:[%s278 + $0x100] sm:%s270] %v343
                %v345 = vld [vmem:[%s277 + $0x208] sm:%s270]
                %346 = vst [vmem:[%s278 + $0x108] sm:%s270] %v345
                %v347 = vld [vmem:[%s277 + $0x210] sm:%s270]
                %348 = vst [vmem:[%s278 + $0x110] sm:%s270] %v347
                %v349 = vld [vmem:[%s277 + $0x218] sm:%s270]
                %350 = vst [vmem:[%s278 + $0x118] sm:%s270] %v349
                %v351 = vld [vmem:[%s277 + $0x220] sm:%s270]
                %352 = vst [vmem:[%s278 + $0x120] sm:%s270] %v351
                %v353 = vld [vmem:[%s277 + $0x228] sm:%s270]
                %354 = vst [vmem:[%s278 + $0x128] sm:%s270] %v353
                %v355 = vld [vmem:[%s277 + $0x230] sm:%s270]
                %356 = vst [vmem:[%s278 + $0x130] sm:%s270] %v355
                %v357 = vld [vmem:[%s277 + $0x238] sm:%s270]
                %358 = vst [vmem:[%s278 + $0x138] sm:%s270] %v357
                %v359 = vld [vmem:[%s277 + $0x240] sm:%s270]
                %360 = vst [vmem:[%s278 + $0x140] sm:%s270] %v359
                %v361 = vld [vmem:[%s277 + $0x248] sm:%s270]
                %362 = vst [vmem:[%s278 + $0x148] sm:%s270] %v361
                %v363 = vld [vmem:[%s277 + $0x250] sm:%s270]
                %364 = vst [vmem:[%s278 + $0x150] sm:%s270] %v363
                %v365 = vld [vmem:[%s277 + $0x258] sm:%s270]
                %366 = vst [vmem:[%s278 + $0x158] sm:%s270] %v365
                %v367 = vld [vmem:[%s277 + $0x260] sm:%s270]
                %368 = vst [vmem:[%s278 + $0x160] sm:%s270] %v367
                %v369 = vld [vmem:[%s277 + $0x268] sm:%s270]
                %370 = vst [vmem:[%s278 + $0x168] sm:%s270] %v369
                %v371 = vld [vmem:[%s277 + $0x270] sm:%s270]
                %372 = vst [vmem:[%s278 + $0x170] sm:%s270] %v371
                %v373 = vld [vmem:[%s277 + $0x278] sm:%s270]
                %374 = vst [vmem:[%s278 + $0x178] sm:%s270] %v373
                %v375 = vld [vmem:[%s277 + $0x300] sm:%s270]
                %376 = vst [vmem:[%s278 + $0x180] sm:%s270] %v375
                %v377 = vld [vmem:[%s277 + $0x308] sm:%s270]
                %378 = vst [vmem:[%s278 + $0x188] sm:%s270] %v377
                %v379 = vld [vmem:[%s277 + $0x310] sm:%s270]
                %380 = vst [vmem:[%s278 + $0x190] sm:%s270] %v379
                %v381 = vld [vmem:[%s277 + $0x318] sm:%s270]
                %382 = vst [vmem:[%s278 + $0x198] sm:%s270] %v381
                %v383 = vld [vmem:[%s277 + $0x320] sm:%s270]
                %384 = vst [vmem:[%s278 + $0x1a0] sm:%s270] %v383
                %v385 = vld [vmem:[%s277 + $0x328] sm:%s270]
                %386 = vst [vmem:[%s278 + $0x1a8] sm:%s270] %v385
                %v387 = vld [vmem:[%s277 + $0x330] sm:%s270]
                %388 = vst [vmem:[%s278 + $0x1b0] sm:%s270] %v387
                %v389 = vld [vmem:[%s277 + $0x338] sm:%s270]
                %390 = vst [vmem:[%s278 + $0x1b8] sm:%s270] %v389
                %v391 = vld [vmem:[%s277 + $0x340] sm:%s270]
                %392 = vst [vmem:[%s278 + $0x1c0] sm:%s270] %v391
                %v393 = vld [vmem:[%s277 + $0x348] sm:%s270]
                %394 = vst [vmem:[%s278 + $0x1c8] sm:%s270] %v393
                %v395 = vld [vmem:[%s277 + $0x350] sm:%s270]
                %396 = vst [vmem:[%s278 + $0x1d0] sm:%s270] %v395
                %v397 = vld [vmem:[%s277 + $0x358] sm:%s270]
                %398 = vst [vmem:[%s278 + $0x1d8] sm:%s270] %v397
                %v399 = vld [vmem:[%s277 + $0x360] sm:%s270]
                %400 = vst [vmem:[%s278 + $0x1e0] sm:%s270] %v399
                %v401 = vld [vmem:[%s277 + $0x368] sm:%s270]
                %402 = vst [vmem:[%s278 + $0x1e8] sm:%s270] %v401
                %v403 = vld [vmem:[%s277 + $0x370] sm:%s270]
                %404 = vst [vmem:[%s278 + $0x1f0] sm:%s270] %v403
                %v405 = vld [vmem:[%s277 + $0x378] sm:%s270]
                %406 = vst [vmem:[%s278 + $0x1f8] sm:%s270] %v405
              $region49: #{tpu_custom_call.1} parent=43 // loop_footer
                %s276 = sadd.s32 1, %s272
              $region50: #{tpu_custom_call.1} parent=43 // loop_footer_branch
                %271 = sbr.rel target = $region46
              $region51: #{tpu_custom_call.1} parent=43 // loop_exit
                _
            $region44: #{tpu_custom_call.1} parent=35 // pred_fallthru
              _
          $region36: #{tpu_custom_call.1} parent=31 // pred_fallthru
            _
          %547 = vnop
        $region32: #{tpu_custom_call.1} parent=23 // pred_fallthru
          _
        // Predicated region
        $region67: #{tpu_custom_call.1} parent=23 // pred_check
          %p548 = pneg %p109
        $region68: #{tpu_custom_call.1} parent=23 // pred_check_branch
          %550 = sbr.rel (%p548) target = $region70
        $region69: #{tpu_custom_call.1} parent=23 // pred_region
          %s551 = sand.u32 %s99, 1
          %s552 = sand.u32 %s99, 1
          %s553 = smul.addr %s552, 512
          %s554 = scalar_lea.vmem [#allocation4], %s553
          %s555 = smul.u32 16, %s21
          %s556 = smul.addr %s19, 128
          %s557 = sadd.s32 %s555, %s556
          %s558 = smul.addr %s557, 8
          %s559 = scalar_lea.vmem %s2, %s558
          // Predicated region
          $region71: #{tpu_custom_call.1} parent=69 // pred_check
            _
          $region72: #{tpu_custom_call.1} parent=69 // pred_check_branch
            %561 = sbr.rel (0) target = $region74
          $region73: #{tpu_custom_call.1} parent=69 // pred_region
            // Predicated region
            $region75: #{tpu_custom_call.1} parent=73 // pred_check
              _
            $region76: #{tpu_custom_call.1} parent=73 // pred_check_branch
              %563 = sbr.rel (0) target = $region78
            $region77: #{tpu_custom_call.1} parent=73 // pred_region
              // Predicated region
              $region90: #{tpu_custom_call.1} parent=77 // pred_check
                _
              $region91: #{tpu_custom_call.1} parent=77 // pred_check_branch
                %705 = sbr.rel (0) target = $region93
              $region92: #{tpu_custom_call.1} parent=77 // pred_region
                loop: start=0, step=1, limit=1
                $region94: #{tpu_custom_call.1} parent=92 // loop_pre_header
                  _
                $region95: #{tpu_custom_call.1} parent=92 // loop_header
                  %s707 = sphi 0, %s711
                  %p708 = scmp.ge.s32.totalorder %s707, 1
                  %s712 = sphi %s559, %s559
                  %s713 = sphi %s554, %s554
                $region96: #{tpu_custom_call.1} parent=92 // loop_header_branch
                  %710 = sbr.rel (%p708) target = $region100
                $region97: #{tpu_custom_call.1} parent=92 // loop_body
                  %v714 = vld [vmem:[%s712] sm:$0xff]
                  %715 = vst [vmem:[%s713] sm:$0xff] %v714
                  %v716 = vld [vmem:[%s712 + $0x8] sm:$0xff]
                  %717 = vst [vmem:[%s713 + $0x8] sm:$0xff] %v716
                  %v718 = vld [vmem:[%s712 + $0x10] sm:$0xff]
                  %719 = vst [vmem:[%s713 + $0x10] sm:$0xff] %v718
                  %v720 = vld [vmem:[%s712 + $0x18] sm:$0xff]
                  %721 = vst [vmem:[%s713 + $0x18] sm:$0xff] %v720
                  %v722 = vld [vmem:[%s712 + $0x20] sm:$0xff]
                  %723 = vst [vmem:[%s713 + $0x20] sm:$0xff] %v722
                  %v724 = vld [vmem:[%s712 + $0x28] sm:$0xff]
                  %725 = vst [vmem:[%s713 + $0x28] sm:$0xff] %v724
                  %v726 = vld [vmem:[%s712 + $0x30] sm:$0xff]
                  %727 = vst [vmem:[%s713 + $0x30] sm:$0xff] %v726
                  %v728 = vld [vmem:[%s712 + $0x38] sm:$0xff]
                  %729 = vst [vmem:[%s713 + $0x38] sm:$0xff] %v728
                  %v730 = vld [vmem:[%s712 + $0x40] sm:$0xff]
                  %731 = vst [vmem:[%s713 + $0x40] sm:$0xff] %v730
                  %v732 = vld [vmem:[%s712 + $0x48] sm:$0xff]
                  %733 = vst [vmem:[%s713 + $0x48] sm:$0xff] %v732
                  %v734 = vld [vmem:[%s712 + $0x50] sm:$0xff]
                  %735 = vst [vmem:[%s713 + $0x50] sm:$0xff] %v734
                  %v736 = vld [vmem:[%s712 + $0x58] sm:$0xff]
                  %737 = vst [vmem:[%s713 + $0x58] sm:$0xff] %v736
                  %v738 = vld [vmem:[%s712 + $0x60] sm:$0xff]
                  %739 = vst [vmem:[%s713 + $0x60] sm:$0xff] %v738
                  %v740 = vld [vmem:[%s712 + $0x68] sm:$0xff]
                  %741 = vst [vmem:[%s713 + $0x68] sm:$0xff] %v740
                  %v742 = vld [vmem:[%s712 + $0x70] sm:$0xff]
                  %743 = vst [vmem:[%s713 + $0x70] sm:$0xff] %v742
                  %v744 = vld [vmem:[%s712 + $0x78] sm:$0xff]
                  %745 = vst [vmem:[%s713 + $0x78] sm:$0xff] %v744
                  %v746 = vld [vmem:[%s712 + $0x100] sm:$0xff]
                  %747 = vst [vmem:[%s713 + $0x80] sm:$0xff] %v746
                  %v748 = vld [vmem:[%s712 + $0x108] sm:$0xff]
                  %749 = vst [vmem:[%s713 + $0x88] sm:$0xff] %v748
                  %v750 = vld [vmem:[%s712 + $0x110] sm:$0xff]
                  %751 = vst [vmem:[%s713 + $0x90] sm:$0xff] %v750
                  %v752 = vld [vmem:[%s712 + $0x118] sm:$0xff]
                  %753 = vst [vmem:[%s713 + $0x98] sm:$0xff] %v752
                  %v754 = vld [vmem:[%s712 + $0x120] sm:$0xff]
                  %755 = vst [vmem:[%s713 + $0xa0] sm:$0xff] %v754
                  %v756 = vld [vmem:[%s712 + $0x128] sm:$0xff]
                  %757 = vst [vmem:[%s713 + $0xa8] sm:$0xff] %v756
                  %v758 = vld [vmem:[%s712 + $0x130] sm:$0xff]
                  %759 = vst [vmem:[%s713 + $0xb0] sm:$0xff] %v758
                  %v760 = vld [vmem:[%s712 + $0x138] sm:$0xff]
                  %761 = vst [vmem:[%s713 + $0xb8] sm:$0xff] %v760
                  %v762 = vld [vmem:[%s712 + $0x140] sm:$0xff]
                  %763 = vst [vmem:[%s713 + $0xc0] sm:$0xff] %v762
                  %v764 = vld [vmem:[%s712 + $0x148] sm:$0xff]
                  %765 = vst [vmem:[%s713 + $0xc8] sm:$0xff] %v764
                  %v766 = vld [vmem:[%s712 + $0x150] sm:$0xff]
                  %767 = vst [vmem:[%s713 + $0xd0] sm:$0xff] %v766
                  %v768 = vld [vmem:[%s712 + $0x158] sm:$0xff]
                  %769 = vst [vmem:[%s713 + $0xd8] sm:$0xff] %v768
                  %v770 = vld [vmem:[%s712 + $0x160] sm:$0xff]
                  %771 = vst [vmem:[%s713 + $0xe0] sm:$0xff] %v770
                  %v772 = vld [vmem:[%s712 + $0x168] sm:$0xff]
                  %773 = vst [vmem:[%s713 + $0xe8] sm:$0xff] %v772
                  %v774 = vld [vmem:[%s712 + $0x170] sm:$0xff]
                  %775 = vst [vmem:[%s713 + $0xf0] sm:$0xff] %v774
                  %v776 = vld [vmem:[%s712 + $0x178] sm:$0xff]
                  %777 = vst [vmem:[%s713 + $0xf8] sm:$0xff] %v776
                  %v778 = vld [vmem:[%s712 + $0x200] sm:$0xff]
                  %779 = vst [vmem:[%s713 + $0x100] sm:$0xff] %v778
                  %v780 = vld [vmem:[%s712 + $0x208] sm:$0xff]
                  %781 = vst [vmem:[%s713 + $0x108] sm:$0xff] %v780
                  %v782 = vld [vmem:[%s712 + $0x210] sm:$0xff]
                  %783 = vst [vmem:[%s713 + $0x110] sm:$0xff] %v782
                  %v784 = vld [vmem:[%s712 + $0x218] sm:$0xff]
                  %785 = vst [vmem:[%s713 + $0x118] sm:$0xff] %v784
                  %v786 = vld [vmem:[%s712 + $0x220] sm:$0xff]
                  %787 = vst [vmem:[%s713 + $0x120] sm:$0xff] %v786
                  %v788 = vld [vmem:[%s712 + $0x228] sm:$0xff]
                  %789 = vst [vmem:[%s713 + $0x128] sm:$0xff] %v788
                  %v790 = vld [vmem:[%s712 + $0x230] sm:$0xff]
                  %791 = vst [vmem:[%s713 + $0x130] sm:$0xff] %v790
                  %v792 = vld [vmem:[%s712 + $0x238] sm:$0xff]
                  %793 = vst [vmem:[%s713 + $0x138] sm:$0xff] %v792
                  %v794 = vld [vmem:[%s712 + $0x240] sm:$0xff]
                  %795 = vst [vmem:[%s713 + $0x140] sm:$0xff] %v794
                  %v796 = vld [vmem:[%s712 + $0x248] sm:$0xff]
                  %797 = vst [vmem:[%s713 + $0x148] sm:$0xff] %v796
                  %v798 = vld [vmem:[%s712 + $0x250] sm:$0xff]
                  %799 = vst [vmem:[%s713 + $0x150] sm:$0xff] %v798
                  %v800 = vld [vmem:[%s712 + $0x258] sm:$0xff]
                  %801 = vst [vmem:[%s713 + $0x158] sm:$0xff] %v800
                  %v802 = vld [vmem:[%s712 + $0x260] sm:$0xff]
                  %803 = vst [vmem:[%s713 + $0x160] sm:$0xff] %v802
                  %v804 = vld [vmem:[%s712 + $0x268] sm:$0xff]
                  %805 = vst [vmem:[%s713 + $0x168] sm:$0xff] %v804
                  %v806 = vld [vmem:[%s712 + $0x270] sm:$0xff]
                  %807 = vst [vmem:[%s713 + $0x170] sm:$0xff] %v806
                  %v808 = vld [vmem:[%s712 + $0x278] sm:$0xff]
                  %809 = vst [vmem:[%s713 + $0x178] sm:$0xff] %v808
                  %v810 = vld [vmem:[%s712 + $0x300] sm:$0xff]
                  %811 = vst [vmem:[%s713 + $0x180] sm:$0xff] %v810
                  %v812 = vld [vmem:[%s712 + $0x308] sm:$0xff]
                  %813 = vst [vmem:[%s713 + $0x188] sm:$0xff] %v812
                  %v814 = vld [vmem:[%s712 + $0x310] sm:$0xff]
                  %815 = vst [vmem:[%s713 + $0x190] sm:$0xff] %v814
                  %v816 = vld [vmem:[%s712 + $0x318] sm:$0xff]
                  %817 = vst [vmem:[%s713 + $0x198] sm:$0xff] %v816
                  %v818 = vld [vmem:[%s712 + $0x320] sm:$0xff]
                  %819 = vst [vmem:[%s713 + $0x1a0] sm:$0xff] %v818
                  %v820 = vld [vmem:[%s712 + $0x328] sm:$0xff]
                  %821 = vst [vmem:[%s713 + $0x1a8] sm:$0xff] %v820
                  %v822 = vld [vmem:[%s712 + $0x330] sm:$0xff]
                  %823 = vst [vmem:[%s713 + $0x1b0] sm:$0xff] %v822
                  %v824 = vld [vmem:[%s712 + $0x338] sm:$0xff]
                  %825 = vst [vmem:[%s713 + $0x1b8] sm:$0xff] %v824
                  %v826 = vld [vmem:[%s712 + $0x340] sm:$0xff]
                  %827 = vst [vmem:[%s713 + $0x1c0] sm:$0xff] %v826
                  %v828 = vld [vmem:[%s712 + $0x348] sm:$0xff]
                  %829 = vst [vmem:[%s713 + $0x1c8] sm:$0xff] %v828
                  %v830 = vld [vmem:[%s712 + $0x350] sm:$0xff]
                  %831 = vst [vmem:[%s713 + $0x1d0] sm:$0xff] %v830
                  %v832 = vld [vmem:[%s712 + $0x358] sm:$0xff]
                  %833 = vst [vmem:[%s713 + $0x1d8] sm:$0xff] %v832
                  %v834 = vld [vmem:[%s712 + $0x360] sm:$0xff]
                  %835 = vst [vmem:[%s713 + $0x1e0] sm:$0xff] %v834
                  %v836 = vld [vmem:[%s712 + $0x368] sm:$0xff]
                  %837 = vst [vmem:[%s713 + $0x1e8] sm:$0xff] %v836
                  %v838 = vld [vmem:[%s712 + $0x370] sm:$0xff]
                  %839 = vst [vmem:[%s713 + $0x1f0] sm:$0xff] %v838
                  %v840 = vld [vmem:[%s712 + $0x378] sm:$0xff]
                  %841 = vst [vmem:[%s713 + $0x1f8] sm:$0xff] %v840
                $region98: #{tpu_custom_call.1} parent=92 // loop_footer
                  %s711 = sadd.s32 1, %s707
                $region99: #{tpu_custom_call.1} parent=92 // loop_footer_branch
                  %706 = sbr.rel target = $region95
                $region100: #{tpu_custom_call.1} parent=92 // loop_exit
                  _
              $region93: #{tpu_custom_call.1} parent=77 // pred_fallthru
                _
              // Predicated region
              $region101: #{tpu_custom_call.1} parent=77 // pred_check
                _
              $region102: #{tpu_custom_call.1} parent=77 // pred_check_branch
                %843 = sbr.rel target = $region104
              $region103: #{tpu_custom_call.1} parent=77 // pred_region
                _
              $region104: #{tpu_custom_call.1} parent=77 // pred_fallthru
                _
            $region78: #{tpu_custom_call.1} parent=73 // pred_fallthru
              _
            // Predicated region
            $region79: #{tpu_custom_call.1} parent=73 // pred_check
              _
            $region80: #{tpu_custom_call.1} parent=73 // pred_check_branch
              %565 = sbr.rel target = $region82
            $region81: #{tpu_custom_call.1} parent=73 // pred_region
              %s567 = ssub.s32 256, 1
              loop: start=0, step=1, limit=1
              $region83: #{tpu_custom_call.1} parent=81 // loop_pre_header
                _
              $region84: #{tpu_custom_call.1} parent=81 // loop_header
                %s569 = sphi 0, %s573
                %p570 = scmp.ge.s32.totalorder %s569, 1
                %s574 = sphi %s559, %s559
                %s575 = sphi %s554, %s554
              $region85: #{tpu_custom_call.1} parent=81 // loop_header_branch
                %572 = sbr.rel (%p570) target = $region89
              $region86: #{tpu_custom_call.1} parent=81 // loop_body
                %v576 = vld [vmem:[%s574] sm:%s567]
                %577 = vst [vmem:[%s575] sm:%s567] %v576
                %v578 = vld [vmem:[%s574 + $0x8] sm:%s567]
                %579 = vst [vmem:[%s575 + $0x8] sm:%s567] %v578
                %v580 = vld [vmem:[%s574 + $0x10] sm:%s567]
                %581 = vst [vmem:[%s575 + $0x10] sm:%s567] %v580
                %v582 = vld [vmem:[%s574 + $0x18] sm:%s567]
                %583 = vst [vmem:[%s575 + $0x18] sm:%s567] %v582
                %v584 = vld [vmem:[%s574 + $0x20] sm:%s567]
                %585 = vst [vmem:[%s575 + $0x20] sm:%s567] %v584
                %v586 = vld [vmem:[%s574 + $0x28] sm:%s567]
                %587 = vst [vmem:[%s575 + $0x28] sm:%s567] %v586
                %v588 = vld [vmem:[%s574 + $0x30] sm:%s567]
                %589 = vst [vmem:[%s575 + $0x30] sm:%s567] %v588
                %v590 = vld [vmem:[%s574 + $0x38] sm:%s567]
                %591 = vst [vmem:[%s575 + $0x38] sm:%s567] %v590
                %v592 = vld [vmem:[%s574 + $0x40] sm:%s567]
                %593 = vst [vmem:[%s575 + $0x40] sm:%s567] %v592
                %v594 = vld [vmem:[%s574 + $0x48] sm:%s567]
                %595 = vst [vmem:[%s575 + $0x48] sm:%s567] %v594
                %v596 = vld [vmem:[%s574 + $0x50] sm:%s567]
                %597 = vst [vmem:[%s575 + $0x50] sm:%s567] %v596
                %v598 = vld [vmem:[%s574 + $0x58] sm:%s567]
                %599 = vst [vmem:[%s575 + $0x58] sm:%s567] %v598
                %v600 = vld [vmem:[%s574 + $0x60] sm:%s567]
                %601 = vst [vmem:[%s575 + $0x60] sm:%s567] %v600
                %v602 = vld [vmem:[%s574 + $0x68] sm:%s567]
                %603 = vst [vmem:[%s575 + $0x68] sm:%s567] %v602
                %v604 = vld [vmem:[%s574 + $0x70] sm:%s567]
                %605 = vst [vmem:[%s575 + $0x70] sm:%s567] %v604
                %v606 = vld [vmem:[%s574 + $0x78] sm:%s567]
                %607 = vst [vmem:[%s575 + $0x78] sm:%s567] %v606
                %v608 = vld [vmem:[%s574 + $0x100] sm:%s567]
                %609 = vst [vmem:[%s575 + $0x80] sm:%s567] %v608
                %v610 = vld [vmem:[%s574 + $0x108] sm:%s567]
                %611 = vst [vmem:[%s575 + $0x88] sm:%s567] %v610
                %v612 = vld [vmem:[%s574 + $0x110] sm:%s567]
                %613 = vst [vmem:[%s575 + $0x90] sm:%s567] %v612
                %v614 = vld [vmem:[%s574 + $0x118] sm:%s567]
                %615 = vst [vmem:[%s575 + $0x98] sm:%s567] %v614
                %v616 = vld [vmem:[%s574 + $0x120] sm:%s567]
                %617 = vst [vmem:[%s575 + $0xa0] sm:%s567] %v616
                %v618 = vld [vmem:[%s574 + $0x128] sm:%s567]
                %619 = vst [vmem:[%s575 + $0xa8] sm:%s567] %v618
                %v620 = vld [vmem:[%s574 + $0x130] sm:%s567]
                %621 = vst [vmem:[%s575 + $0xb0] sm:%s567] %v620
                %v622 = vld [vmem:[%s574 + $0x138] sm:%s567]
                %623 = vst [vmem:[%s575 + $0xb8] sm:%s567] %v622
                %v624 = vld [vmem:[%s574 + $0x140] sm:%s567]
                %625 = vst [vmem:[%s575 + $0xc0] sm:%s567] %v624
                %v626 = vld [vmem:[%s574 + $0x148] sm:%s567]
                %627 = vst [vmem:[%s575 + $0xc8] sm:%s567] %v626
                %v628 = vld [vmem:[%s574 + $0x150] sm:%s567]
                %629 = vst [vmem:[%s575 + $0xd0] sm:%s567] %v628
                %v630 = vld [vmem:[%s574 + $0x158] sm:%s567]
                %631 = vst [vmem:[%s575 + $0xd8] sm:%s567] %v630
                %v632 = vld [vmem:[%s574 + $0x160] sm:%s567]
                %633 = vst [vmem:[%s575 + $0xe0] sm:%s567] %v632
                %v634 = vld [vmem:[%s574 + $0x168] sm:%s567]
                %635 = vst [vmem:[%s575 + $0xe8] sm:%s567] %v634
                %v636 = vld [vmem:[%s574 + $0x170] sm:%s567]
                %637 = vst [vmem:[%s575 + $0xf0] sm:%s567] %v636
                %v638 = vld [vmem:[%s574 + $0x178] sm:%s567]
                %639 = vst [vmem:[%s575 + $0xf8] sm:%s567] %v638
                %v640 = vld [vmem:[%s574 + $0x200] sm:%s567]
                %641 = vst [vmem:[%s575 + $0x100] sm:%s567] %v640
                %v642 = vld [vmem:[%s574 + $0x208] sm:%s567]
                %643 = vst [vmem:[%s575 + $0x108] sm:%s567] %v642
                %v644 = vld [vmem:[%s574 + $0x210] sm:%s567]
                %645 = vst [vmem:[%s575 + $0x110] sm:%s567] %v644
                %v646 = vld [vmem:[%s574 + $0x218] sm:%s567]
                %647 = vst [vmem:[%s575 + $0x118] sm:%s567] %v646
                %v648 = vld [vmem:[%s574 + $0x220] sm:%s567]
                %649 = vst [vmem:[%s575 + $0x120] sm:%s567] %v648
                %v650 = vld [vmem:[%s574 + $0x228] sm:%s567]
                %651 = vst [vmem:[%s575 + $0x128] sm:%s567] %v650
                %v652 = vld [vmem:[%s574 + $0x230] sm:%s567]
                %653 = vst [vmem:[%s575 + $0x130] sm:%s567] %v652
                %v654 = vld [vmem:[%s574 + $0x238] sm:%s567]
                %655 = vst [vmem:[%s575 + $0x138] sm:%s567] %v654
                %v656 = vld [vmem:[%s574 + $0x240] sm:%s567]
                %657 = vst [vmem:[%s575 + $0x140] sm:%s567] %v656
                %v658 = vld [vmem:[%s574 + $0x248] sm:%s567]
                %659 = vst [vmem:[%s575 + $0x148] sm:%s567] %v658
                %v660 = vld [vmem:[%s574 + $0x250] sm:%s567]
                %661 = vst [vmem:[%s575 + $0x150] sm:%s567] %v660
                %v662 = vld [vmem:[%s574 + $0x258] sm:%s567]
                %663 = vst [vmem:[%s575 + $0x158] sm:%s567] %v662
                %v664 = vld [vmem:[%s574 + $0x260] sm:%s567]
                %665 = vst [vmem:[%s575 + $0x160] sm:%s567] %v664
                %v666 = vld [vmem:[%s574 + $0x268] sm:%s567]
                %667 = vst [vmem:[%s575 + $0x168] sm:%s567] %v666
                %v668 = vld [vmem:[%s574 + $0x270] sm:%s567]
                %669 = vst [vmem:[%s575 + $0x170] sm:%s567] %v668
                %v670 = vld [vmem:[%s574 + $0x278] sm:%s567]
                %671 = vst [vmem:[%s575 + $0x178] sm:%s567] %v670
                %v672 = vld [vmem:[%s574 + $0x300] sm:%s567]
                %673 = vst [vmem:[%s575 + $0x180] sm:%s567] %v672
                %v674 = vld [vmem:[%s574 + $0x308] sm:%s567]
                %675 = vst [vmem:[%s575 + $0x188] sm:%s567] %v674
                %v676 = vld [vmem:[%s574 + $0x310] sm:%s567]
                %677 = vst [vmem:[%s575 + $0x190] sm:%s567] %v676
                %v678 = vld [vmem:[%s574 + $0x318] sm:%s567]
                %679 = vst [vmem:[%s575 + $0x198] sm:%s567] %v678
                %v680 = vld [vmem:[%s574 + $0x320] sm:%s567]
                %681 = vst [vmem:[%s575 + $0x1a0] sm:%s567] %v680
                %v682 = vld [vmem:[%s574 + $0x328] sm:%s567]
                %683 = vst [vmem:[%s575 + $0x1a8] sm:%s567] %v682
                %v684 = vld [vmem:[%s574 + $0x330] sm:%s567]
                %685 = vst [vmem:[%s575 + $0x1b0] sm:%s567] %v684
                %v686 = vld [vmem:[%s574 + $0x338] sm:%s567]
                %687 = vst [vmem:[%s575 + $0x1b8] sm:%s567] %v686
                %v688 = vld [vmem:[%s574 + $0x340] sm:%s567]
                %689 = vst [vmem:[%s575 + $0x1c0] sm:%s567] %v688
                %v690 = vld [vmem:[%s574 + $0x348] sm:%s567]
                %691 = vst [vmem:[%s575 + $0x1c8] sm:%s567] %v690
                %v692 = vld [vmem:[%s574 + $0x350] sm:%s567]
                %693 = vst [vmem:[%s575 + $0x1d0] sm:%s567] %v692
                %v694 = vld [vmem:[%s574 + $0x358] sm:%s567]
                %695 = vst [vmem:[%s575 + $0x1d8] sm:%s567] %v694
                %v696 = vld [vmem:[%s574 + $0x360] sm:%s567]
                %697 = vst [vmem:[%s575 + $0x1e0] sm:%s567] %v696
                %v698 = vld [vmem:[%s574 + $0x368] sm:%s567]
                %699 = vst [vmem:[%s575 + $0x1e8] sm:%s567] %v698
                %v700 = vld [vmem:[%s574 + $0x370] sm:%s567]
                %701 = vst [vmem:[%s575 + $0x1f0] sm:%s567] %v700
                %v702 = vld [vmem:[%s574 + $0x378] sm:%s567]
                %703 = vst [vmem:[%s575 + $0x1f8] sm:%s567] %v702
              $region87: #{tpu_custom_call.1} parent=81 // loop_footer
                %s573 = sadd.s32 1, %s569
              $region88: #{tpu_custom_call.1} parent=81 // loop_footer_branch
                %568 = sbr.rel target = $region84
              $region89: #{tpu_custom_call.1} parent=81 // loop_exit
                _
            $region82: #{tpu_custom_call.1} parent=73 // pred_fallthru
              _
          $region74: #{tpu_custom_call.1} parent=69 // pred_fallthru
            _
          %844 = vnop
        $region70: #{tpu_custom_call.1} parent=23 // pred_fallthru
          _
        // Predicated region
        $region105: #{tpu_custom_call.1} parent=23 // pred_check
          %p845 = pneg %p137
        $region106: #{tpu_custom_call.1} parent=23 // pred_check_branch
          %847 = sbr.rel (%p845) target = $region108
        $region107: #{tpu_custom_call.1} parent=23 // pred_region
          %s848 = sand.u32 %s127, 1
          %s849 = sand.u32 %s127, 1
          %s850 = smul.addr %s849, 512
          %s851 = scalar_lea.vmem [#allocation5], %s850
          %s852 = smul.u32 16, %s21
          %s853 = smul.addr %s19, 128
          %s854 = sadd.s32 %s852, %s853
          %s855 = smul.addr %s854, 8
          %s856 = scalar_lea.vmem %s3, %s855
          // Predicated region
          $region109: #{tpu_custom_call.1} parent=107 // pred_check
            _
          $region110: #{tpu_custom_call.1} parent=107 // pred_check_branch
            %858 = sbr.rel (0) target = $region112
          $region111: #{tpu_custom_call.1} parent=107 // pred_region
            // Predicated region
            $region113: #{tpu_custom_call.1} parent=111 // pred_check
              _
            $region114: #{tpu_custom_call.1} parent=111 // pred_check_branch
              %860 = sbr.rel (0) target = $region116
            $region115: #{tpu_custom_call.1} parent=111 // pred_region
              // Predicated region
              $region128: #{tpu_custom_call.1} parent=115 // pred_check
                _
              $region129: #{tpu_custom_call.1} parent=115 // pred_check_branch
                %1002 = sbr.rel (0) target = $region131
              $region130: #{tpu_custom_call.1} parent=115 // pred_region
                loop: start=0, step=1, limit=1
                $region132: #{tpu_custom_call.1} parent=130 // loop_pre_header
                  _
                $region133: #{tpu_custom_call.1} parent=130 // loop_header
                  %s1004 = sphi 0, %s1008
                  %p1005 = scmp.ge.s32.totalorder %s1004, 1
                  %s1009 = sphi %s856, %s856
                  %s1010 = sphi %s851, %s851
                $region134: #{tpu_custom_call.1} parent=130 // loop_header_branch
                  %1007 = sbr.rel (%p1005) target = $region138
                $region135: #{tpu_custom_call.1} parent=130 // loop_body
                  %v1011 = vld [vmem:[%s1009] sm:$0xff]
                  %1012 = vst [vmem:[%s1010] sm:$0xff] %v1011
                  %v1013 = vld [vmem:[%s1009 + $0x8] sm:$0xff]
                  %1014 = vst [vmem:[%s1010 + $0x8] sm:$0xff] %v1013
                  %v1015 = vld [vmem:[%s1009 + $0x10] sm:$0xff]
                  %1016 = vst [vmem:[%s1010 + $0x10] sm:$0xff] %v1015
                  %v1017 = vld [vmem:[%s1009 + $0x18] sm:$0xff]
                  %1018 = vst [vmem:[%s1010 + $0x18] sm:$0xff] %v1017
                  %v1019 = vld [vmem:[%s1009 + $0x20] sm:$0xff]
                  %1020 = vst [vmem:[%s1010 + $0x20] sm:$0xff] %v1019
                  %v1021 = vld [vmem:[%s1009 + $0x28] sm:$0xff]
                  %1022 = vst [vmem:[%s1010 + $0x28] sm:$0xff] %v1021
                  %v1023 = vld [vmem:[%s1009 + $0x30] sm:$0xff]
                  %1024 = vst [vmem:[%s1010 + $0x30] sm:$0xff] %v1023
                  %v1025 = vld [vmem:[%s1009 + $0x38] sm:$0xff]
                  %1026 = vst [vmem:[%s1010 + $0x38] sm:$0xff] %v1025
                  %v1027 = vld [vmem:[%s1009 + $0x40] sm:$0xff]
                  %1028 = vst [vmem:[%s1010 + $0x40] sm:$0xff] %v1027
                  %v1029 = vld [vmem:[%s1009 + $0x48] sm:$0xff]
                  %1030 = vst [vmem:[%s1010 + $0x48] sm:$0xff] %v1029
                  %v1031 = vld [vmem:[%s1009 + $0x50] sm:$0xff]
                  %1032 = vst [vmem:[%s1010 + $0x50] sm:$0xff] %v1031
                  %v1033 = vld [vmem:[%s1009 + $0x58] sm:$0xff]
                  %1034 = vst [vmem:[%s1010 + $0x58] sm:$0xff] %v1033
                  %v1035 = vld [vmem:[%s1009 + $0x60] sm:$0xff]
                  %1036 = vst [vmem:[%s1010 + $0x60] sm:$0xff] %v1035
                  %v1037 = vld [vmem:[%s1009 + $0x68] sm:$0xff]
                  %1038 = vst [vmem:[%s1010 + $0x68] sm:$0xff] %v1037
                  %v1039 = vld [vmem:[%s1009 + $0x70] sm:$0xff]
                  %1040 = vst [vmem:[%s1010 + $0x70] sm:$0xff] %v1039
                  %v1041 = vld [vmem:[%s1009 + $0x78] sm:$0xff]
                  %1042 = vst [vmem:[%s1010 + $0x78] sm:$0xff] %v1041
                  %v1043 = vld [vmem:[%s1009 + $0x100] sm:$0xff]
                  %1044 = vst [vmem:[%s1010 + $0x80] sm:$0xff] %v1043
                  %v1045 = vld [vmem:[%s1009 + $0x108] sm:$0xff]
                  %1046 = vst [vmem:[%s1010 + $0x88] sm:$0xff] %v1045
                  %v1047 = vld [vmem:[%s1009 + $0x110] sm:$0xff]
                  %1048 = vst [vmem:[%s1010 + $0x90] sm:$0xff] %v1047
                  %v1049 = vld [vmem:[%s1009 + $0x118] sm:$0xff]
                  %1050 = vst [vmem:[%s1010 + $0x98] sm:$0xff] %v1049
                  %v1051 = vld [vmem:[%s1009 + $0x120] sm:$0xff]
                  %1052 = vst [vmem:[%s1010 + $0xa0] sm:$0xff] %v1051
                  %v1053 = vld [vmem:[%s1009 + $0x128] sm:$0xff]
                  %1054 = vst [vmem:[%s1010 + $0xa8] sm:$0xff] %v1053
                  %v1055 = vld [vmem:[%s1009 + $0x130] sm:$0xff]
                  %1056 = vst [vmem:[%s1010 + $0xb0] sm:$0xff] %v1055
                  %v1057 = vld [vmem:[%s1009 + $0x138] sm:$0xff]
                  %1058 = vst [vmem:[%s1010 + $0xb8] sm:$0xff] %v1057
                  %v1059 = vld [vmem:[%s1009 + $0x140] sm:$0xff]
                  %1060 = vst [vmem:[%s1010 + $0xc0] sm:$0xff] %v1059
                  %v1061 = vld [vmem:[%s1009 + $0x148] sm:$0xff]
                  %1062 = vst [vmem:[%s1010 + $0xc8] sm:$0xff] %v1061
                  %v1063 = vld [vmem:[%s1009 + $0x150] sm:$0xff]
                  %1064 = vst [vmem:[%s1010 + $0xd0] sm:$0xff] %v1063
                  %v1065 = vld [vmem:[%s1009 + $0x158] sm:$0xff]
                  %1066 = vst [vmem:[%s1010 + $0xd8] sm:$0xff] %v1065
                  %v1067 = vld [vmem:[%s1009 + $0x160] sm:$0xff]
                  %1068 = vst [vmem:[%s1010 + $0xe0] sm:$0xff] %v1067
                  %v1069 = vld [vmem:[%s1009 + $0x168] sm:$0xff]
                  %1070 = vst [vmem:[%s1010 + $0xe8] sm:$0xff] %v1069
                  %v1071 = vld [vmem:[%s1009 + $0x170] sm:$0xff]
                  %1072 = vst [vmem:[%s1010 + $0xf0] sm:$0xff] %v1071
                  %v1073 = vld [vmem:[%s1009 + $0x178] sm:$0xff]
                  %1074 = vst [vmem:[%s1010 + $0xf8] sm:$0xff] %v1073
                  %v1075 = vld [vmem:[%s1009 + $0x200] sm:$0xff]
                  %1076 = vst [vmem:[%s1010 + $0x100] sm:$0xff] %v1075
                  %v1077 = vld [vmem:[%s1009 + $0x208] sm:$0xff]
                  %1078 = vst [vmem:[%s1010 + $0x108] sm:$0xff] %v1077
                  %v1079 = vld [vmem:[%s1009 + $0x210] sm:$0xff]
                  %1080 = vst [vmem:[%s1010 + $0x110] sm:$0xff] %v1079
                  %v1081 = vld [vmem:[%s1009 + $0x218] sm:$0xff]
                  %1082 = vst [vmem:[%s1010 + $0x118] sm:$0xff] %v1081
                  %v1083 = vld [vmem:[%s1009 + $0x220] sm:$0xff]
                  %1084 = vst [vmem:[%s1010 + $0x120] sm:$0xff] %v1083
                  %v1085 = vld [vmem:[%s1009 + $0x228] sm:$0xff]
                  %1086 = vst [vmem:[%s1010 + $0x128] sm:$0xff] %v1085
                  %v1087 = vld [vmem:[%s1009 + $0x230] sm:$0xff]
                  %1088 = vst [vmem:[%s1010 + $0x130] sm:$0xff] %v1087
                  %v1089 = vld [vmem:[%s1009 + $0x238] sm:$0xff]
                  %1090 = vst [vmem:[%s1010 + $0x138] sm:$0xff] %v1089
                  %v1091 = vld [vmem:[%s1009 + $0x240] sm:$0xff]
                  %1092 = vst [vmem:[%s1010 + $0x140] sm:$0xff] %v1091
                  %v1093 = vld [vmem:[%s1009 + $0x248] sm:$0xff]
                  %1094 = vst [vmem:[%s1010 + $0x148] sm:$0xff] %v1093
                  %v1095 = vld [vmem:[%s1009 + $0x250] sm:$0xff]
                  %1096 = vst [vmem:[%s1010 + $0x150] sm:$0xff] %v1095
                  %v1097 = vld [vmem:[%s1009 + $0x258] sm:$0xff]
                  %1098 = vst [vmem:[%s1010 + $0x158] sm:$0xff] %v1097
                  %v1099 = vld [vmem:[%s1009 + $0x260] sm:$0xff]
                  %1100 = vst [vmem:[%s1010 + $0x160] sm:$0xff] %v1099
                  %v1101 = vld [vmem:[%s1009 + $0x268] sm:$0xff]
                  %1102 = vst [vmem:[%s1010 + $0x168] sm:$0xff] %v1101
                  %v1103 = vld [vmem:[%s1009 + $0x270] sm:$0xff]
                  %1104 = vst [vmem:[%s1010 + $0x170] sm:$0xff] %v1103
                  %v1105 = vld [vmem:[%s1009 + $0x278] sm:$0xff]
                  %1106 = vst [vmem:[%s1010 + $0x178] sm:$0xff] %v1105
                  %v1107 = vld [vmem:[%s1009 + $0x300] sm:$0xff]
                  %1108 = vst [vmem:[%s1010 + $0x180] sm:$0xff] %v1107
                  %v1109 = vld [vmem:[%s1009 + $0x308] sm:$0xff]
                  %1110 = vst [vmem:[%s1010 + $0x188] sm:$0xff] %v1109
                  %v1111 = vld [vmem:[%s1009 + $0x310] sm:$0xff]
                  %1112 = vst [vmem:[%s1010 + $0x190] sm:$0xff] %v1111
                  %v1113 = vld [vmem:[%s1009 + $0x318] sm:$0xff]
                  %1114 = vst [vmem:[%s1010 + $0x198] sm:$0xff] %v1113
                  %v1115 = vld [vmem:[%s1009 + $0x320] sm:$0xff]
                  %1116 = vst [vmem:[%s1010 + $0x1a0] sm:$0xff] %v1115
                  %v1117 = vld [vmem:[%s1009 + $0x328] sm:$0xff]
                  %1118 = vst [vmem:[%s1010 + $0x1a8] sm:$0xff] %v1117
                  %v1119 = vld [vmem:[%s1009 + $0x330] sm:$0xff]
                  %1120 = vst [vmem:[%s1010 + $0x1b0] sm:$0xff] %v1119
                  %v1121 = vld [vmem:[%s1009 + $0x338] sm:$0xff]
                  %1122 = vst [vmem:[%s1010 + $0x1b8] sm:$0xff] %v1121
                  %v1123 = vld [vmem:[%s1009 + $0x340] sm:$0xff]
                  %1124 = vst [vmem:[%s1010 + $0x1c0] sm:$0xff] %v1123
                  %v1125 = vld [vmem:[%s1009 + $0x348] sm:$0xff]
                  %1126 = vst [vmem:[%s1010 + $0x1c8] sm:$0xff] %v1125
                  %v1127 = vld [vmem:[%s1009 + $0x350] sm:$0xff]
                  %1128 = vst [vmem:[%s1010 + $0x1d0] sm:$0xff] %v1127
                  %v1129 = vld [vmem:[%s1009 + $0x358] sm:$0xff]
                  %1130 = vst [vmem:[%s1010 + $0x1d8] sm:$0xff] %v1129
                  %v1131 = vld [vmem:[%s1009 + $0x360] sm:$0xff]
                  %1132 = vst [vmem:[%s1010 + $0x1e0] sm:$0xff] %v1131
                  %v1133 = vld [vmem:[%s1009 + $0x368] sm:$0xff]
                  %1134 = vst [vmem:[%s1010 + $0x1e8] sm:$0xff] %v1133
                  %v1135 = vld [vmem:[%s1009 + $0x370] sm:$0xff]
                  %1136 = vst [vmem:[%s1010 + $0x1f0] sm:$0xff] %v1135
                  %v1137 = vld [vmem:[%s1009 + $0x378] sm:$0xff]
                  %1138 = vst [vmem:[%s1010 + $0x1f8] sm:$0xff] %v1137
                $region136: #{tpu_custom_call.1} parent=130 // loop_footer
                  %s1008 = sadd.s32 1, %s1004
                $region137: #{tpu_custom_call.1} parent=130 // loop_footer_branch
                  %1003 = sbr.rel target = $region133
                $region138: #{tpu_custom_call.1} parent=130 // loop_exit
                  _
              $region131: #{tpu_custom_call.1} parent=115 // pred_fallthru
                _
              // Predicated region
              $region139: #{tpu_custom_call.1} parent=115 // pred_check
                _
              $region140: #{tpu_custom_call.1} parent=115 // pred_check_branch
                %1140 = sbr.rel target = $region142
              $region141: #{tpu_custom_call.1} parent=115 // pred_region
                _
              $region142: #{tpu_custom_call.1} parent=115 // pred_fallthru
                _
            $region116: #{tpu_custom_call.1} parent=111 // pred_fallthru
              _
            // Predicated region
            $region117: #{tpu_custom_call.1} parent=111 // pred_check
              _
            $region118: #{tpu_custom_call.1} parent=111 // pred_check_branch
              %862 = sbr.rel target = $region120
            $region119: #{tpu_custom_call.1} parent=111 // pred_region
              %s864 = ssub.s32 256, 1
              loop: start=0, step=1, limit=1
              $region121: #{tpu_custom_call.1} parent=119 // loop_pre_header
                _
              $region122: #{tpu_custom_call.1} parent=119 // loop_header
                %s866 = sphi 0, %s870
                %p867 = scmp.ge.s32.totalorder %s866, 1
                %s871 = sphi %s856, %s856
                %s872 = sphi %s851, %s851
              $region123: #{tpu_custom_call.1} parent=119 // loop_header_branch
                %869 = sbr.rel (%p867) target = $region127
              $region124: #{tpu_custom_call.1} parent=119 // loop_body
                %v873 = vld [vmem:[%s871] sm:%s864]
                %874 = vst [vmem:[%s872] sm:%s864] %v873
                %v875 = vld [vmem:[%s871 + $0x8] sm:%s864]
                %876 = vst [vmem:[%s872 + $0x8] sm:%s864] %v875
                %v877 = vld [vmem:[%s871 + $0x10] sm:%s864]
                %878 = vst [vmem:[%s872 + $0x10] sm:%s864] %v877
                %v879 = vld [vmem:[%s871 + $0x18] sm:%s864]
                %880 = vst [vmem:[%s872 + $0x18] sm:%s864] %v879
                %v881 = vld [vmem:[%s871 + $0x20] sm:%s864]
                %882 = vst [vmem:[%s872 + $0x20] sm:%s864] %v881
                %v883 = vld [vmem:[%s871 + $0x28] sm:%s864]
                %884 = vst [vmem:[%s872 + $0x28] sm:%s864] %v883
                %v885 = vld [vmem:[%s871 + $0x30] sm:%s864]
                %886 = vst [vmem:[%s872 + $0x30] sm:%s864] %v885
                %v887 = vld [vmem:[%s871 + $0x38] sm:%s864]
                %888 = vst [vmem:[%s872 + $0x38] sm:%s864] %v887
                %v889 = vld [vmem:[%s871 + $0x40] sm:%s864]
                %890 = vst [vmem:[%s872 + $0x40] sm:%s864] %v889
                %v891 = vld [vmem:[%s871 + $0x48] sm:%s864]
                %892 = vst [vmem:[%s872 + $0x48] sm:%s864] %v891
                %v893 = vld [vmem:[%s871 + $0x50] sm:%s864]
                %894 = vst [vmem:[%s872 + $0x50] sm:%s864] %v893
                %v895 = vld [vmem:[%s871 + $0x58] sm:%s864]
                %896 = vst [vmem:[%s872 + $0x58] sm:%s864] %v895
                %v897 = vld [vmem:[%s871 + $0x60] sm:%s864]
                %898 = vst [vmem:[%s872 + $0x60] sm:%s864] %v897
                %v899 = vld [vmem:[%s871 + $0x68] sm:%s864]
                %900 = vst [vmem:[%s872 + $0x68] sm:%s864] %v899
                %v901 = vld [vmem:[%s871 + $0x70] sm:%s864]
                %902 = vst [vmem:[%s872 + $0x70] sm:%s864] %v901
                %v903 = vld [vmem:[%s871 + $0x78] sm:%s864]
                %904 = vst [vmem:[%s872 + $0x78] sm:%s864] %v903
                %v905 = vld [vmem:[%s871 + $0x100] sm:%s864]
                %906 = vst [vmem:[%s872 + $0x80] sm:%s864] %v905
                %v907 = vld [vmem:[%s871 + $0x108] sm:%s864]
                %908 = vst [vmem:[%s872 + $0x88] sm:%s864] %v907
                %v909 = vld [vmem:[%s871 + $0x110] sm:%s864]
                %910 = vst [vmem:[%s872 + $0x90] sm:%s864] %v909
                %v911 = vld [vmem:[%s871 + $0x118] sm:%s864]
                %912 = vst [vmem:[%s872 + $0x98] sm:%s864] %v911
                %v913 = vld [vmem:[%s871 + $0x120] sm:%s864]
                %914 = vst [vmem:[%s872 + $0xa0] sm:%s864] %v913
                %v915 = vld [vmem:[%s871 + $0x128] sm:%s864]
                %916 = vst [vmem:[%s872 + $0xa8] sm:%s864] %v915
                %v917 = vld [vmem:[%s871 + $0x130] sm:%s864]
                %918 = vst [vmem:[%s872 + $0xb0] sm:%s864] %v917
                %v919 = vld [vmem:[%s871 + $0x138] sm:%s864]
                %920 = vst [vmem:[%s872 + $0xb8] sm:%s864] %v919
                %v921 = vld [vmem:[%s871 + $0x140] sm:%s864]
                %922 = vst [vmem:[%s872 + $0xc0] sm:%s864] %v921
                %v923 = vld [vmem:[%s871 + $0x148] sm:%s864]
                %924 = vst [vmem:[%s872 + $0xc8] sm:%s864] %v923
                %v925 = vld [vmem:[%s871 + $0x150] sm:%s864]
                %926 = vst [vmem:[%s872 + $0xd0] sm:%s864] %v925
                %v927 = vld [vmem:[%s871 + $0x158] sm:%s864]
                %928 = vst [vmem:[%s872 + $0xd8] sm:%s864] %v927
                %v929 = vld [vmem:[%s871 + $0x160] sm:%s864]
                %930 = vst [vmem:[%s872 + $0xe0] sm:%s864] %v929
                %v931 = vld [vmem:[%s871 + $0x168] sm:%s864]
                %932 = vst [vmem:[%s872 + $0xe8] sm:%s864] %v931
                %v933 = vld [vmem:[%s871 + $0x170] sm:%s864]
                %934 = vst [vmem:[%s872 + $0xf0] sm:%s864] %v933
                %v935 = vld [vmem:[%s871 + $0x178] sm:%s864]
                %936 = vst [vmem:[%s872 + $0xf8] sm:%s864] %v935
                %v937 = vld [vmem:[%s871 + $0x200] sm:%s864]
                %938 = vst [vmem:[%s872 + $0x100] sm:%s864] %v937
                %v939 = vld [vmem:[%s871 + $0x208] sm:%s864]
                %940 = vst [vmem:[%s872 + $0x108] sm:%s864] %v939
                %v941 = vld [vmem:[%s871 + $0x210] sm:%s864]
                %942 = vst [vmem:[%s872 + $0x110] sm:%s864] %v941
                %v943 = vld [vmem:[%s871 + $0x218] sm:%s864]
                %944 = vst [vmem:[%s872 + $0x118] sm:%s864] %v943
                %v945 = vld [vmem:[%s871 + $0x220] sm:%s864]
                %946 = vst [vmem:[%s872 + $0x120] sm:%s864] %v945
                %v947 = vld [vmem:[%s871 + $0x228] sm:%s864]
                %948 = vst [vmem:[%s872 + $0x128] sm:%s864] %v947
                %v949 = vld [vmem:[%s871 + $0x230] sm:%s864]
                %950 = vst [vmem:[%s872 + $0x130] sm:%s864] %v949
                %v951 = vld [vmem:[%s871 + $0x238] sm:%s864]
                %952 = vst [vmem:[%s872 + $0x138] sm:%s864] %v951
                %v953 = vld [vmem:[%s871 + $0x240] sm:%s864]
                %954 = vst [vmem:[%s872 + $0x140] sm:%s864] %v953
                %v955 = vld [vmem:[%s871 + $0x248] sm:%s864]
                %956 = vst [vmem:[%s872 + $0x148] sm:%s864] %v955
                %v957 = vld [vmem:[%s871 + $0x250] sm:%s864]
                %958 = vst [vmem:[%s872 + $0x150] sm:%s864] %v957
                %v959 = vld [vmem:[%s871 + $0x258] sm:%s864]
                %960 = vst [vmem:[%s872 + $0x158] sm:%s864] %v959
                %v961 = vld [vmem:[%s871 + $0x260] sm:%s864]
                %962 = vst [vmem:[%s872 + $0x160] sm:%s864] %v961
                %v963 = vld [vmem:[%s871 + $0x268] sm:%s864]
                %964 = vst [vmem:[%s872 + $0x168] sm:%s864] %v963
                %v965 = vld [vmem:[%s871 + $0x270] sm:%s864]
                %966 = vst [vmem:[%s872 + $0x170] sm:%s864] %v965
                %v967 = vld [vmem:[%s871 + $0x278] sm:%s864]
                %968 = vst [vmem:[%s872 + $0x178] sm:%s864] %v967
                %v969 = vld [vmem:[%s871 + $0x300] sm:%s864]
                %970 = vst [vmem:[%s872 + $0x180] sm:%s864] %v969
                %v971 = vld [vmem:[%s871 + $0x308] sm:%s864]
                %972 = vst [vmem:[%s872 + $0x188] sm:%s864] %v971
                %v973 = vld [vmem:[%s871 + $0x310] sm:%s864]
                %974 = vst [vmem:[%s872 + $0x190] sm:%s864] %v973
                %v975 = vld [vmem:[%s871 + $0x318] sm:%s864]
                %976 = vst [vmem:[%s872 + $0x198] sm:%s864] %v975
                %v977 = vld [vmem:[%s871 + $0x320] sm:%s864]
                %978 = vst [vmem:[%s872 + $0x1a0] sm:%s864] %v977
                %v979 = vld [vmem:[%s871 + $0x328] sm:%s864]
                %980 = vst [vmem:[%s872 + $0x1a8] sm:%s864] %v979
                %v981 = vld [vmem:[%s871 + $0x330] sm:%s864]
                %982 = vst [vmem:[%s872 + $0x1b0] sm:%s864] %v981
                %v983 = vld [vmem:[%s871 + $0x338] sm:%s864]
                %984 = vst [vmem:[%s872 + $0x1b8] sm:%s864] %v983
                %v985 = vld [vmem:[%s871 + $0x340] sm:%s864]
                %986 = vst [vmem:[%s872 + $0x1c0] sm:%s864] %v985
                %v987 = vld [vmem:[%s871 + $0x348] sm:%s864]
                %988 = vst [vmem:[%s872 + $0x1c8] sm:%s864] %v987
                %v989 = vld [vmem:[%s871 + $0x350] sm:%s864]
                %990 = vst [vmem:[%s872 + $0x1d0] sm:%s864] %v989
                %v991 = vld [vmem:[%s871 + $0x358] sm:%s864]
                %992 = vst [vmem:[%s872 + $0x1d8] sm:%s864] %v991
                %v993 = vld [vmem:[%s871 + $0x360] sm:%s864]
                %994 = vst [vmem:[%s872 + $0x1e0] sm:%s864] %v993
                %v995 = vld [vmem:[%s871 + $0x368] sm:%s864]
                %996 = vst [vmem:[%s872 + $0x1e8] sm:%s864] %v995
                %v997 = vld [vmem:[%s871 + $0x370] sm:%s864]
                %998 = vst [vmem:[%s872 + $0x1f0] sm:%s864] %v997
                %v999 = vld [vmem:[%s871 + $0x378] sm:%s864]
                %1000 = vst [vmem:[%s872 + $0x1f8] sm:%s864] %v999
              $region125: #{tpu_custom_call.1} parent=119 // loop_footer
                %s870 = sadd.s32 1, %s866
              $region126: #{tpu_custom_call.1} parent=119 // loop_footer_branch
                %865 = sbr.rel target = $region122
              $region127: #{tpu_custom_call.1} parent=119 // loop_exit
                _
            $region120: #{tpu_custom_call.1} parent=111 // pred_fallthru
              _
          $region112: #{tpu_custom_call.1} parent=107 // pred_fallthru
            _
          %1141 = vnop
        $region108: #{tpu_custom_call.1} parent=23 // pred_fallthru
          _
      $region24: #{tpu_custom_call.1} parent=5 // pred_fallthru
        _
      %p1142 = scmp.le.s32.totalorder 1, %s12
      %p1143 = scmp.lt.s32.totalorder %s12, 9
      %p1144 = pnand %p1142, %p1143
      %p1145 = pneg %p1144
      // Predicated region
      $region143: #{tpu_custom_call.1} parent=5 // pred_check
        _
      $region144: #{tpu_custom_call.1} parent=5 // pred_check_branch
        %1147 = sbr.rel (%p1144) target = $region146
      $region145: #{tpu_custom_call.1} parent=5 // pred_region
        %s1148 = ssub.s32 %s12, 1
        %s1149 = sand.u32 %s74, 1
        %s1150 = sand.u32 %s74, 1
        %s1151 = smul.addr %s1150, 512
        %s1152 = scalar_lea.vmem [#allocation3], %s1151
        // Predicated region
        $region147: #{tpu_custom_call.1} parent=145 // pred_check
          %p1153 = pneg %p87
        $region148: #{tpu_custom_call.1} parent=145 // pred_check_branch
          %1155 = sbr.rel (%p1153) target = $region150
        $region149: #{tpu_custom_call.1} parent=145 // pred_region
          _
        $region150: #{tpu_custom_call.1} parent=145 // pred_fallthru
          _
        %s1156 = sand.u32 %s102, 1
        %s1157 = sand.u32 %s102, 1
        %s1158 = smul.addr %s1157, 512
        %s1159 = scalar_lea.vmem [#allocation4], %s1158
        // Predicated region
        $region151: #{tpu_custom_call.1} parent=145 // pred_check
          %p1160 = pneg %p115
        $region152: #{tpu_custom_call.1} parent=145 // pred_check_branch
          %1162 = sbr.rel (%p1160) target = $region154
        $region153: #{tpu_custom_call.1} parent=145 // pred_region
          _
        $region154: #{tpu_custom_call.1} parent=145 // pred_fallthru
          _
        %s1163 = sand.u32 %s130, 1
        %s1164 = sand.u32 %s130, 1
        %s1165 = smul.addr %s1164, 512
        %s1166 = scalar_lea.vmem [#allocation5], %s1165
        // Predicated region
        $region155: #{tpu_custom_call.1} parent=145 // pred_check
          %p1167 = pneg %p143
        $region156: #{tpu_custom_call.1} parent=145 // pred_check_branch
          %1169 = sbr.rel (%p1167) target = $region158
        $region157: #{tpu_custom_call.1} parent=145 // pred_region
          _
        $region158: #{tpu_custom_call.1} parent=145 // pred_fallthru
          _
        %s1170 = smul.u32 16, %s23
        %p1171 = scmp.lt.s32.totalorder %s22, 1
        %s1172 = scalar_select %p1171, %s22, 1
        %p1173 = scmp.lt.s32.totalorder %s1170, 31
        %s1174 = scalar_select %p1173, %s1170, 31
        %s1175 = smul.addr %s1172, 32
        %s1176 = sadd.s32 %s1174, %s1175
        %s1177 = smul.addr %s1176, 8
        %s1178 = scalar_lea.vmem %s0, %s1177
        %p1179 = pneg %p59
        %p1180 = pneg %p56
        %s1181 = sand.u32 %s74, 1
        %s1182 = sand.u32 %s74, 1
        %s1183 = smul.addr %s1182, 512
        %s1184 = scalar_lea.vmem [#allocation3], %s1183
        %p1185 = pneg %p87
        %p1186 = pneg %p84
        %s1187 = sand.u32 %s102, 1
        %s1188 = sand.u32 %s102, 1
        %s1189 = smul.addr %s1188, 512
        %s1190 = scalar_lea.vmem [#allocation4], %s1189
        %p1191 = pneg %p115
        %p1192 = pneg %p112
        %s1193 = sand.u32 %s130, 1
        %s1194 = sand.u32 %s130, 1
        %s1195 = smul.addr %s1194, 512
        %s1196 = scalar_lea.vmem [#allocation5], %s1195
        %p1197 = pneg %p143
        %p1198 = pneg %p140
        %p1199 = pneg %p164
        %p1200 = pneg %p161
        %p1201 = pneg %p185
        %p1202 = pneg %p182
        %p1203 = pneg %p213
        %p1204 = pneg %p210
        %s1205 = smul.u32 16, %s23
        %p1206 = scmp.lt.s32.totalorder %s22, 1
        %s1207 = scalar_select %p1206, %s22, 1
        %p1208 = scmp.lt.s32.totalorder %s1205, 31
        %s1209 = scalar_select %p1208, %s1205, 31
        %s1210 = smul.addr %s1207, 32
        %s1211 = sadd.s32 %s1209, %s1210
        %s1212 = smul.addr %s1211, 8
        %s1213 = scalar_lea.vmem %s6, %s1212
        %s1214 = smul.u32 16, %s23
        %p1215 = scmp.lt.s32.totalorder %s22, 1
        %s1216 = scalar_select %p1215, %s22, 1
        %p1217 = scmp.lt.s32.totalorder %s1214, 31
        %s1218 = scalar_select %p1217, %s1214, 31
        %s1219 = smul.addr %s1216, 32
        %s1220 = sadd.s32 %s1218, %s1219
        %s1221 = smul.addr %s1220, 8
        %s1222 = scalar_lea.vmem %s0, %s1221
        %s1223 = smul.u32 16, %s23
        %s1224 = smul.u32 16, %s23
        %s1225 = smul.u32 16, %s24
        %s1226 = smul.u32 16, %s24
        %s1227 = smul.u32 16, %s23
        %p1228 = scmp.lt.s32.totalorder %s22, 1
        %s1229 = scalar_select %p1228, %s22, 1
        %p1230 = scmp.lt.s32.totalorder %s1227, 31
        %s1231 = scalar_select %p1230, %s1227, 31
        %s1232 = smul.addr %s1229, 32
        %s1233 = sadd.s32 %s1231, %s1232
        %s1234 = smul.addr %s1233, 8
        %s1235 = scalar_lea.vmem %s6, %s1234
        %s1236 = smul.u32 16, %s23
        %p1237 = scmp.eq.s32.totalorder %s24, 0
        // Predicated region
        $region159: #{tpu_custom_call.1} parent=145 // pred_check
          %p1238 = pneg %p1237
        $region160: #{tpu_custom_call.1} parent=145 // pred_check_branch
          %1240 = sbr.rel (%p1238) target = $region162
        $region161: #{tpu_custom_call.1} parent=145 // pred_region
          %vm1241 = vcmask 130048
          %1242 = vst.msk [vmem:[#allocation2] sm:$0xff] %vm1241, 0.0
          %1243 = vst.msk [vmem:[#allocation2 + $0x8] sm:$0xff] %vm1241, 0.0
          %1244 = vst.msk [vmem:[#allocation2 + $0x10] sm:$0xff] %vm1241, 0.0
          %1245 = vst.msk [vmem:[#allocation2 + $0x18] sm:$0xff] %vm1241, 0.0
          %1246 = vst.msk [vmem:[#allocation2 + $0x20] sm:$0xff] %vm1241, 0.0
          %1247 = vst.msk [vmem:[#allocation2 + $0x28] sm:$0xff] %vm1241, 0.0
          %1248 = vst.msk [vmem:[#allocation2 + $0x30] sm:$0xff] %vm1241, 0.0
          %1249 = vst.msk [vmem:[#allocation2 + $0x38] sm:$0xff] %vm1241, 0.0
          %1250 = vst.msk [vmem:[#allocation2 + $0x40] sm:$0xff] %vm1241, 0.0
          %1251 = vst.msk [vmem:[#allocation2 + $0x48] sm:$0xff] %vm1241, 0.0
          %1252 = vst.msk [vmem:[#allocation2 + $0x50] sm:$0xff] %vm1241, 0.0
          %1253 = vst.msk [vmem:[#allocation2 + $0x58] sm:$0xff] %vm1241, 0.0
          %1254 = vst.msk [vmem:[#allocation2 + $0x60] sm:$0xff] %vm1241, 0.0
          %1255 = vst.msk [vmem:[#allocation2 + $0x68] sm:$0xff] %vm1241, 0.0
          %1256 = vst.msk [vmem:[#allocation2 + $0x70] sm:$0xff] %vm1241, 0.0
          %1257 = vst.msk [vmem:[#allocation2 + $0x78] sm:$0xff] %vm1241, 0.0
          %1258 = vst.msk [vmem:[#allocation2 + $0x80] sm:$0xff] %vm1241, 0.0
          %1259 = vst.msk [vmem:[#allocation2 + $0x88] sm:$0xff] %vm1241, 0.0
          %1260 = vst.msk [vmem:[#allocation2 + $0x90] sm:$0xff] %vm1241, 0.0
          %1261 = vst.msk [vmem:[#allocation2 + $0x98] sm:$0xff] %vm1241, 0.0
          %1262 = vst.msk [vmem:[#allocation2 + $0xa0] sm:$0xff] %vm1241, 0.0
          %1263 = vst.msk [vmem:[#allocation2 + $0xa8] sm:$0xff] %vm1241, 0.0
          %1264 = vst.msk [vmem:[#allocation2 + $0xb0] sm:$0xff] %vm1241, 0.0
          %1265 = vst.msk [vmem:[#allocation2 + $0xb8] sm:$0xff] %vm1241, 0.0
          %1266 = vst.msk [vmem:[#allocation2 + $0xc0] sm:$0xff] %vm1241, 0.0
          %1267 = vst.msk [vmem:[#allocation2 + $0xc8] sm:$0xff] %vm1241, 0.0
          %1268 = vst.msk [vmem:[#allocation2 + $0xd0] sm:$0xff] %vm1241, 0.0
          %1269 = vst.msk [vmem:[#allocation2 + $0xd8] sm:$0xff] %vm1241, 0.0
          %1270 = vst.msk [vmem:[#allocation2 + $0xe0] sm:$0xff] %vm1241, 0.0
          %1271 = vst.msk [vmem:[#allocation2 + $0xe8] sm:$0xff] %vm1241, 0.0
          %1272 = vst.msk [vmem:[#allocation2 + $0xf0] sm:$0xff] %vm1241, 0.0
          %1273 = vst.msk [vmem:[#allocation2 + $0xf8] sm:$0xff] %vm1241, 0.0
          %1274 = vst.msk [vmem:[#allocation2 + $0x100] sm:$0xff] %vm1241, 0.0
          %1275 = vst.msk [vmem:[#allocation2 + $0x108] sm:$0xff] %vm1241, 0.0
          %1276 = vst.msk [vmem:[#allocation2 + $0x110] sm:$0xff] %vm1241, 0.0
          %1277 = vst.msk [vmem:[#allocation2 + $0x118] sm:$0xff] %vm1241, 0.0
          %1278 = vst.msk [vmem:[#allocation2 + $0x120] sm:$0xff] %vm1241, 0.0
          %1279 = vst.msk [vmem:[#allocation2 + $0x128] sm:$0xff] %vm1241, 0.0
          %1280 = vst.msk [vmem:[#allocation2 + $0x130] sm:$0xff] %vm1241, 0.0
          %1281 = vst.msk [vmem:[#allocation2 + $0x138] sm:$0xff] %vm1241, 0.0
          %1282 = vst.msk [vmem:[#allocation2 + $0x140] sm:$0xff] %vm1241, 0.0
          %1283 = vst.msk [vmem:[#allocation2 + $0x148] sm:$0xff] %vm1241, 0.0
          %1284 = vst.msk [vmem:[#allocation2 + $0x150] sm:$0xff] %vm1241, 0.0
          %1285 = vst.msk [vmem:[#allocation2 + $0x158] sm:$0xff] %vm1241, 0.0
          %1286 = vst.msk [vmem:[#allocation2 + $0x160] sm:$0xff] %vm1241, 0.0
          %1287 = vst.msk [vmem:[#allocation2 + $0x168] sm:$0xff] %vm1241, 0.0
          %1288 = vst.msk [vmem:[#allocation2 + $0x170] sm:$0xff] %vm1241, 0.0
          %1289 = vst.msk [vmem:[#allocation2 + $0x178] sm:$0xff] %vm1241, 0.0
          %1290 = vst.msk [vmem:[#allocation2 + $0x180] sm:$0xff] %vm1241, 0.0
          %1291 = vst.msk [vmem:[#allocation2 + $0x188] sm:$0xff] %vm1241, 0.0
          %1292 = vst.msk [vmem:[#allocation2 + $0x190] sm:$0xff] %vm1241, 0.0
          %1293 = vst.msk [vmem:[#allocation2 + $0x198] sm:$0xff] %vm1241, 0.0
          %1294 = vst.msk [vmem:[#allocation2 + $0x1a0] sm:$0xff] %vm1241, 0.0
          %1295 = vst.msk [vmem:[#allocation2 + $0x1a8] sm:$0xff] %vm1241, 0.0
          %1296 = vst.msk [vmem:[#allocation2 + $0x1b0] sm:$0xff] %vm1241, 0.0
          %1297 = vst.msk [vmem:[#allocation2 + $0x1b8] sm:$0xff] %vm1241, 0.0
          %1298 = vst.msk [vmem:[#allocation2 + $0x1c0] sm:$0xff] %vm1241, 0.0
          %1299 = vst.msk [vmem:[#allocation2 + $0x1c8] sm:$0xff] %vm1241, 0.0
          %1300 = vst.msk [vmem:[#allocation2 + $0x1d0] sm:$0xff] %vm1241, 0.0
          %1301 = vst.msk [vmem:[#allocation2 + $0x1d8] sm:$0xff] %vm1241, 0.0
          %1302 = vst.msk [vmem:[#allocation2 + $0x1e0] sm:$0xff] %vm1241, 0.0
          %1303 = vst.msk [vmem:[#allocation2 + $0x1e8] sm:$0xff] %vm1241, 0.0
          %1304 = vst.msk [vmem:[#allocation2 + $0x1f0] sm:$0xff] %vm1241, 0.0
          %1305 = vst.msk [vmem:[#allocation2 + $0x1f8] sm:$0xff] %vm1241, 0.0
        $region162: #{tpu_custom_call.1} parent=145 // pred_fallthru
          _
        %v1306 = vld [vmem:[%s1152] sm:$0xff]
        %v1307 = vld [vmem:[%s1152 + $0x8] sm:$0xff]
        %v1308 = vld [vmem:[%s1152 + $0x10] sm:$0xff]
        %v1309 = vld [vmem:[%s1152 + $0x18] sm:$0xff]
        %v1310 = vld [vmem:[%s1152 + $0x20] sm:$0xff]
        %v1311 = vld [vmem:[%s1152 + $0x28] sm:$0xff]
        %v1312 = vld [vmem:[%s1152 + $0x30] sm:$0xff]
        %v1313 = vld [vmem:[%s1152 + $0x38] sm:$0xff]
        %v1314 = vld [vmem:[%s1152 + $0x40] sm:$0xff]
        %v1315 = vld [vmem:[%s1152 + $0x48] sm:$0xff]
        %v1316 = vld [vmem:[%s1152 + $0x50] sm:$0xff]
        %v1317 = vld [vmem:[%s1152 + $0x58] sm:$0xff]
        %v1318 = vld [vmem:[%s1152 + $0x60] sm:$0xff]
        %v1319 = vld [vmem:[%s1152 + $0x68] sm:$0xff]
        %v1320 = vld [vmem:[%s1152 + $0x70] sm:$0xff]
        %v1321 = vld [vmem:[%s1152 + $0x78] sm:$0xff]
        %v1322 = vld [vmem:[%s1152 + $0x80] sm:$0xff]
        %v1323 = vld [vmem:[%s1152 + $0x88] sm:$0xff]
        %v1324 = vld [vmem:[%s1152 + $0x90] sm:$0xff]
        %v1325 = vld [vmem:[%s1152 + $0x98] sm:$0xff]
        %v1326 = vld [vmem:[%s1152 + $0xa0] sm:$0xff]
        %v1327 = vld [vmem:[%s1152 + $0xa8] sm:$0xff]
        %v1328 = vld [vmem:[%s1152 + $0xb0] sm:$0xff]
        %v1329 = vld [vmem:[%s1152 + $0xb8] sm:$0xff]
        %v1330 = vld [vmem:[%s1152 + $0xc0] sm:$0xff]
        %v1331 = vld [vmem:[%s1152 + $0xc8] sm:$0xff]
        %v1332 = vld [vmem:[%s1152 + $0xd0] sm:$0xff]
        %v1333 = vld [vmem:[%s1152 + $0xd8] sm:$0xff]
        %v1334 = vld [vmem:[%s1152 + $0xe0] sm:$0xff]
        %v1335 = vld [vmem:[%s1152 + $0xe8] sm:$0xff]
        %v1336 = vld [vmem:[%s1152 + $0xf0] sm:$0xff]
        %v1337 = vld [vmem:[%s1152 + $0xf8] sm:$0xff]
        %v1338 = vld [vmem:[%s1152 + $0x100] sm:$0xff]
        %v1339 = vld [vmem:[%s1152 + $0x108] sm:$0xff]
        %v1340 = vld [vmem:[%s1152 + $0x110] sm:$0xff]
        %v1341 = vld [vmem:[%s1152 + $0x118] sm:$0xff]
        %v1342 = vld [vmem:[%s1152 + $0x120] sm:$0xff]
        %v1343 = vld [vmem:[%s1152 + $0x128] sm:$0xff]
        %v1344 = vld [vmem:[%s1152 + $0x130] sm:$0xff]
        %v1345 = vld [vmem:[%s1152 + $0x138] sm:$0xff]
        %v1346 = vld [vmem:[%s1152 + $0x140] sm:$0xff]
        %v1347 = vld [vmem:[%s1152 + $0x148] sm:$0xff]
        %v1348 = vld [vmem:[%s1152 + $0x150] sm:$0xff]
        %v1349 = vld [vmem:[%s1152 + $0x158] sm:$0xff]
        %v1350 = vld [vmem:[%s1152 + $0x160] sm:$0xff]
        %v1351 = vld [vmem:[%s1152 + $0x168] sm:$0xff]
        %v1352 = vld [vmem:[%s1152 + $0x170] sm:$0xff]
        %v1353 = vld [vmem:[%s1152 + $0x178] sm:$0xff]
        %v1354 = vld [vmem:[%s1152 + $0x180] sm:$0xff]
        %v1355 = vld [vmem:[%s1152 + $0x188] sm:$0xff]
        %v1356 = vld [vmem:[%s1152 + $0x190] sm:$0xff]
        %v1357 = vld [vmem:[%s1152 + $0x198] sm:$0xff]
        %v1358 = vld [vmem:[%s1152 + $0x1a0] sm:$0xff]
        %v1359 = vld [vmem:[%s1152 + $0x1a8] sm:$0xff]
        %v1360 = vld [vmem:[%s1152 + $0x1b0] sm:$0xff]
        %v1361 = vld [vmem:[%s1152 + $0x1b8] sm:$0xff]
        %v1362 = vld [vmem:[%s1152 + $0x1c0] sm:$0xff]
        %v1363 = vld [vmem:[%s1152 + $0x1c8] sm:$0xff]
        %v1364 = vld [vmem:[%s1152 + $0x1d0] sm:$0xff]
        %v1365 = vld [vmem:[%s1152 + $0x1d8] sm:$0xff]
        %v1366 = vld [vmem:[%s1152 + $0x1e0] sm:$0xff]
        %v1367 = vld [vmem:[%s1152 + $0x1e8] sm:$0xff]
        %v1368 = vld [vmem:[%s1152 + $0x1f0] sm:$0xff]
        %v1369 = vld [vmem:[%s1152 + $0x1f8] sm:$0xff]
        %v1370 = vld [vmem:[%s1159] sm:$0xff]
        %v1371 = vld [vmem:[%s1159 + $0x8] sm:$0xff]
        %v1372 = vld [vmem:[%s1159 + $0x10] sm:$0xff]
        %v1373 = vld [vmem:[%s1159 + $0x18] sm:$0xff]
        %v1374 = vld [vmem:[%s1159 + $0x20] sm:$0xff]
        %v1375 = vld [vmem:[%s1159 + $0x28] sm:$0xff]
        %v1376 = vld [vmem:[%s1159 + $0x30] sm:$0xff]
        %v1377 = vld [vmem:[%s1159 + $0x38] sm:$0xff]
        %v1378 = vld [vmem:[%s1159 + $0x40] sm:$0xff]
        %v1379 = vld [vmem:[%s1159 + $0x48] sm:$0xff]
        %v1380 = vld [vmem:[%s1159 + $0x50] sm:$0xff]
        %v1381 = vld [vmem:[%s1159 + $0x58] sm:$0xff]
        %v1382 = vld [vmem:[%s1159 + $0x60] sm:$0xff]
        %v1383 = vld [vmem:[%s1159 + $0x68] sm:$0xff]
        %v1384 = vld [vmem:[%s1159 + $0x70] sm:$0xff]
        %v1385 = vld [vmem:[%s1159 + $0x78] sm:$0xff]
        %v1386 = vld [vmem:[%s1159 + $0x80] sm:$0xff]
        %v1387 = vld [vmem:[%s1159 + $0x88] sm:$0xff]
        %v1388 = vld [vmem:[%s1159 + $0x90] sm:$0xff]
        %v1389 = vld [vmem:[%s1159 + $0x98] sm:$0xff]
        %v1390 = vld [vmem:[%s1159 + $0xa0] sm:$0xff]
        %v1391 = vld [vmem:[%s1159 + $0xa8] sm:$0xff]
        %v1392 = vld [vmem:[%s1159 + $0xb0] sm:$0xff]
        %v1393 = vld [vmem:[%s1159 + $0xb8] sm:$0xff]
        %v1394 = vld [vmem:[%s1159 + $0xc0] sm:$0xff]
        %v1395 = vld [vmem:[%s1159 + $0xc8] sm:$0xff]
        %v1396 = vld [vmem:[%s1159 + $0xd0] sm:$0xff]
        %v1397 = vld [vmem:[%s1159 + $0xd8] sm:$0xff]
        %v1398 = vld [vmem:[%s1159 + $0xe0] sm:$0xff]
        %v1399 = vld [vmem:[%s1159 + $0xe8] sm:$0xff]
        %v1400 = vld [vmem:[%s1159 + $0xf0] sm:$0xff]
        %v1401 = vld [vmem:[%s1159 + $0xf8] sm:$0xff]
        %v1402 = vld [vmem:[%s1159 + $0x100] sm:$0xff]
        %v1403 = vld [vmem:[%s1159 + $0x108] sm:$0xff]
        %v1404 = vld [vmem:[%s1159 + $0x110] sm:$0xff]
        %v1405 = vld [vmem:[%s1159 + $0x118] sm:$0xff]
        %v1406 = vld [vmem:[%s1159 + $0x120] sm:$0xff]
        %v1407 = vld [vmem:[%s1159 + $0x128] sm:$0xff]
        %v1408 = vld [vmem:[%s1159 + $0x130] sm:$0xff]
        %v1409 = vld [vmem:[%s1159 + $0x138] sm:$0xff]
        %v1410 = vld [vmem:[%s1159 + $0x140] sm:$0xff]
        %v1411 = vld [vmem:[%s1159 + $0x148] sm:$0xff]
        %v1412 = vld [vmem:[%s1159 + $0x150] sm:$0xff]
        %v1413 = vld [vmem:[%s1159 + $0x158] sm:$0xff]
        %v1414 = vld [vmem:[%s1159 + $0x160] sm:$0xff]
        %v1415 = vld [vmem:[%s1159 + $0x168] sm:$0xff]
        %v1416 = vld [vmem:[%s1159 + $0x170] sm:$0xff]
        %v1417 = vld [vmem:[%s1159 + $0x178] sm:$0xff]
        %v1418 = vld [vmem:[%s1159 + $0x180] sm:$0xff]
        %v1419 = vld [vmem:[%s1159 + $0x188] sm:$0xff]
        %v1420 = vld [vmem:[%s1159 + $0x190] sm:$0xff]
        %v1421 = vld [vmem:[%s1159 + $0x198] sm:$0xff]
        %v1422 = vld [vmem:[%s1159 + $0x1a0] sm:$0xff]
        %v1423 = vld [vmem:[%s1159 + $0x1a8] sm:$0xff]
        %v1424 = vld [vmem:[%s1159 + $0x1b0] sm:$0xff]
        %v1425 = vld [vmem:[%s1159 + $0x1b8] sm:$0xff]
        %v1426 = vld [vmem:[%s1159 + $0x1c0] sm:$0xff]
        %v1427 = vld [vmem:[%s1159 + $0x1c8] sm:$0xff]
        %v1428 = vld [vmem:[%s1159 + $0x1d0] sm:$0xff]
        %v1429 = vld [vmem:[%s1159 + $0x1d8] sm:$0xff]
        %v1430 = vld [vmem:[%s1159 + $0x1e0] sm:$0xff]
        %v1431 = vld [vmem:[%s1159 + $0x1e8] sm:$0xff]
        %v1432 = vld [vmem:[%s1159 + $0x1f0] sm:$0xff]
        %v1433 = vld [vmem:[%s1159 + $0x1f8] sm:$0xff]
        %v1434 = vld [vmem:[%s1166] sm:$0xff]
        %v1435 = vld [vmem:[%s1166 + $0x8] sm:$0xff]
        %v1436 = vld [vmem:[%s1166 + $0x10] sm:$0xff]
        %v1437 = vld [vmem:[%s1166 + $0x18] sm:$0xff]
        %v1438 = vld [vmem:[%s1166 + $0x20] sm:$0xff]
        %v1439 = vld [vmem:[%s1166 + $0x28] sm:$0xff]
        %v1440 = vld [vmem:[%s1166 + $0x30] sm:$0xff]
        %v1441 = vld [vmem:[%s1166 + $0x38] sm:$0xff]
        %v1442 = vld [vmem:[%s1166 + $0x40] sm:$0xff]
        %v1443 = vld [vmem:[%s1166 + $0x48] sm:$0xff]
        %v1444 = vld [vmem:[%s1166 + $0x50] sm:$0xff]
        %v1445 = vld [vmem:[%s1166 + $0x58] sm:$0xff]
        %v1446 = vld [vmem:[%s1166 + $0x60] sm:$0xff]
        %v1447 = vld [vmem:[%s1166 + $0x68] sm:$0xff]
        %v1448 = vld [vmem:[%s1166 + $0x70] sm:$0xff]
        %v1449 = vld [vmem:[%s1166 + $0x78] sm:$0xff]
        %v1450 = vld [vmem:[%s1166 + $0x80] sm:$0xff]
        %v1451 = vld [vmem:[%s1166 + $0x88] sm:$0xff]
        %v1452 = vld [vmem:[%s1166 + $0x90] sm:$0xff]
        %v1453 = vld [vmem:[%s1166 + $0x98] sm:$0xff]
        %v1454 = vld [vmem:[%s1166 + $0xa0] sm:$0xff]
        %v1455 = vld [vmem:[%s1166 + $0xa8] sm:$0xff]
        %v1456 = vld [vmem:[%s1166 + $0xb0] sm:$0xff]
        %v1457 = vld [vmem:[%s1166 + $0xb8] sm:$0xff]
        %v1458 = vld [vmem:[%s1166 + $0xc0] sm:$0xff]
        %v1459 = vld [vmem:[%s1166 + $0xc8] sm:$0xff]
        %v1460 = vld [vmem:[%s1166 + $0xd0] sm:$0xff]
        %v1461 = vld [vmem:[%s1166 + $0xd8] sm:$0xff]
        %v1462 = vld [vmem:[%s1166 + $0xe0] sm:$0xff]
        %v1463 = vld [vmem:[%s1166 + $0xe8] sm:$0xff]
        %v1464 = vld [vmem:[%s1166 + $0xf0] sm:$0xff]
        %v1465 = vld [vmem:[%s1166 + $0xf8] sm:$0xff]
        %v1466 = vld [vmem:[%s1166 + $0x100] sm:$0xff]
        %v1467 = vld [vmem:[%s1166 + $0x108] sm:$0xff]
        %v1468 = vld [vmem:[%s1166 + $0x110] sm:$0xff]
        %v1469 = vld [vmem:[%s1166 + $0x118] sm:$0xff]
        %v1470 = vld [vmem:[%s1166 + $0x120] sm:$0xff]
        %v1471 = vld [vmem:[%s1166 + $0x128] sm:$0xff]
        %v1472 = vld [vmem:[%s1166 + $0x130] sm:$0xff]
        %v1473 = vld [vmem:[%s1166 + $0x138] sm:$0xff]
        %v1474 = vld [vmem:[%s1166 + $0x140] sm:$0xff]
        %v1475 = vld [vmem:[%s1166 + $0x148] sm:$0xff]
        %v1476 = vld [vmem:[%s1166 + $0x150] sm:$0xff]
        %v1477 = vld [vmem:[%s1166 + $0x158] sm:$0xff]
        %v1478 = vld [vmem:[%s1166 + $0x160] sm:$0xff]
        %v1479 = vld [vmem:[%s1166 + $0x168] sm:$0xff]
        %v1480 = vld [vmem:[%s1166 + $0x170] sm:$0xff]
        %v1481 = vld [vmem:[%s1166 + $0x178] sm:$0xff]
        %v1482 = vld [vmem:[%s1166 + $0x180] sm:$0xff]
        %v1483 = vld [vmem:[%s1166 + $0x188] sm:$0xff]
        %v1484 = vld [vmem:[%s1166 + $0x190] sm:$0xff]
        %v1485 = vld [vmem:[%s1166 + $0x198] sm:$0xff]
        %v1486 = vld [vmem:[%s1166 + $0x1a0] sm:$0xff]
        %v1487 = vld [vmem:[%s1166 + $0x1a8] sm:$0xff]
        %v1488 = vld [vmem:[%s1166 + $0x1b0] sm:$0xff]
        %v1489 = vld [vmem:[%s1166 + $0x1b8] sm:$0xff]
        %v1490 = vld [vmem:[%s1166 + $0x1c0] sm:$0xff]
        %v1491 = vld [vmem:[%s1166 + $0x1c8] sm:$0xff]
        %v1492 = vld [vmem:[%s1166 + $0x1d0] sm:$0xff]
        %v1493 = vld [vmem:[%s1166 + $0x1d8] sm:$0xff]
        %v1494 = vld [vmem:[%s1166 + $0x1e0] sm:$0xff]
        %v1495 = vld [vmem:[%s1166 + $0x1e8] sm:$0xff]
        %v1496 = vld [vmem:[%s1166 + $0x1f0] sm:$0xff]
        %v1497 = vld [vmem:[%s1166 + $0x1f8] sm:$0xff]
        %vm1498 = vcmask 130048
        %v1500 = vsel %vm1498, %v1306, 0
        %v1503 = vsel %vm1498, %v1307, 0
        %v1506 = vsel %vm1498, %v1308, 0
        %v1509 = vsel %vm1498, %v1309, 0
        %v1512 = vsel %vm1498, %v1310, 0
        %v1515 = vsel %vm1498, %v1311, 0
        %v1518 = vsel %vm1498, %v1312, 0
        %v1521 = vsel %vm1498, %v1313, 0
        %v1524 = vsel %vm1498, %v1314, 0
        %v1527 = vsel %vm1498, %v1315, 0
        %v1530 = vsel %vm1498, %v1316, 0
        %v1533 = vsel %vm1498, %v1317, 0
        %v1536 = vsel %vm1498, %v1318, 0
        %v1539 = vsel %vm1498, %v1319, 0
        %v1542 = vsel %vm1498, %v1320, 0
        %v1545 = vsel %vm1498, %v1321, 0
        %v1548 = vsel %vm1498, %v1370, 0
        %v1551 = vsel %vm1498, %v1371, 0
        %v1554 = vsel %vm1498, %v1372, 0
        %v1557 = vsel %vm1498, %v1373, 0
        %v1560 = vsel %vm1498, %v1374, 0
        %v1563 = vsel %vm1498, %v1375, 0
        %v1566 = vsel %vm1498, %v1376, 0
        %v1569 = vsel %vm1498, %v1377, 0
        %v1572 = vsel %vm1498, %v1378, 0
        %v1575 = vsel %vm1498, %v1379, 0
        %v1578 = vsel %vm1498, %v1380, 0
        %v1581 = vsel %vm1498, %v1381, 0
        %v1584 = vsel %vm1498, %v1382, 0
        %v1587 = vsel %vm1498, %v1383, 0
        %v1590 = vsel %vm1498, %v1384, 0
        %v1593 = vsel %vm1498, %v1385, 0
        %1595 = vmatprep.subr.mxu0 0.0
        %1596 = vmatpush1.xpose.msra.mxu0 %v1593
        %1597 = vmatprep.subr.mxu0 0.0
        %1598 = vmatpush1.xpose.msra.mxu0 %v1590
        %1599 = vmatprep.subr.mxu0 0.0
        %1600 = vmatpush1.xpose.msra.mxu0 %v1587
        %1601 = vmatprep.subr.mxu0 0.0
        %1602 = vmatpush1.xpose.msra.mxu0 %v1584
        %1603 = vmatprep.subr.mxu0 0.0
        %1604 = vmatpush1.xpose.msra.mxu0 %v1581
        %1605 = vmatprep.subr.mxu0 0.0
        %1606 = vmatpush1.xpose.msra.mxu0 %v1578
        %1607 = vmatprep.subr.mxu0 0.0
        %1608 = vmatpush1.xpose.msra.mxu0 %v1575
        %1609 = vmatprep.subr.mxu0 0.0
        %1610 = vmatpush1.xpose.msra.mxu0 %v1572
        %1611 = vmatprep.subr.mxu0 0.0
        %1612 = vmatpush1.xpose.msra.mxu0 %v1569
        %1613 = vmatprep.subr.mxu0 0.0
        %1614 = vmatpush1.xpose.msra.mxu0 %v1566
        %1615 = vmatprep.subr.mxu0 0.0
        %1616 = vmatpush1.xpose.msra.mxu0 %v1563
        %1617 = vmatprep.subr.mxu0 0.0
        %1618 = vmatpush1.xpose.msra.mxu0 %v1560
        %1619 = vmatprep.subr.mxu0 0.0
        %1620 = vmatpush1.xpose.msra.mxu0 %v1557
        %1621 = vmatprep.subr.mxu0 0.0
        %1622 = vmatpush1.xpose.msra.mxu0 %v1554
        %1623 = vmatprep.subr.mxu0 0.0
        %1624 = vmatpush1.xpose.msra.mxu0 %v1551
        %1625 = vmatprep.subr.mxu0 0.0
        %1626 = vmatpush1.xpose.msra.mxu0 %v1548
        %1627 = vmatprep.subr.mxu0 0.0
        %1628 = vmatpush2.xpose.msra.mxu0 0.0
        %1629 = vmatprep.subr.mxu0 0.0
        %1630 = vmatpush2.xpose.msra.mxu0 0.0
        %1631 = vmatprep.subr.mxu0 0.0
        %1632 = vmatpush2.xpose.msra.mxu0 0.0
        %1633 = vmatprep.subr.mxu0 0.0
        %1634 = vmatpush2.xpose.msra.mxu0 0.0
        %1635 = vmatprep.subr.mxu0 0.0
        %1636 = vmatpush2.xpose.msra.mxu0 0.0
        %1637 = vmatprep.subr.mxu0 0.0
        %1638 = vmatpush2.xpose.msra.mxu0 0.0
        %1639 = vmatprep.subr.mxu0 0.0
        %1640 = vmatpush2.xpose.msra.mxu0 0.0
        %1641 = vmatprep.subr.mxu0 0.0
        %1642 = vmatpush2.xpose.msra.mxu0 0.0
        %1643 = vmatprep.subr.mxu0 0.0
        %1644 = vmatpush2.xpose.msra.mxu0 0.0
        %1645 = vmatprep.subr.mxu0 0.0
        %1646 = vmatpush2.xpose.msra.mxu0 0.0
        %1647 = vmatprep.subr.mxu0 0.0
        %1648 = vmatpush2.xpose.msra.mxu0 0.0
        %1649 = vmatprep.subr.mxu0 0.0
        %1650 = vmatpush2.xpose.msra.mxu0 0.0
        %1651 = vmatprep.subr.mxu0 0.0
        %1652 = vmatpush2.xpose.msra.mxu0 0.0
        %1653 = vmatprep.subr.mxu0 0.0
        %1654 = vmatpush2.xpose.msra.mxu0 0.0
        %1655 = vmatprep.subr.mxu0 0.0
        %1656 = vmatpush2.xpose.msra.mxu0 0.0
        %1657 = vmatprep.subr.mxu0 0.0
        %1658 = vmatpush2.xpose.msra.mxu0 0.0
        %1659 = vmatprep.mubr.f32.mxu0 0.0
        %1660 = vmatmul.mubr.f32.gmra.mxu0 %v1500
        %v1661 = vpop.f32.mrf.mxu0
        %v1662 = vadd.f32 0.0, %v1661
        %v1663 = vpop.f32.mrf.mxu0
        %1664 = vmatprep.mubr.f32.mxu0 0.0
        %1665 = vmatmul.mubr.f32.gmra.mxu0 %v1503
        %v1666 = vpop.f32.mrf.mxu0
        %v1667 = vadd.f32 0.0, %v1666
        %v1668 = vpop.f32.mrf.mxu0
        %1669 = vmatprep.mubr.f32.mxu0 0.0
        %1670 = vmatmul.mubr.f32.gmra.mxu0 %v1506
        %v1671 = vpop.f32.mrf.mxu0
        %v1672 = vadd.f32 0.0, %v1671
        %v1673 = vpop.f32.mrf.mxu0
        %1674 = vmatprep.mubr.f32.mxu0 0.0
        %1675 = vmatmul.mubr.f32.gmra.mxu0 %v1509
        %v1676 = vpop.f32.mrf.mxu0
        %v1677 = vadd.f32 0.0, %v1676
        %v1678 = vpop.f32.mrf.mxu0
        %1679 = vmatprep.mubr.f32.mxu0 0.0
        %1680 = vmatmul.mubr.f32.gmra.mxu0 %v1512
        %v1681 = vpop.f32.mrf.mxu0
        %v1682 = vadd.f32 0.0, %v1681
        %v1683 = vpop.f32.mrf.mxu0
        %1684 = vmatprep.mubr.f32.mxu0 0.0
        %1685 = vmatmul.mubr.f32.gmra.mxu0 %v1515
        %v1686 = vpop.f32.mrf.mxu0
        %v1687 = vadd.f32 0.0, %v1686
        %v1688 = vpop.f32.mrf.mxu0
        %1689 = vmatprep.mubr.f32.mxu0 0.0
        %1690 = vmatmul.mubr.f32.gmra.mxu0 %v1518
        %v1691 = vpop.f32.mrf.mxu0
        %v1692 = vadd.f32 0.0, %v1691
        %v1693 = vpop.f32.mrf.mxu0
        %1694 = vmatprep.mubr.f32.mxu0 0.0
        %1695 = vmatmul.mubr.f32.gmra.mxu0 %v1521
        %v1696 = vpop.f32.mrf.mxu0
        %v1697 = vadd.f32 0.0, %v1696
        %v1698 = vpop.f32.mrf.mxu0
        %1699 = vmatprep.mubr.f32.mxu0 0.0
        %1700 = vmatmul.mubr.f32.gmra.mxu0 %v1524
        %v1701 = vpop.f32.mrf.mxu0
        %v1702 = vadd.f32 0.0, %v1701
        %v1703 = vpop.f32.mrf.mxu0
        %1704 = vmatprep.mubr.f32.mxu0 0.0
        %1705 = vmatmul.mubr.f32.gmra.mxu0 %v1527
        %v1706 = vpop.f32.mrf.mxu0
        %v1707 = vadd.f32 0.0, %v1706
        %v1708 = vpop.f32.mrf.mxu0
        %1709 = vmatprep.mubr.f32.mxu0 0.0
        %1710 = vmatmul.mubr.f32.gmra.mxu0 %v1530
        %v1711 = vpop.f32.mrf.mxu0
        %v1712 = vadd.f32 0.0, %v1711
        %v1713 = vpop.f32.mrf.mxu0
        %1714 = vmatprep.mubr.f32.mxu0 0.0
        %1715 = vmatmul.mubr.f32.gmra.mxu0 %v1533
        %v1716 = vpop.f32.mrf.mxu0
        %v1717 = vadd.f32 0.0, %v1716
        %v1718 = vpop.f32.mrf.mxu0
        %1719 = vmatprep.mubr.f32.mxu0 0.0
        %1720 = vmatmul.mubr.f32.gmra.mxu0 %v1536
        %v1721 = vpop.f32.mrf.mxu0
        %v1722 = vadd.f32 0.0, %v1721
        %v1723 = vpop.f32.mrf.mxu0
        %1724 = vmatprep.mubr.f32.mxu0 0.0
        %1725 = vmatmul.mubr.f32.gmra.mxu0 %v1539
        %v1726 = vpop.f32.mrf.mxu0
        %v1727 = vadd.f32 0.0, %v1726
        %v1728 = vpop.f32.mrf.mxu0
        %1729 = vmatprep.mubr.f32.mxu0 0.0
        %1730 = vmatmul.mubr.f32.gmra.mxu0 %v1542
        %v1731 = vpop.f32.mrf.mxu0
        %v1732 = vadd.f32 0.0, %v1731
        %v1733 = vpop.f32.mrf.mxu0
        %1734 = vmatprep.mubr.f32.mxu0 0.0
        %1735 = vmatmul.mubr.f32.gmra.mxu0 %v1545
        %v1736 = vpop.f32.mrf.mxu0
        %v1737 = vadd.f32 0.0, %v1736
        %v1738 = vpop.f32.mrf.mxu0
        %1739 = vdwg.mxu0
        %v1741 = vsel %vm1498, %v1322, 0
        %v1744 = vsel %vm1498, %v1323, 0
        %v1747 = vsel %vm1498, %v1324, 0
        %v1750 = vsel %vm1498, %v1325, 0
        %v1753 = vsel %vm1498, %v1326, 0
        %v1756 = vsel %vm1498, %v1327, 0
        %v1759 = vsel %vm1498, %v1328, 0
        %v1762 = vsel %vm1498, %v1329, 0
        %v1765 = vsel %vm1498, %v1330, 0
        %v1768 = vsel %vm1498, %v1331, 0
        %v1771 = vsel %vm1498, %v1332, 0
        %v1774 = vsel %vm1498, %v1333, 0
        %v1777 = vsel %vm1498, %v1334, 0
        %v1780 = vsel %vm1498, %v1335, 0
        %v1783 = vsel %vm1498, %v1336, 0
        %v1786 = vsel %vm1498, %v1337, 0
        %v1789 = vsel %vm1498, %v1386, 0
        %v1792 = vsel %vm1498, %v1387, 0
        %v1795 = vsel %vm1498, %v1388, 0
        %v1798 = vsel %vm1498, %v1389, 0
        %v1801 = vsel %vm1498, %v1390, 0
        %v1804 = vsel %vm1498, %v1391, 0
        %v1807 = vsel %vm1498, %v1392, 0
        %v1810 = vsel %vm1498, %v1393, 0
        %v1813 = vsel %vm1498, %v1394, 0
        %v1816 = vsel %vm1498, %v1395, 0
        %v1819 = vsel %vm1498, %v1396, 0
        %v1822 = vsel %vm1498, %v1397, 0
        %v1825 = vsel %vm1498, %v1398, 0
        %v1828 = vsel %vm1498, %v1399, 0
        %v1831 = vsel %vm1498, %v1400, 0
        %v1834 = vsel %vm1498, %v1401, 0
        %1836 = vmatprep.subr.mxu0 0.0
        %1837 = vmatpush1.xpose.msra.mxu0 %v1834
        %1838 = vmatprep.subr.mxu0 0.0
        %1839 = vmatpush1.xpose.msra.mxu0 %v1831
        %1840 = vmatprep.subr.mxu0 0.0
        %1841 = vmatpush1.xpose.msra.mxu0 %v1828
        %1842 = vmatprep.subr.mxu0 0.0
        %1843 = vmatpush1.xpose.msra.mxu0 %v1825
        %1844 = vmatprep.subr.mxu0 0.0
        %1845 = vmatpush1.xpose.msra.mxu0 %v1822
        %1846 = vmatprep.subr.mxu0 0.0
        %1847 = vmatpush1.xpose.msra.mxu0 %v1819
        %1848 = vmatprep.subr.mxu0 0.0
        %1849 = vmatpush1.xpose.msra.mxu0 %v1816
        %1850 = vmatprep.subr.mxu0 0.0
        %1851 = vmatpush1.xpose.msra.mxu0 %v1813
        %1852 = vmatprep.subr.mxu0 0.0
        %1853 = vmatpush1.xpose.msra.mxu0 %v1810
        %1854 = vmatprep.subr.mxu0 0.0
        %1855 = vmatpush1.xpose.msra.mxu0 %v1807
        %1856 = vmatprep.subr.mxu0 0.0
        %1857 = vmatpush1.xpose.msra.mxu0 %v1804
        %1858 = vmatprep.subr.mxu0 0.0
        %1859 = vmatpush1.xpose.msra.mxu0 %v1801
        %1860 = vmatprep.subr.mxu0 0.0
        %1861 = vmatpush1.xpose.msra.mxu0 %v1798
        %1862 = vmatprep.subr.mxu0 0.0
        %1863 = vmatpush1.xpose.msra.mxu0 %v1795
        %1864 = vmatprep.subr.mxu0 0.0
        %1865 = vmatpush1.xpose.msra.mxu0 %v1792
        %1866 = vmatprep.subr.mxu0 0.0
        %1867 = vmatpush1.xpose.msra.mxu0 %v1789
        %1868 = vmatprep.subr.mxu0 0.0
        %1869 = vmatpush2.xpose.msra.mxu0 0.0
        %1870 = vmatprep.subr.mxu0 0.0
        %1871 = vmatpush2.xpose.msra.mxu0 0.0
        %1872 = vmatprep.subr.mxu0 0.0
        %1873 = vmatpush2.xpose.msra.mxu0 0.0
        %1874 = vmatprep.subr.mxu0 0.0
        %1875 = vmatpush2.xpose.msra.mxu0 0.0
        %1876 = vmatprep.subr.mxu0 0.0
        %1877 = vmatpush2.xpose.msra.mxu0 0.0
        %1878 = vmatprep.subr.mxu0 0.0
        %1879 = vmatpush2.xpose.msra.mxu0 0.0
        %1880 = vmatprep.subr.mxu0 0.0
        %1881 = vmatpush2.xpose.msra.mxu0 0.0
        %1882 = vmatprep.subr.mxu0 0.0
        %1883 = vmatpush2.xpose.msra.mxu0 0.0
        %1884 = vmatprep.subr.mxu0 0.0
        %1885 = vmatpush2.xpose.msra.mxu0 0.0
        %1886 = vmatprep.subr.mxu0 0.0
        %1887 = vmatpush2.xpose.msra.mxu0 0.0
        %1888 = vmatprep.subr.mxu0 0.0
        %1889 = vmatpush2.xpose.msra.mxu0 0.0
        %1890 = vmatprep.subr.mxu0 0.0
        %1891 = vmatpush2.xpose.msra.mxu0 0.0
        %1892 = vmatprep.subr.mxu0 0.0
        %1893 = vmatpush2.xpose.msra.mxu0 0.0
        %1894 = vmatprep.subr.mxu0 0.0
        %1895 = vmatpush2.xpose.msra.mxu0 0.0
        %1896 = vmatprep.subr.mxu0 0.0
        %1897 = vmatpush2.xpose.msra.mxu0 0.0
        %1898 = vmatprep.subr.mxu0 0.0
        %1899 = vmatpush2.xpose.msra.mxu0 0.0
        %1900 = vmatprep.mubr.f32.mxu0 0.0
        %1901 = vmatmul.mubr.f32.gmra.mxu0 %v1741
        %v1902 = vpop.f32.mrf.mxu0
        %v1903 = vadd.f32 0.0, %v1902
        %v1904 = vpop.f32.mrf.mxu0
        %1905 = vmatprep.mubr.f32.mxu0 0.0
        %1906 = vmatmul.mubr.f32.gmra.mxu0 %v1744
        %v1907 = vpop.f32.mrf.mxu0
        %v1908 = vadd.f32 0.0, %v1907
        %v1909 = vpop.f32.mrf.mxu0
        %1910 = vmatprep.mubr.f32.mxu0 0.0
        %1911 = vmatmul.mubr.f32.gmra.mxu0 %v1747
        %v1912 = vpop.f32.mrf.mxu0
        %v1913 = vadd.f32 0.0, %v1912
        %v1914 = vpop.f32.mrf.mxu0
        %1915 = vmatprep.mubr.f32.mxu0 0.0
        %1916 = vmatmul.mubr.f32.gmra.mxu0 %v1750
        %v1917 = vpop.f32.mrf.mxu0
        %v1918 = vadd.f32 0.0, %v1917
        %v1919 = vpop.f32.mrf.mxu0
        %1920 = vmatprep.mubr.f32.mxu0 0.0
        %1921 = vmatmul.mubr.f32.gmra.mxu0 %v1753
        %v1922 = vpop.f32.mrf.mxu0
        %v1923 = vadd.f32 0.0, %v1922
        %v1924 = vpop.f32.mrf.mxu0
        %1925 = vmatprep.mubr.f32.mxu0 0.0
        %1926 = vmatmul.mubr.f32.gmra.mxu0 %v1756
        %v1927 = vpop.f32.mrf.mxu0
        %v1928 = vadd.f32 0.0, %v1927
        %v1929 = vpop.f32.mrf.mxu0
        %1930 = vmatprep.mubr.f32.mxu0 0.0
        %1931 = vmatmul.mubr.f32.gmra.mxu0 %v1759
        %v1932 = vpop.f32.mrf.mxu0
        %v1933 = vadd.f32 0.0, %v1932
        %v1934 = vpop.f32.mrf.mxu0
        %1935 = vmatprep.mubr.f32.mxu0 0.0
        %1936 = vmatmul.mubr.f32.gmra.mxu0 %v1762
        %v1937 = vpop.f32.mrf.mxu0
        %v1938 = vadd.f32 0.0, %v1937
        %v1939 = vpop.f32.mrf.mxu0
        %1940 = vmatprep.mubr.f32.mxu0 0.0
        %1941 = vmatmul.mubr.f32.gmra.mxu0 %v1765
        %v1942 = vpop.f32.mrf.mxu0
        %v1943 = vadd.f32 0.0, %v1942
        %v1944 = vpop.f32.mrf.mxu0
        %1945 = vmatprep.mubr.f32.mxu0 0.0
        %1946 = vmatmul.mubr.f32.gmra.mxu0 %v1768
        %v1947 = vpop.f32.mrf.mxu0
        %v1948 = vadd.f32 0.0, %v1947
        %v1949 = vpop.f32.mrf.mxu0
        %1950 = vmatprep.mubr.f32.mxu0 0.0
        %1951 = vmatmul.mubr.f32.gmra.mxu0 %v1771
        %v1952 = vpop.f32.mrf.mxu0
        %v1953 = vadd.f32 0.0, %v1952
        %v1954 = vpop.f32.mrf.mxu0
        %1955 = vmatprep.mubr.f32.mxu0 0.0
        %1956 = vmatmul.mubr.f32.gmra.mxu0 %v1774
        %v1957 = vpop.f32.mrf.mxu0
        %v1958 = vadd.f32 0.0, %v1957
        %v1959 = vpop.f32.mrf.mxu0
        %1960 = vmatprep.mubr.f32.mxu0 0.0
        %1961 = vmatmul.mubr.f32.gmra.mxu0 %v1777
        %v1962 = vpop.f32.mrf.mxu0
        %v1963 = vadd.f32 0.0, %v1962
        %v1964 = vpop.f32.mrf.mxu0
        %1965 = vmatprep.mubr.f32.mxu0 0.0
        %1966 = vmatmul.mubr.f32.gmra.mxu0 %v1780
        %v1967 = vpop.f32.mrf.mxu0
        %v1968 = vadd.f32 0.0, %v1967
        %v1969 = vpop.f32.mrf.mxu0
        %1970 = vmatprep.mubr.f32.mxu0 0.0
        %1971 = vmatmul.mubr.f32.gmra.mxu0 %v1783
        %v1972 = vpop.f32.mrf.mxu0
        %v1973 = vadd.f32 0.0, %v1972
        %v1974 = vpop.f32.mrf.mxu0
        %1975 = vmatprep.mubr.f32.mxu0 0.0
        %1976 = vmatmul.mubr.f32.gmra.mxu0 %v1786
        %v1977 = vpop.f32.mrf.mxu0
        %v1978 = vadd.f32 0.0, %v1977
        %v1979 = vpop.f32.mrf.mxu0
        %1980 = vdwg.mxu0
        %v1982 = vsel %vm1498, %v1338, 0
        %v1985 = vsel %vm1498, %v1339, 0
        %v1988 = vsel %vm1498, %v1340, 0
        %v1991 = vsel %vm1498, %v1341, 0
        %v1994 = vsel %vm1498, %v1342, 0
        %v1997 = vsel %vm1498, %v1343, 0
        %v2000 = vsel %vm1498, %v1344, 0
        %v2003 = vsel %vm1498, %v1345, 0
        %v2006 = vsel %vm1498, %v1346, 0
        %v2009 = vsel %vm1498, %v1347, 0
        %v2012 = vsel %vm1498, %v1348, 0
        %v2015 = vsel %vm1498, %v1349, 0
        %v2018 = vsel %vm1498, %v1350, 0
        %v2021 = vsel %vm1498, %v1351, 0
        %v2024 = vsel %vm1498, %v1352, 0
        %v2027 = vsel %vm1498, %v1353, 0
        %v2030 = vsel %vm1498, %v1402, 0
        %v2033 = vsel %vm1498, %v1403, 0
        %v2036 = vsel %vm1498, %v1404, 0
        %v2039 = vsel %vm1498, %v1405, 0
        %v2042 = vsel %vm1498, %v1406, 0
        %v2045 = vsel %vm1498, %v1407, 0
        %v2048 = vsel %vm1498, %v1408, 0
        %v2051 = vsel %vm1498, %v1409, 0
        %v2054 = vsel %vm1498, %v1410, 0
        %v2057 = vsel %vm1498, %v1411, 0
        %v2060 = vsel %vm1498, %v1412, 0
        %v2063 = vsel %vm1498, %v1413, 0
        %v2066 = vsel %vm1498, %v1414, 0
        %v2069 = vsel %vm1498, %v1415, 0
        %v2072 = vsel %vm1498, %v1416, 0
        %v2075 = vsel %vm1498, %v1417, 0
        %2077 = vmatprep.subr.mxu0 0.0
        %2078 = vmatpush1.xpose.msra.mxu0 %v2075
        %2079 = vmatprep.subr.mxu0 0.0
        %2080 = vmatpush1.xpose.msra.mxu0 %v2072
        %2081 = vmatprep.subr.mxu0 0.0
        %2082 = vmatpush1.xpose.msra.mxu0 %v2069
        %2083 = vmatprep.subr.mxu0 0.0
        %2084 = vmatpush1.xpose.msra.mxu0 %v2066
        %2085 = vmatprep.subr.mxu0 0.0
        %2086 = vmatpush1.xpose.msra.mxu0 %v2063
        %2087 = vmatprep.subr.mxu0 0.0
        %2088 = vmatpush1.xpose.msra.mxu0 %v2060
        %2089 = vmatprep.subr.mxu0 0.0
        %2090 = vmatpush1.xpose.msra.mxu0 %v2057
        %2091 = vmatprep.subr.mxu0 0.0
        %2092 = vmatpush1.xpose.msra.mxu0 %v2054
        %2093 = vmatprep.subr.mxu0 0.0
        %2094 = vmatpush1.xpose.msra.mxu0 %v2051
        %2095 = vmatprep.subr.mxu0 0.0
        %2096 = vmatpush1.xpose.msra.mxu0 %v2048
        %2097 = vmatprep.subr.mxu0 0.0
        %2098 = vmatpush1.xpose.msra.mxu0 %v2045
        %2099 = vmatprep.subr.mxu0 0.0
        %2100 = vmatpush1.xpose.msra.mxu0 %v2042
        %2101 = vmatprep.subr.mxu0 0.0
        %2102 = vmatpush1.xpose.msra.mxu0 %v2039
        %2103 = vmatprep.subr.mxu0 0.0
        %2104 = vmatpush1.xpose.msra.mxu0 %v2036
        %2105 = vmatprep.subr.mxu0 0.0
        %2106 = vmatpush1.xpose.msra.mxu0 %v2033
        %2107 = vmatprep.subr.mxu0 0.0
        %2108 = vmatpush1.xpose.msra.mxu0 %v2030
        %2109 = vmatprep.subr.mxu0 0.0
        %2110 = vmatpush2.xpose.msra.mxu0 0.0
        %2111 = vmatprep.subr.mxu0 0.0
        %2112 = vmatpush2.xpose.msra.mxu0 0.0
        %2113 = vmatprep.subr.mxu0 0.0
        %2114 = vmatpush2.xpose.msra.mxu0 0.0
        %2115 = vmatprep.subr.mxu0 0.0
        %2116 = vmatpush2.xpose.msra.mxu0 0.0
        %2117 = vmatprep.subr.mxu0 0.0
        %2118 = vmatpush2.xpose.msra.mxu0 0.0
        %2119 = vmatprep.subr.mxu0 0.0
        %2120 = vmatpush2.xpose.msra.mxu0 0.0
        %2121 = vmatprep.subr.mxu0 0.0
        %2122 = vmatpush2.xpose.msra.mxu0 0.0
        %2123 = vmatprep.subr.mxu0 0.0
        %2124 = vmatpush2.xpose.msra.mxu0 0.0
        %2125 = vmatprep.subr.mxu0 0.0
        %2126 = vmatpush2.xpose.msra.mxu0 0.0
        %2127 = vmatprep.subr.mxu0 0.0
        %2128 = vmatpush2.xpose.msra.mxu0 0.0
        %2129 = vmatprep.subr.mxu0 0.0
        %2130 = vmatpush2.xpose.msra.mxu0 0.0
        %2131 = vmatprep.subr.mxu0 0.0
        %2132 = vmatpush2.xpose.msra.mxu0 0.0
        %2133 = vmatprep.subr.mxu0 0.0
        %2134 = vmatpush2.xpose.msra.mxu0 0.0
        %2135 = vmatprep.subr.mxu0 0.0
        %2136 = vmatpush2.xpose.msra.mxu0 0.0
        %2137 = vmatprep.subr.mxu0 0.0
        %2138 = vmatpush2.xpose.msra.mxu0 0.0
        %2139 = vmatprep.subr.mxu0 0.0
        %2140 = vmatpush2.xpose.msra.mxu0 0.0
        %2141 = vmatprep.mubr.f32.mxu0 0.0
        %2142 = vmatmul.mubr.f32.gmra.mxu0 %v1982
        %v2143 = vpop.f32.mrf.mxu0
        %v2144 = vadd.f32 0.0, %v2143
        %v2145 = vpop.f32.mrf.mxu0
        %2146 = vmatprep.mubr.f32.mxu0 0.0
        %2147 = vmatmul.mubr.f32.gmra.mxu0 %v1985
        %v2148 = vpop.f32.mrf.mxu0
        %v2149 = vadd.f32 0.0, %v2148
        %v2150 = vpop.f32.mrf.mxu0
        %2151 = vmatprep.mubr.f32.mxu0 0.0
        %2152 = vmatmul.mubr.f32.gmra.mxu0 %v1988
        %v2153 = vpop.f32.mrf.mxu0
        %v2154 = vadd.f32 0.0, %v2153
        %v2155 = vpop.f32.mrf.mxu0
        %2156 = vmatprep.mubr.f32.mxu0 0.0
        %2157 = vmatmul.mubr.f32.gmra.mxu0 %v1991
        %v2158 = vpop.f32.mrf.mxu0
        %v2159 = vadd.f32 0.0, %v2158
        %v2160 = vpop.f32.mrf.mxu0
        %2161 = vmatprep.mubr.f32.mxu0 0.0
        %2162 = vmatmul.mubr.f32.gmra.mxu0 %v1994
        %v2163 = vpop.f32.mrf.mxu0
        %v2164 = vadd.f32 0.0, %v2163
        %v2165 = vpop.f32.mrf.mxu0
        %2166 = vmatprep.mubr.f32.mxu0 0.0
        %2167 = vmatmul.mubr.f32.gmra.mxu0 %v1997
        %v2168 = vpop.f32.mrf.mxu0
        %v2169 = vadd.f32 0.0, %v2168
        %v2170 = vpop.f32.mrf.mxu0
        %2171 = vmatprep.mubr.f32.mxu0 0.0
        %2172 = vmatmul.mubr.f32.gmra.mxu0 %v2000
        %v2173 = vpop.f32.mrf.mxu0
        %v2174 = vadd.f32 0.0, %v2173
        %v2175 = vpop.f32.mrf.mxu0
        %2176 = vmatprep.mubr.f32.mxu0 0.0
        %2177 = vmatmul.mubr.f32.gmra.mxu0 %v2003
        %v2178 = vpop.f32.mrf.mxu0
        %v2179 = vadd.f32 0.0, %v2178
        %v2180 = vpop.f32.mrf.mxu0
        %2181 = vmatprep.mubr.f32.mxu0 0.0
        %2182 = vmatmul.mubr.f32.gmra.mxu0 %v2006
        %v2183 = vpop.f32.mrf.mxu0
        %v2184 = vadd.f32 0.0, %v2183
        %v2185 = vpop.f32.mrf.mxu0
        %2186 = vmatprep.mubr.f32.mxu0 0.0
        %2187 = vmatmul.mubr.f32.gmra.mxu0 %v2009
        %v2188 = vpop.f32.mrf.mxu0
        %v2189 = vadd.f32 0.0, %v2188
        %v2190 = vpop.f32.mrf.mxu0
        %2191 = vmatprep.mubr.f32.mxu0 0.0
        %2192 = vmatmul.mubr.f32.gmra.mxu0 %v2012
        %v2193 = vpop.f32.mrf.mxu0
        %v2194 = vadd.f32 0.0, %v2193
        %v2195 = vpop.f32.mrf.mxu0
        %2196 = vmatprep.mubr.f32.mxu0 0.0
        %2197 = vmatmul.mubr.f32.gmra.mxu0 %v2015
        %v2198 = vpop.f32.mrf.mxu0
        %v2199 = vadd.f32 0.0, %v2198
        %v2200 = vpop.f32.mrf.mxu0
        %2201 = vmatprep.mubr.f32.mxu0 0.0
        %2202 = vmatmul.mubr.f32.gmra.mxu0 %v2018
        %v2203 = vpop.f32.mrf.mxu0
        %v2204 = vadd.f32 0.0, %v2203
        %v2205 = vpop.f32.mrf.mxu0
        %2206 = vmatprep.mubr.f32.mxu0 0.0
        %2207 = vmatmul.mubr.f32.gmra.mxu0 %v2021
        %v2208 = vpop.f32.mrf.mxu0
        %v2209 = vadd.f32 0.0, %v2208
        %v2210 = vpop.f32.mrf.mxu0
        %2211 = vmatprep.mubr.f32.mxu0 0.0
        %2212 = vmatmul.mubr.f32.gmra.mxu0 %v2024
        %v2213 = vpop.f32.mrf.mxu0
        %v2214 = vadd.f32 0.0, %v2213
        %v2215 = vpop.f32.mrf.mxu0
        %2216 = vmatprep.mubr.f32.mxu0 0.0
        %2217 = vmatmul.mubr.f32.gmra.mxu0 %v2027
        %v2218 = vpop.f32.mrf.mxu0
        %v2219 = vadd.f32 0.0, %v2218
        %v2220 = vpop.f32.mrf.mxu0
        %2221 = vdwg.mxu0
        %v2223 = vsel %vm1498, %v1354, 0
        %v2226 = vsel %vm1498, %v1355, 0
        %v2229 = vsel %vm1498, %v1356, 0
        %v2232 = vsel %vm1498, %v1357, 0
        %v2235 = vsel %vm1498, %v1358, 0
        %v2238 = vsel %vm1498, %v1359, 0
        %v2241 = vsel %vm1498, %v1360, 0
        %v2244 = vsel %vm1498, %v1361, 0
        %v2247 = vsel %vm1498, %v1362, 0
        %v2250 = vsel %vm1498, %v1363, 0
        %v2253 = vsel %vm1498, %v1364, 0
        %v2256 = vsel %vm1498, %v1365, 0
        %v2259 = vsel %vm1498, %v1366, 0
        %v2262 = vsel %vm1498, %v1367, 0
        %v2265 = vsel %vm1498, %v1368, 0
        %v2268 = vsel %vm1498, %v1369, 0
        %v2271 = vsel %vm1498, %v1418, 0
        %v2274 = vsel %vm1498, %v1419, 0
        %v2277 = vsel %vm1498, %v1420, 0
        %v2280 = vsel %vm1498, %v1421, 0
        %v2283 = vsel %vm1498, %v1422, 0
        %v2286 = vsel %vm1498, %v1423, 0
        %v2289 = vsel %vm1498, %v1424, 0
        %v2292 = vsel %vm1498, %v1425, 0
        %v2295 = vsel %vm1498, %v1426, 0
        %v2298 = vsel %vm1498, %v1427, 0
        %v2301 = vsel %vm1498, %v1428, 0
        %v2304 = vsel %vm1498, %v1429, 0
        %v2307 = vsel %vm1498, %v1430, 0
        %v2310 = vsel %vm1498, %v1431, 0
        %v2313 = vsel %vm1498, %v1432, 0
        %v2316 = vsel %vm1498, %v1433, 0
        %2318 = vmatprep.subr.mxu0 0.0
        %2319 = vmatpush1.xpose.msra.mxu0 %v2316
        %2320 = vmatprep.subr.mxu0 0.0
        %2321 = vmatpush1.xpose.msra.mxu0 %v2313
        %2322 = vmatprep.subr.mxu0 0.0
        %2323 = vmatpush1.xpose.msra.mxu0 %v2310
        %2324 = vmatprep.subr.mxu0 0.0
        %2325 = vmatpush1.xpose.msra.mxu0 %v2307
        %2326 = vmatprep.subr.mxu0 0.0
        %2327 = vmatpush1.xpose.msra.mxu0 %v2304
        %2328 = vmatprep.subr.mxu0 0.0
        %2329 = vmatpush1.xpose.msra.mxu0 %v2301
        %2330 = vmatprep.subr.mxu0 0.0
        %2331 = vmatpush1.xpose.msra.mxu0 %v2298
        %2332 = vmatprep.subr.mxu0 0.0
        %2333 = vmatpush1.xpose.msra.mxu0 %v2295
        %2334 = vmatprep.subr.mxu0 0.0
        %2335 = vmatpush1.xpose.msra.mxu0 %v2292
        %2336 = vmatprep.subr.mxu0 0.0
        %2337 = vmatpush1.xpose.msra.mxu0 %v2289
        %2338 = vmatprep.subr.mxu0 0.0
        %2339 = vmatpush1.xpose.msra.mxu0 %v2286
        %2340 = vmatprep.subr.mxu0 0.0
        %2341 = vmatpush1.xpose.msra.mxu0 %v2283
        %2342 = vmatprep.subr.mxu0 0.0
        %2343 = vmatpush1.xpose.msra.mxu0 %v2280
        %2344 = vmatprep.subr.mxu0 0.0
        %2345 = vmatpush1.xpose.msra.mxu0 %v2277
        %2346 = vmatprep.subr.mxu0 0.0
        %2347 = vmatpush1.xpose.msra.mxu0 %v2274
        %2348 = vmatprep.subr.mxu0 0.0
        %2349 = vmatpush1.xpose.msra.mxu0 %v2271
        %2350 = vmatprep.subr.mxu0 0.0
        %2351 = vmatpush2.xpose.msra.mxu0 0.0
        %2352 = vmatprep.subr.mxu0 0.0
        %2353 = vmatpush2.xpose.msra.mxu0 0.0
        %2354 = vmatprep.subr.mxu0 0.0
        %2355 = vmatpush2.xpose.msra.mxu0 0.0
        %2356 = vmatprep.subr.mxu0 0.0
        %2357 = vmatpush2.xpose.msra.mxu0 0.0
        %2358 = vmatprep.subr.mxu0 0.0
        %2359 = vmatpush2.xpose.msra.mxu0 0.0
        %2360 = vmatprep.subr.mxu0 0.0
        %2361 = vmatpush2.xpose.msra.mxu0 0.0
        %2362 = vmatprep.subr.mxu0 0.0
        %2363 = vmatpush2.xpose.msra.mxu0 0.0
        %2364 = vmatprep.subr.mxu0 0.0
        %2365 = vmatpush2.xpose.msra.mxu0 0.0
        %2366 = vmatprep.subr.mxu0 0.0
        %2367 = vmatpush2.xpose.msra.mxu0 0.0
        %2368 = vmatprep.subr.mxu0 0.0
        %2369 = vmatpush2.xpose.msra.mxu0 0.0
        %2370 = vmatprep.subr.mxu0 0.0
        %2371 = vmatpush2.xpose.msra.mxu0 0.0
        %2372 = vmatprep.subr.mxu0 0.0
        %2373 = vmatpush2.xpose.msra.mxu0 0.0
        %2374 = vmatprep.subr.mxu0 0.0
        %2375 = vmatpush2.xpose.msra.mxu0 0.0
        %2376 = vmatprep.subr.mxu0 0.0
        %2377 = vmatpush2.xpose.msra.mxu0 0.0
        %2378 = vmatprep.subr.mxu0 0.0
        %2379 = vmatpush2.xpose.msra.mxu0 0.0
        %2380 = vmatprep.subr.mxu0 0.0
        %2381 = vmatpush2.xpose.msra.mxu0 0.0
        %2382 = vmatprep.mubr.f32.mxu0 0.0
        %2383 = vmatmul.mubr.f32.gmra.mxu0 %v2223
        %v2384 = vpop.f32.mrf.mxu0
        %v2385 = vadd.f32 0.0, %v2384
        %v2386 = vpop.f32.mrf.mxu0
        %2387 = vmatprep.mubr.f32.mxu0 0.0
        %2388 = vmatmul.mubr.f32.gmra.mxu0 %v2226
        %v2389 = vpop.f32.mrf.mxu0
        %v2390 = vadd.f32 0.0, %v2389
        %v2391 = vpop.f32.mrf.mxu0
        %2392 = vmatprep.mubr.f32.mxu0 0.0
        %2393 = vmatmul.mubr.f32.gmra.mxu0 %v2229
        %v2394 = vpop.f32.mrf.mxu0
        %v2395 = vadd.f32 0.0, %v2394
        %v2396 = vpop.f32.mrf.mxu0
        %2397 = vmatprep.mubr.f32.mxu0 0.0
        %2398 = vmatmul.mubr.f32.gmra.mxu0 %v2232
        %v2399 = vpop.f32.mrf.mxu0
        %v2400 = vadd.f32 0.0, %v2399
        %v2401 = vpop.f32.mrf.mxu0
        %2402 = vmatprep.mubr.f32.mxu0 0.0
        %2403 = vmatmul.mubr.f32.gmra.mxu0 %v2235
        %v2404 = vpop.f32.mrf.mxu0
        %v2405 = vadd.f32 0.0, %v2404
        %v2406 = vpop.f32.mrf.mxu0
        %2407 = vmatprep.mubr.f32.mxu0 0.0
        %2408 = vmatmul.mubr.f32.gmra.mxu0 %v2238
        %v2409 = vpop.f32.mrf.mxu0
        %v2410 = vadd.f32 0.0, %v2409
        %v2411 = vpop.f32.mrf.mxu0
        %2412 = vmatprep.mubr.f32.mxu0 0.0
        %2413 = vmatmul.mubr.f32.gmra.mxu0 %v2241
        %v2414 = vpop.f32.mrf.mxu0
        %v2415 = vadd.f32 0.0, %v2414
        %v2416 = vpop.f32.mrf.mxu0
        %2417 = vmatprep.mubr.f32.mxu0 0.0
        %2418 = vmatmul.mubr.f32.gmra.mxu0 %v2244
        %v2419 = vpop.f32.mrf.mxu0
        %v2420 = vadd.f32 0.0, %v2419
        %v2421 = vpop.f32.mrf.mxu0
        %2422 = vmatprep.mubr.f32.mxu0 0.0
        %2423 = vmatmul.mubr.f32.gmra.mxu0 %v2247
        %v2424 = vpop.f32.mrf.mxu0
        %v2425 = vadd.f32 0.0, %v2424
        %v2426 = vpop.f32.mrf.mxu0
        %2427 = vmatprep.mubr.f32.mxu0 0.0
        %2428 = vmatmul.mubr.f32.gmra.mxu0 %v2250
        %v2429 = vpop.f32.mrf.mxu0
        %v2430 = vadd.f32 0.0, %v2429
        %v2431 = vpop.f32.mrf.mxu0
        %2432 = vmatprep.mubr.f32.mxu0 0.0
        %2433 = vmatmul.mubr.f32.gmra.mxu0 %v2253
        %v2434 = vpop.f32.mrf.mxu0
        %v2435 = vadd.f32 0.0, %v2434
        %v2436 = vpop.f32.mrf.mxu0
        %2437 = vmatprep.mubr.f32.mxu0 0.0
        %2438 = vmatmul.mubr.f32.gmra.mxu0 %v2256
        %v2439 = vpop.f32.mrf.mxu0
        %v2440 = vadd.f32 0.0, %v2439
        %v2441 = vpop.f32.mrf.mxu0
        %2442 = vmatprep.mubr.f32.mxu0 0.0
        %2443 = vmatmul.mubr.f32.gmra.mxu0 %v2259
        %v2444 = vpop.f32.mrf.mxu0
        %v2445 = vadd.f32 0.0, %v2444
        %v2446 = vpop.f32.mrf.mxu0
        %2447 = vmatprep.mubr.f32.mxu0 0.0
        %2448 = vmatmul.mubr.f32.gmra.mxu0 %v2262
        %v2449 = vpop.f32.mrf.mxu0
        %v2450 = vadd.f32 0.0, %v2449
        %v2451 = vpop.f32.mrf.mxu0
        %2452 = vmatprep.mubr.f32.mxu0 0.0
        %2453 = vmatmul.mubr.f32.gmra.mxu0 %v2265
        %v2454 = vpop.f32.mrf.mxu0
        %v2455 = vadd.f32 0.0, %v2454
        %v2456 = vpop.f32.mrf.mxu0
        %2457 = vmatprep.mubr.f32.mxu0 0.0
        %2458 = vmatmul.mubr.f32.gmra.mxu0 %v2268
        %v2459 = vpop.f32.mrf.mxu0
        %v2460 = vadd.f32 0.0, %v2459
        %v2461 = vpop.f32.mrf.mxu0
        %2462 = vdwg.mxu0
        %v2463 = vmax.f32 %v1662, %v1903
        %v2464 = vmax.f32 %v2463, %v2144
        %v2465 = vmax.f32 %v2464, %v2385
        %v2466 = vmax.f32 %v1667, %v1908
        %v2467 = vmax.f32 %v2466, %v2149
        %v2468 = vmax.f32 %v2467, %v2390
        %v2469 = vmax.f32 %v1672, %v1913
        %v2470 = vmax.f32 %v2469, %v2154
        %v2471 = vmax.f32 %v2470, %v2395
        %v2472 = vmax.f32 %v1677, %v1918
        %v2473 = vmax.f32 %v2472, %v2159
        %v2474 = vmax.f32 %v2473, %v2400
        %v2475 = vmax.f32 %v1682, %v1923
        %v2476 = vmax.f32 %v2475, %v2164
        %v2477 = vmax.f32 %v2476, %v2405
        %v2478 = vmax.f32 %v1687, %v1928
        %v2479 = vmax.f32 %v2478, %v2169
        %v2480 = vmax.f32 %v2479, %v2410
        %v2481 = vmax.f32 %v1692, %v1933
        %v2482 = vmax.f32 %v2481, %v2174
        %v2483 = vmax.f32 %v2482, %v2415
        %v2484 = vmax.f32 %v1697, %v1938
        %v2485 = vmax.f32 %v2484, %v2179
        %v2486 = vmax.f32 %v2485, %v2420
        %v2487 = vmax.f32 %v1702, %v1943
        %v2488 = vmax.f32 %v2487, %v2184
        %v2489 = vmax.f32 %v2488, %v2425
        %v2490 = vmax.f32 %v1707, %v1948
        %v2491 = vmax.f32 %v2490, %v2189
        %v2492 = vmax.f32 %v2491, %v2430
        %v2493 = vmax.f32 %v1712, %v1953
        %v2494 = vmax.f32 %v2493, %v2194
        %v2495 = vmax.f32 %v2494, %v2435
        %v2496 = vmax.f32 %v1717, %v1958
        %v2497 = vmax.f32 %v2496, %v2199
        %v2498 = vmax.f32 %v2497, %v2440
        %v2499 = vmax.f32 %v1722, %v1963
        %v2500 = vmax.f32 %v2499, %v2204
        %v2501 = vmax.f32 %v2500, %v2445
        %v2502 = vmax.f32 %v1727, %v1968
        %v2503 = vmax.f32 %v2502, %v2209
        %v2504 = vmax.f32 %v2503, %v2450
        %v2505 = vmax.f32 %v1732, %v1973
        %v2506 = vmax.f32 %v2505, %v2214
        %v2507 = vmax.f32 %v2506, %v2455
        %v2508 = vmax.f32 %v1737, %v1978
        %v2509 = vmax.f32 %v2508, %v2219
        %v2510 = vmax.f32 %v2509, %v2460
        %v2511 = vsub.f32 %v1662, %v2465
        %v2512 = vsub.f32 %v1667, %v2468
        %v2513 = vsub.f32 %v1672, %v2471
        %v2514 = vsub.f32 %v1677, %v2474
        %v2515 = vsub.f32 %v1682, %v2477
        %v2516 = vsub.f32 %v1687, %v2480
        %v2517 = vsub.f32 %v1692, %v2483
        %v2518 = vsub.f32 %v1697, %v2486
        %v2519 = vsub.f32 %v1702, %v2489
        %v2520 = vsub.f32 %v1707, %v2492
        %v2521 = vsub.f32 %v1712, %v2495
        %v2522 = vsub.f32 %v1717, %v2498
        %v2523 = vsub.f32 %v1722, %v2501
        %v2524 = vsub.f32 %v1727, %v2504
        %v2525 = vsub.f32 %v1732, %v2507
        %v2526 = vsub.f32 %v1737, %v2510
        %v2527 = vsub.f32 %v1903, %v2465
        %v2528 = vsub.f32 %v1908, %v2468
        %v2529 = vsub.f32 %v1913, %v2471
        %v2530 = vsub.f32 %v1918, %v2474
        %v2531 = vsub.f32 %v1923, %v2477
        %v2532 = vsub.f32 %v1928, %v2480
        %v2533 = vsub.f32 %v1933, %v2483
        %v2534 = vsub.f32 %v1938, %v2486
        %v2535 = vsub.f32 %v1943, %v2489
        %v2536 = vsub.f32 %v1948, %v2492
        %v2537 = vsub.f32 %v1953, %v2495
        %v2538 = vsub.f32 %v1958, %v2498
        %v2539 = vsub.f32 %v1963, %v2501
        %v2540 = vsub.f32 %v1968, %v2504
        %v2541 = vsub.f32 %v1973, %v2507
        %v2542 = vsub.f32 %v1978, %v2510
        %v2543 = vsub.f32 %v2144, %v2465
        %v2544 = vsub.f32 %v2149, %v2468
        %v2545 = vsub.f32 %v2154, %v2471
        %v2546 = vsub.f32 %v2159, %v2474
        %v2547 = vsub.f32 %v2164, %v2477
        %v2548 = vsub.f32 %v2169, %v2480
        %v2549 = vsub.f32 %v2174, %v2483
        %v2550 = vsub.f32 %v2179, %v2486
        %v2551 = vsub.f32 %v2184, %v2489
        %v2552 = vsub.f32 %v2189, %v2492
        %v2553 = vsub.f32 %v2194, %v2495
        %v2554 = vsub.f32 %v2199, %v2498
        %v2555 = vsub.f32 %v2204, %v2501
        %v2556 = vsub.f32 %v2209, %v2504
        %v2557 = vsub.f32 %v2214, %v2507
        %v2558 = vsub.f32 %v2219, %v2510
        %v2559 = vsub.f32 %v2385, %v2465
        %v2560 = vsub.f32 %v2390, %v2468
        %v2561 = vsub.f32 %v2395, %v2471
        %v2562 = vsub.f32 %v2400, %v2474
        %v2563 = vsub.f32 %v2405, %v2477
        %v2564 = vsub.f32 %v2410, %v2480
        %v2565 = vsub.f32 %v2415, %v2483
        %v2566 = vsub.f32 %v2420, %v2486
        %v2567 = vsub.f32 %v2425, %v2489
        %v2568 = vsub.f32 %v2430, %v2492
        %v2569 = vsub.f32 %v2435, %v2495
        %v2570 = vsub.f32 %v2440, %v2498
        %v2571 = vsub.f32 %v2445, %v2501
        %v2572 = vsub.f32 %v2450, %v2504
        %v2573 = vsub.f32 %v2455, %v2507
        %v2574 = vsub.f32 %v2460, %v2510
        %v2575 = vmul.f32 %v2511, 1.442695
        %v2576 = vpow.pop %v2575
        %v2577 = vmul.f32 %v2512, 1.442695
        %v2578 = vpow.pop %v2577
        %v2579 = vmul.f32 %v2513, 1.442695
        %v2580 = vpow.pop %v2579
        %v2581 = vmul.f32 %v2514, 1.442695
        %v2582 = vpow.pop %v2581
        %v2583 = vmul.f32 %v2515, 1.442695
        %v2584 = vpow.pop %v2583
        %v2585 = vmul.f32 %v2516, 1.442695
        %v2586 = vpow.pop %v2585
        %v2587 = vmul.f32 %v2517, 1.442695
        %v2588 = vpow.pop %v2587
        %v2589 = vmul.f32 %v2518, 1.442695
        %v2590 = vpow.pop %v2589
        %v2591 = vmul.f32 %v2519, 1.442695
        %v2592 = vpow.pop %v2591
        %v2593 = vmul.f32 %v2520, 1.442695
        %v2594 = vpow.pop %v2593
        %v2595 = vmul.f32 %v2521, 1.442695
        %v2596 = vpow.pop %v2595
        %v2597 = vmul.f32 %v2522, 1.442695
        %v2598 = vpow.pop %v2597
        %v2599 = vmul.f32 %v2523, 1.442695
        %v2600 = vpow.pop %v2599
        %v2601 = vmul.f32 %v2524, 1.442695
        %v2602 = vpow.pop %v2601
        %v2603 = vmul.f32 %v2525, 1.442695
        %v2604 = vpow.pop %v2603
        %v2605 = vmul.f32 %v2526, 1.442695
        %v2606 = vpow.pop %v2605
        %v2607 = vmul.f32 %v2527, 1.442695
        %v2608 = vpow.pop %v2607
        %v2609 = vmul.f32 %v2528, 1.442695
        %v2610 = vpow.pop %v2609
        %v2611 = vmul.f32 %v2529, 1.442695
        %v2612 = vpow.pop %v2611
        %v2613 = vmul.f32 %v2530, 1.442695
        %v2614 = vpow.pop %v2613
        %v2615 = vmul.f32 %v2531, 1.442695
        %v2616 = vpow.pop %v2615
        %v2617 = vmul.f32 %v2532, 1.442695
        %v2618 = vpow.pop %v2617
        %v2619 = vmul.f32 %v2533, 1.442695
        %v2620 = vpow.pop %v2619
        %v2621 = vmul.f32 %v2534, 1.442695
        %v2622 = vpow.pop %v2621
        %v2623 = vmul.f32 %v2535, 1.442695
        %v2624 = vpow.pop %v2623
        %v2625 = vmul.f32 %v2536, 1.442695
        %v2626 = vpow.pop %v2625
        %v2627 = vmul.f32 %v2537, 1.442695
        %v2628 = vpow.pop %v2627
        %v2629 = vmul.f32 %v2538, 1.442695
        %v2630 = vpow.pop %v2629
        %v2631 = vmul.f32 %v2539, 1.442695
        %v2632 = vpow.pop %v2631
        %v2633 = vmul.f32 %v2540, 1.442695
        %v2634 = vpow.pop %v2633
        %v2635 = vmul.f32 %v2541, 1.442695
        %v2636 = vpow.pop %v2635
        %v2637 = vmul.f32 %v2542, 1.442695
        %v2638 = vpow.pop %v2637
        %v2639 = vmul.f32 %v2543, 1.442695
        %v2640 = vpow.pop %v2639
        %v2641 = vmul.f32 %v2544, 1.442695
        %v2642 = vpow.pop %v2641
        %v2643 = vmul.f32 %v2545, 1.442695
        %v2644 = vpow.pop %v2643
        %v2645 = vmul.f32 %v2546, 1.442695
        %v2646 = vpow.pop %v2645
        %v2647 = vmul.f32 %v2547, 1.442695
        %v2648 = vpow.pop %v2647
        %v2649 = vmul.f32 %v2548, 1.442695
        %v2650 = vpow.pop %v2649
        %v2651 = vmul.f32 %v2549, 1.442695
        %v2652 = vpow.pop %v2651
        %v2653 = vmul.f32 %v2550, 1.442695
        %v2654 = vpow.pop %v2653
        %v2655 = vmul.f32 %v2551, 1.442695
        %v2656 = vpow.pop %v2655
        %v2657 = vmul.f32 %v2552, 1.442695
        %v2658 = vpow.pop %v2657
        %v2659 = vmul.f32 %v2553, 1.442695
        %v2660 = vpow.pop %v2659
        %v2661 = vmul.f32 %v2554, 1.442695
        %v2662 = vpow.pop %v2661
        %v2663 = vmul.f32 %v2555, 1.442695
        %v2664 = vpow.pop %v2663
        %v2665 = vmul.f32 %v2556, 1.442695
        %v2666 = vpow.pop %v2665
        %v2667 = vmul.f32 %v2557, 1.442695
        %v2668 = vpow.pop %v2667
        %v2669 = vmul.f32 %v2558, 1.442695
        %v2670 = vpow.pop %v2669
        %v2671 = vmul.f32 %v2559, 1.442695
        %v2672 = vpow.pop %v2671
        %v2673 = vmul.f32 %v2560, 1.442695
        %v2674 = vpow.pop %v2673
        %v2675 = vmul.f32 %v2561, 1.442695
        %v2676 = vpow.pop %v2675
        %v2677 = vmul.f32 %v2562, 1.442695
        %v2678 = vpow.pop %v2677
        %v2679 = vmul.f32 %v2563, 1.442695
        %v2680 = vpow.pop %v2679
        %v2681 = vmul.f32 %v2564, 1.442695
        %v2682 = vpow.pop %v2681
        %v2683 = vmul.f32 %v2565, 1.442695
        %v2684 = vpow.pop %v2683
        %v2685 = vmul.f32 %v2566, 1.442695
        %v2686 = vpow.pop %v2685
        %v2687 = vmul.f32 %v2567, 1.442695
        %v2688 = vpow.pop %v2687
        %v2689 = vmul.f32 %v2568, 1.442695
        %v2690 = vpow.pop %v2689
        %v2691 = vmul.f32 %v2569, 1.442695
        %v2692 = vpow.pop %v2691
        %v2693 = vmul.f32 %v2570, 1.442695
        %v2694 = vpow.pop %v2693
        %v2695 = vmul.f32 %v2571, 1.442695
        %v2696 = vpow.pop %v2695
        %v2697 = vmul.f32 %v2572, 1.442695
        %v2698 = vpow.pop %v2697
        %v2699 = vmul.f32 %v2573, 1.442695
        %v2700 = vpow.pop %v2699
        %v2701 = vmul.f32 %v2574, 1.442695
        %v2702 = vpow.pop %v2701
        %v2703 = vadd.f32 %v2576, %v2608
        %v2704 = vadd.f32 %v2703, %v2640
        %v2705 = vadd.f32 %v2704, %v2672
        %v2706 = vadd.f32 %v2578, %v2610
        %v2707 = vadd.f32 %v2706, %v2642
        %v2708 = vadd.f32 %v2707, %v2674
        %v2709 = vadd.f32 %v2580, %v2612
        %v2710 = vadd.f32 %v2709, %v2644
        %v2711 = vadd.f32 %v2710, %v2676
        %v2712 = vadd.f32 %v2582, %v2614
        %v2713 = vadd.f32 %v2712, %v2646
        %v2714 = vadd.f32 %v2713, %v2678
        %v2715 = vadd.f32 %v2584, %v2616
        %v2716 = vadd.f32 %v2715, %v2648
        %v2717 = vadd.f32 %v2716, %v2680
        %v2718 = vadd.f32 %v2586, %v2618
        %v2719 = vadd.f32 %v2718, %v2650
        %v2720 = vadd.f32 %v2719, %v2682
        %v2721 = vadd.f32 %v2588, %v2620
        %v2722 = vadd.f32 %v2721, %v2652
        %v2723 = vadd.f32 %v2722, %v2684
        %v2724 = vadd.f32 %v2590, %v2622
        %v2725 = vadd.f32 %v2724, %v2654
        %v2726 = vadd.f32 %v2725, %v2686
        %v2727 = vadd.f32 %v2592, %v2624
        %v2728 = vadd.f32 %v2727, %v2656
        %v2729 = vadd.f32 %v2728, %v2688
        %v2730 = vadd.f32 %v2594, %v2626
        %v2731 = vadd.f32 %v2730, %v2658
        %v2732 = vadd.f32 %v2731, %v2690
        %v2733 = vadd.f32 %v2596, %v2628
        %v2734 = vadd.f32 %v2733, %v2660
        %v2735 = vadd.f32 %v2734, %v2692
        %v2736 = vadd.f32 %v2598, %v2630
        %v2737 = vadd.f32 %v2736, %v2662
        %v2738 = vadd.f32 %v2737, %v2694
        %v2739 = vadd.f32 %v2600, %v2632
        %v2740 = vadd.f32 %v2739, %v2664
        %v2741 = vadd.f32 %v2740, %v2696
        %v2742 = vadd.f32 %v2602, %v2634
        %v2743 = vadd.f32 %v2742, %v2666
        %v2744 = vadd.f32 %v2743, %v2698
        %v2745 = vadd.f32 %v2604, %v2636
        %v2746 = vadd.f32 %v2745, %v2668
        %v2747 = vadd.f32 %v2746, %v2700
        %v2748 = vadd.f32 %v2606, %v2638
        %v2749 = vadd.f32 %v2748, %v2670
        %v2750 = vadd.f32 %v2749, %v2702
        %v2751 = vrcp.pop %v2705
        %v2752 = vrcp.pop %v2708
        %v2753 = vrcp.pop %v2711
        %v2754 = vrcp.pop %v2714
        %v2755 = vrcp.pop %v2717
        %v2756 = vrcp.pop %v2720
        %v2757 = vrcp.pop %v2723
        %v2758 = vrcp.pop %v2726
        %v2759 = vrcp.pop %v2729
        %v2760 = vrcp.pop %v2732
        %v2761 = vrcp.pop %v2735
        %v2762 = vrcp.pop %v2738
        %v2763 = vrcp.pop %v2741
        %v2764 = vrcp.pop %v2744
        %v2765 = vrcp.pop %v2747
        %v2766 = vrcp.pop %v2750
        %v2767 = vmul.f32 %v2576, %v2751
        %v2768 = vmul.f32 %v2578, %v2752
        %v2769 = vmul.f32 %v2580, %v2753
        %v2770 = vmul.f32 %v2582, %v2754
        %v2771 = vmul.f32 %v2584, %v2755
        %v2772 = vmul.f32 %v2586, %v2756
        %v2773 = vmul.f32 %v2588, %v2757
        %v2774 = vmul.f32 %v2590, %v2758
        %v2775 = vmul.f32 %v2592, %v2759
        %v2776 = vmul.f32 %v2594, %v2760
        %v2777 = vmul.f32 %v2596, %v2761
        %v2778 = vmul.f32 %v2598, %v2762
        %v2779 = vmul.f32 %v2600, %v2763
        %v2780 = vmul.f32 %v2602, %v2764
        %v2781 = vmul.f32 %v2604, %v2765
        %v2782 = vmul.f32 %v2606, %v2766
        %v2783 = vmul.f32 %v2608, %v2751
        %v2784 = vmul.f32 %v2610, %v2752
        %v2785 = vmul.f32 %v2612, %v2753
        %v2786 = vmul.f32 %v2614, %v2754
        %v2787 = vmul.f32 %v2616, %v2755
        %v2788 = vmul.f32 %v2618, %v2756
        %v2789 = vmul.f32 %v2620, %v2757
        %v2790 = vmul.f32 %v2622, %v2758
        %v2791 = vmul.f32 %v2624, %v2759
        %v2792 = vmul.f32 %v2626, %v2760
        %v2793 = vmul.f32 %v2628, %v2761
        %v2794 = vmul.f32 %v2630, %v2762
        %v2795 = vmul.f32 %v2632, %v2763
        %v2796 = vmul.f32 %v2634, %v2764
        %v2797 = vmul.f32 %v2636, %v2765
        %v2798 = vmul.f32 %v2638, %v2766
        %v2799 = vmul.f32 %v2640, %v2751
        %v2800 = vmul.f32 %v2642, %v2752
        %v2801 = vmul.f32 %v2644, %v2753
        %v2802 = vmul.f32 %v2646, %v2754
        %v2803 = vmul.f32 %v2648, %v2755
        %v2804 = vmul.f32 %v2650, %v2756
        %v2805 = vmul.f32 %v2652, %v2757
        %v2806 = vmul.f32 %v2654, %v2758
        %v2807 = vmul.f32 %v2656, %v2759
        %v2808 = vmul.f32 %v2658, %v2760
        %v2809 = vmul.f32 %v2660, %v2761
        %v2810 = vmul.f32 %v2662, %v2762
        %v2811 = vmul.f32 %v2664, %v2763
        %v2812 = vmul.f32 %v2666, %v2764
        %v2813 = vmul.f32 %v2668, %v2765
        %v2814 = vmul.f32 %v2670, %v2766
        %v2815 = vmul.f32 %v2672, %v2751
        %v2816 = vmul.f32 %v2674, %v2752
        %v2817 = vmul.f32 %v2676, %v2753
        %v2818 = vmul.f32 %v2678, %v2754
        %v2819 = vmul.f32 %v2680, %v2755
        %v2820 = vmul.f32 %v2682, %v2756
        %v2821 = vmul.f32 %v2684, %v2757
        %v2822 = vmul.f32 %v2686, %v2758
        %v2823 = vmul.f32 %v2688, %v2759
        %v2824 = vmul.f32 %v2690, %v2760
        %v2825 = vmul.f32 %v2692, %v2761
        %v2826 = vmul.f32 %v2694, %v2762
        %v2827 = vmul.f32 %v2696, %v2763
        %v2828 = vmul.f32 %v2698, %v2764
        %v2829 = vmul.f32 %v2700, %v2765
        %v2830 = vmul.f32 %v2702, %v2766
        %v2831 = vld [vmem:[#allocation2] sm:$0xff]
        %v2832 = vld [vmem:[#allocation2 + $0x8] sm:$0xff]
        %v2833 = vld [vmem:[#allocation2 + $0x10] sm:$0xff]
        %v2834 = vld [vmem:[#allocation2 + $0x18] sm:$0xff]
        %v2835 = vld [vmem:[#allocation2 + $0x20] sm:$0xff]
        %v2836 = vld [vmem:[#allocation2 + $0x28] sm:$0xff]
        %v2837 = vld [vmem:[#allocation2 + $0x30] sm:$0xff]
        %v2838 = vld [vmem:[#allocation2 + $0x38] sm:$0xff]
        %v2839 = vld [vmem:[#allocation2 + $0x40] sm:$0xff]
        %v2840 = vld [vmem:[#allocation2 + $0x48] sm:$0xff]
        %v2841 = vld [vmem:[#allocation2 + $0x50] sm:$0xff]
        %v2842 = vld [vmem:[#allocation2 + $0x58] sm:$0xff]
        %v2843 = vld [vmem:[#allocation2 + $0x60] sm:$0xff]
        %v2844 = vld [vmem:[#allocation2 + $0x68] sm:$0xff]
        %v2845 = vld [vmem:[#allocation2 + $0x70] sm:$0xff]
        %v2846 = vld [vmem:[#allocation2 + $0x78] sm:$0xff]
        %v2847 = vld [vmem:[#allocation2 + $0x80] sm:$0xff]
        %v2848 = vld [vmem:[#allocation2 + $0x88] sm:$0xff]
        %v2849 = vld [vmem:[#allocation2 + $0x90] sm:$0xff]
        %v2850 = vld [vmem:[#allocation2 + $0x98] sm:$0xff]
        %v2851 = vld [vmem:[#allocation2 + $0xa0] sm:$0xff]
        %v2852 = vld [vmem:[#allocation2 + $0xa8] sm:$0xff]
        %v2853 = vld [vmem:[#allocation2 + $0xb0] sm:$0xff]
        %v2854 = vld [vmem:[#allocation2 + $0xb8] sm:$0xff]
        %v2855 = vld [vmem:[#allocation2 + $0xc0] sm:$0xff]
        %v2856 = vld [vmem:[#allocation2 + $0xc8] sm:$0xff]
        %v2857 = vld [vmem:[#allocation2 + $0xd0] sm:$0xff]
        %v2858 = vld [vmem:[#allocation2 + $0xd8] sm:$0xff]
        %v2859 = vld [vmem:[#allocation2 + $0xe0] sm:$0xff]
        %v2860 = vld [vmem:[#allocation2 + $0xe8] sm:$0xff]
        %v2861 = vld [vmem:[#allocation2 + $0xf0] sm:$0xff]
        %v2862 = vld [vmem:[#allocation2 + $0xf8] sm:$0xff]
        %v2863 = vld [vmem:[#allocation2 + $0x100] sm:$0xff]
        %v2864 = vld [vmem:[#allocation2 + $0x108] sm:$0xff]
        %v2865 = vld [vmem:[#allocation2 + $0x110] sm:$0xff]
        %v2866 = vld [vmem:[#allocation2 + $0x118] sm:$0xff]
        %v2867 = vld [vmem:[#allocation2 + $0x120] sm:$0xff]
        %v2868 = vld [vmem:[#allocation2 + $0x128] sm:$0xff]
        %v2869 = vld [vmem:[#allocation2 + $0x130] sm:$0xff]
        %v2870 = vld [vmem:[#allocation2 + $0x138] sm:$0xff]
        %v2871 = vld [vmem:[#allocation2 + $0x140] sm:$0xff]
        %v2872 = vld [vmem:[#allocation2 + $0x148] sm:$0xff]
        %v2873 = vld [vmem:[#allocation2 + $0x150] sm:$0xff]
        %v2874 = vld [vmem:[#allocation2 + $0x158] sm:$0xff]
        %v2875 = vld [vmem:[#allocation2 + $0x160] sm:$0xff]
        %v2876 = vld [vmem:[#allocation2 + $0x168] sm:$0xff]
        %v2877 = vld [vmem:[#allocation2 + $0x170] sm:$0xff]
        %v2878 = vld [vmem:[#allocation2 + $0x178] sm:$0xff]
        %v2879 = vld [vmem:[#allocation2 + $0x180] sm:$0xff]
        %v2880 = vld [vmem:[#allocation2 + $0x188] sm:$0xff]
        %v2881 = vld [vmem:[#allocation2 + $0x190] sm:$0xff]
        %v2882 = vld [vmem:[#allocation2 + $0x198] sm:$0xff]
        %v2883 = vld [vmem:[#allocation2 + $0x1a0] sm:$0xff]
        %v2884 = vld [vmem:[#allocation2 + $0x1a8] sm:$0xff]
        %v2885 = vld [vmem:[#allocation2 + $0x1b0] sm:$0xff]
        %v2886 = vld [vmem:[#allocation2 + $0x1b8] sm:$0xff]
        %v2887 = vld [vmem:[#allocation2 + $0x1c0] sm:$0xff]
        %v2888 = vld [vmem:[#allocation2 + $0x1c8] sm:$0xff]
        %v2889 = vld [vmem:[#allocation2 + $0x1d0] sm:$0xff]
        %v2890 = vld [vmem:[#allocation2 + $0x1d8] sm:$0xff]
        %v2891 = vld [vmem:[#allocation2 + $0x1e0] sm:$0xff]
        %v2892 = vld [vmem:[#allocation2 + $0x1e8] sm:$0xff]
        %v2893 = vld [vmem:[#allocation2 + $0x1f0] sm:$0xff]
        %v2894 = vld [vmem:[#allocation2 + $0x1f8] sm:$0xff]
        %2895 = vmatprep.subr.mxu0 0.0
        %2896 = vmatpush1.msra.mxu0 %v1449
        %2897 = vmatprep.subr.mxu0 0.0
        %2898 = vmatpush1.msra.mxu0 %v1448
        %2899 = vmatprep.subr.mxu0 0.0
        %2900 = vmatpush1.msra.mxu0 %v1447
        %2901 = vmatprep.subr.mxu0 0.0
        %2902 = vmatpush1.msra.mxu0 %v1446
        %2903 = vmatprep.subr.mxu0 0.0
        %2904 = vmatpush1.msra.mxu0 %v1445
        %2905 = vmatprep.subr.mxu0 0.0
        %2906 = vmatpush1.msra.mxu0 %v1444
        %2907 = vmatprep.subr.mxu0 0.0
        %2908 = vmatpush1.msra.mxu0 %v1443
        %2909 = vmatprep.subr.mxu0 0.0
        %2910 = vmatpush1.msra.mxu0 %v1442
        %2911 = vmatprep.subr.mxu0 0.0
        %2912 = vmatpush1.msra.mxu0 %v1441
        %2913 = vmatprep.subr.mxu0 0.0
        %2914 = vmatpush1.msra.mxu0 %v1440
        %2915 = vmatprep.subr.mxu0 0.0
        %2916 = vmatpush1.msra.mxu0 %v1439
        %2917 = vmatprep.subr.mxu0 0.0
        %2918 = vmatpush1.msra.mxu0 %v1438
        %2919 = vmatprep.subr.mxu0 0.0
        %2920 = vmatpush1.msra.mxu0 %v1437
        %2921 = vmatprep.subr.mxu0 0.0
        %2922 = vmatpush1.msra.mxu0 %v1436
        %2923 = vmatprep.subr.mxu0 0.0
        %2924 = vmatpush1.msra.mxu0 %v1435
        %2925 = vmatprep.subr.mxu0 0.0
        %2926 = vmatpush1.msra.mxu0 %v1434
        %2927 = vmatprep.subr.mxu0 0.0
        %2928 = vmatpush2.msra.mxu0 0.0
        %2929 = vmatprep.subr.mxu0 0.0
        %2930 = vmatpush2.msra.mxu0 0.0
        %2931 = vmatprep.subr.mxu0 0.0
        %2932 = vmatpush2.msra.mxu0 0.0
        %2933 = vmatprep.subr.mxu0 0.0
        %2934 = vmatpush2.msra.mxu0 0.0
        %2935 = vmatprep.subr.mxu0 0.0
        %2936 = vmatpush2.msra.mxu0 0.0
        %2937 = vmatprep.subr.mxu0 0.0
        %2938 = vmatpush2.msra.mxu0 0.0
        %2939 = vmatprep.subr.mxu0 0.0
        %2940 = vmatpush2.msra.mxu0 0.0
        %2941 = vmatprep.subr.mxu0 0.0
        %2942 = vmatpush2.msra.mxu0 0.0
        %2943 = vmatprep.subr.mxu0 0.0
        %2944 = vmatpush2.msra.mxu0 0.0
        %2945 = vmatprep.subr.mxu0 0.0
        %2946 = vmatpush2.msra.mxu0 0.0
        %2947 = vmatprep.subr.mxu0 0.0
        %2948 = vmatpush2.msra.mxu0 0.0
        %2949 = vmatprep.subr.mxu0 0.0
        %2950 = vmatpush2.msra.mxu0 0.0
        %2951 = vmatprep.subr.mxu0 0.0
        %2952 = vmatpush2.msra.mxu0 0.0
        %2953 = vmatprep.subr.mxu0 0.0
        %2954 = vmatpush2.msra.mxu0 0.0
        %2955 = vmatprep.subr.mxu0 0.0
        %2956 = vmatpush2.msra.mxu0 0.0
        %2957 = vmatprep.subr.mxu0 0.0
        %2958 = vmatpush2.msra.mxu0 0.0
        %2959 = vmatprep.mubr.f32.mxu0 0.0
        %2960 = vmatmul.mubr.f32.gmra.mxu0 %v2767
        %v2961 = vpop.f32.mrf.mxu0
        %v2962 = vadd.f32 0.0, %v2961
        %v2963 = vpop.f32.mrf.mxu0
        %2964 = vmatprep.mubr.f32.mxu0 0.0
        %2965 = vmatmul.mubr.f32.gmra.mxu0 %v2768
        %v2966 = vpop.f32.mrf.mxu0
        %v2967 = vadd.f32 0.0, %v2966
        %v2968 = vpop.f32.mrf.mxu0
        %2969 = vmatprep.mubr.f32.mxu0 0.0
        %2970 = vmatmul.mubr.f32.gmra.mxu0 %v2769
        %v2971 = vpop.f32.mrf.mxu0
        %v2972 = vadd.f32 0.0, %v2971
        %v2973 = vpop.f32.mrf.mxu0
        %2974 = vmatprep.mubr.f32.mxu0 0.0
        %2975 = vmatmul.mubr.f32.gmra.mxu0 %v2770
        %v2976 = vpop.f32.mrf.mxu0
        %v2977 = vadd.f32 0.0, %v2976
        %v2978 = vpop.f32.mrf.mxu0
        %2979 = vmatprep.mubr.f32.mxu0 0.0
        %2980 = vmatmul.mubr.f32.gmra.mxu0 %v2771
        %v2981 = vpop.f32.mrf.mxu0
        %v2982 = vadd.f32 0.0, %v2981
        %v2983 = vpop.f32.mrf.mxu0
        %2984 = vmatprep.mubr.f32.mxu0 0.0
        %2985 = vmatmul.mubr.f32.gmra.mxu0 %v2772
        %v2986 = vpop.f32.mrf.mxu0
        %v2987 = vadd.f32 0.0, %v2986
        %v2988 = vpop.f32.mrf.mxu0
        %2989 = vmatprep.mubr.f32.mxu0 0.0
        %2990 = vmatmul.mubr.f32.gmra.mxu0 %v2773
        %v2991 = vpop.f32.mrf.mxu0
        %v2992 = vadd.f32 0.0, %v2991
        %v2993 = vpop.f32.mrf.mxu0
        %2994 = vmatprep.mubr.f32.mxu0 0.0
        %2995 = vmatmul.mubr.f32.gmra.mxu0 %v2774
        %v2996 = vpop.f32.mrf.mxu0
        %v2997 = vadd.f32 0.0, %v2996
        %v2998 = vpop.f32.mrf.mxu0
        %2999 = vmatprep.mubr.f32.mxu0 0.0
        %3000 = vmatmul.mubr.f32.gmra.mxu0 %v2775
        %v3001 = vpop.f32.mrf.mxu0
        %v3002 = vadd.f32 0.0, %v3001
        %v3003 = vpop.f32.mrf.mxu0
        %3004 = vmatprep.mubr.f32.mxu0 0.0
        %3005 = vmatmul.mubr.f32.gmra.mxu0 %v2776
        %v3006 = vpop.f32.mrf.mxu0
        %v3007 = vadd.f32 0.0, %v3006
        %v3008 = vpop.f32.mrf.mxu0
        %3009 = vmatprep.mubr.f32.mxu0 0.0
        %3010 = vmatmul.mubr.f32.gmra.mxu0 %v2777
        %v3011 = vpop.f32.mrf.mxu0
        %v3012 = vadd.f32 0.0, %v3011
        %v3013 = vpop.f32.mrf.mxu0
        %3014 = vmatprep.mubr.f32.mxu0 0.0
        %3015 = vmatmul.mubr.f32.gmra.mxu0 %v2778
        %v3016 = vpop.f32.mrf.mxu0
        %v3017 = vadd.f32 0.0, %v3016
        %v3018 = vpop.f32.mrf.mxu0
        %3019 = vmatprep.mubr.f32.mxu0 0.0
        %3020 = vmatmul.mubr.f32.gmra.mxu0 %v2779
        %v3021 = vpop.f32.mrf.mxu0
        %v3022 = vadd.f32 0.0, %v3021
        %v3023 = vpop.f32.mrf.mxu0
        %3024 = vmatprep.mubr.f32.mxu0 0.0
        %3025 = vmatmul.mubr.f32.gmra.mxu0 %v2780
        %v3026 = vpop.f32.mrf.mxu0
        %v3027 = vadd.f32 0.0, %v3026
        %v3028 = vpop.f32.mrf.mxu0
        %3029 = vmatprep.mubr.f32.mxu0 0.0
        %3030 = vmatmul.mubr.f32.gmra.mxu0 %v2781
        %v3031 = vpop.f32.mrf.mxu0
        %v3032 = vadd.f32 0.0, %v3031
        %v3033 = vpop.f32.mrf.mxu0
        %3034 = vmatprep.mubr.f32.mxu0 0.0
        %3035 = vmatmul.mubr.f32.gmra.mxu0 %v2782
        %v3036 = vpop.f32.mrf.mxu0
        %v3037 = vadd.f32 0.0, %v3036
        %v3038 = vpop.f32.mrf.mxu0
        %3039 = vdwg.mxu0
        %3040 = vmatprep.subr.mxu0 0.0
        %3041 = vmatpush1.msra.mxu0 %v1465
        %3042 = vmatprep.subr.mxu0 0.0
        %3043 = vmatpush1.msra.mxu0 %v1464
        %3044 = vmatprep.subr.mxu0 0.0
        %3045 = vmatpush1.msra.mxu0 %v1463
        %3046 = vmatprep.subr.mxu0 0.0
        %3047 = vmatpush1.msra.mxu0 %v1462
        %3048 = vmatprep.subr.mxu0 0.0
        %3049 = vmatpush1.msra.mxu0 %v1461
        %3050 = vmatprep.subr.mxu0 0.0
        %3051 = vmatpush1.msra.mxu0 %v1460
        %3052 = vmatprep.subr.mxu0 0.0
        %3053 = vmatpush1.msra.mxu0 %v1459
        %3054 = vmatprep.subr.mxu0 0.0
        %3055 = vmatpush1.msra.mxu0 %v1458
        %3056 = vmatprep.subr.mxu0 0.0
        %3057 = vmatpush1.msra.mxu0 %v1457
        %3058 = vmatprep.subr.mxu0 0.0
        %3059 = vmatpush1.msra.mxu0 %v1456
        %3060 = vmatprep.subr.mxu0 0.0
        %3061 = vmatpush1.msra.mxu0 %v1455
        %3062 = vmatprep.subr.mxu0 0.0
        %3063 = vmatpush1.msra.mxu0 %v1454
        %3064 = vmatprep.subr.mxu0 0.0
        %3065 = vmatpush1.msra.mxu0 %v1453
        %3066 = vmatprep.subr.mxu0 0.0
        %3067 = vmatpush1.msra.mxu0 %v1452
        %3068 = vmatprep.subr.mxu0 0.0
        %3069 = vmatpush1.msra.mxu0 %v1451
        %3070 = vmatprep.subr.mxu0 0.0
        %3071 = vmatpush1.msra.mxu0 %v1450
        %3072 = vmatprep.subr.mxu0 0.0
        %3073 = vmatpush2.msra.mxu0 0.0
        %3074 = vmatprep.subr.mxu0 0.0
        %3075 = vmatpush2.msra.mxu0 0.0
        %3076 = vmatprep.subr.mxu0 0.0
        %3077 = vmatpush2.msra.mxu0 0.0
        %3078 = vmatprep.subr.mxu0 0.0
        %3079 = vmatpush2.msra.mxu0 0.0
        %3080 = vmatprep.subr.mxu0 0.0
        %3081 = vmatpush2.msra.mxu0 0.0
        %3082 = vmatprep.subr.mxu0 0.0
        %3083 = vmatpush2.msra.mxu0 0.0
        %3084 = vmatprep.subr.mxu0 0.0
        %3085 = vmatpush2.msra.mxu0 0.0
        %3086 = vmatprep.subr.mxu0 0.0
        %3087 = vmatpush2.msra.mxu0 0.0
        %3088 = vmatprep.subr.mxu0 0.0
        %3089 = vmatpush2.msra.mxu0 0.0
        %3090 = vmatprep.subr.mxu0 0.0
        %3091 = vmatpush2.msra.mxu0 0.0
        %3092 = vmatprep.subr.mxu0 0.0
        %3093 = vmatpush2.msra.mxu0 0.0
        %3094 = vmatprep.subr.mxu0 0.0
        %3095 = vmatpush2.msra.mxu0 0.0
        %3096 = vmatprep.subr.mxu0 0.0
        %3097 = vmatpush2.msra.mxu0 0.0
        %3098 = vmatprep.subr.mxu0 0.0
        %3099 = vmatpush2.msra.mxu0 0.0
        %3100 = vmatprep.subr.mxu0 0.0
        %3101 = vmatpush2.msra.mxu0 0.0
        %3102 = vmatprep.subr.mxu0 0.0
        %3103 = vmatpush2.msra.mxu0 0.0
        %3104 = vmatprep.mubr.f32.mxu0 0.0
        %3105 = vmatmul.mubr.f32.gmra.mxu0 %v2783
        %v3106 = vpop.f32.mrf.mxu0
        %v3107 = vadd.f32 0.0, %v3106
        %v3108 = vpop.f32.mrf.mxu0
        %3109 = vmatprep.mubr.f32.mxu0 0.0
        %3110 = vmatmul.mubr.f32.gmra.mxu0 %v2784
        %v3111 = vpop.f32.mrf.mxu0
        %v3112 = vadd.f32 0.0, %v3111
        %v3113 = vpop.f32.mrf.mxu0
        %3114 = vmatprep.mubr.f32.mxu0 0.0
        %3115 = vmatmul.mubr.f32.gmra.mxu0 %v2785
        %v3116 = vpop.f32.mrf.mxu0
        %v3117 = vadd.f32 0.0, %v3116
        %v3118 = vpop.f32.mrf.mxu0
        %3119 = vmatprep.mubr.f32.mxu0 0.0
        %3120 = vmatmul.mubr.f32.gmra.mxu0 %v2786
        %v3121 = vpop.f32.mrf.mxu0
        %v3122 = vadd.f32 0.0, %v3121
        %v3123 = vpop.f32.mrf.mxu0
        %3124 = vmatprep.mubr.f32.mxu0 0.0
        %3125 = vmatmul.mubr.f32.gmra.mxu0 %v2787
        %v3126 = vpop.f32.mrf.mxu0
        %v3127 = vadd.f32 0.0, %v3126
        %v3128 = vpop.f32.mrf.mxu0
        %3129 = vmatprep.mubr.f32.mxu0 0.0
        %3130 = vmatmul.mubr.f32.gmra.mxu0 %v2788
        %v3131 = vpop.f32.mrf.mxu0
        %v3132 = vadd.f32 0.0, %v3131
        %v3133 = vpop.f32.mrf.mxu0
        %3134 = vmatprep.mubr.f32.mxu0 0.0
        %3135 = vmatmul.mubr.f32.gmra.mxu0 %v2789
        %v3136 = vpop.f32.mrf.mxu0
        %v3137 = vadd.f32 0.0, %v3136
        %v3138 = vpop.f32.mrf.mxu0
        %3139 = vmatprep.mubr.f32.mxu0 0.0
        %3140 = vmatmul.mubr.f32.gmra.mxu0 %v2790
        %v3141 = vpop.f32.mrf.mxu0
        %v3142 = vadd.f32 0.0, %v3141
        %v3143 = vpop.f32.mrf.mxu0
        %3144 = vmatprep.mubr.f32.mxu0 0.0
        %3145 = vmatmul.mubr.f32.gmra.mxu0 %v2791
        %v3146 = vpop.f32.mrf.mxu0
        %v3147 = vadd.f32 0.0, %v3146
        %v3148 = vpop.f32.mrf.mxu0
        %3149 = vmatprep.mubr.f32.mxu0 0.0
        %3150 = vmatmul.mubr.f32.gmra.mxu0 %v2792
        %v3151 = vpop.f32.mrf.mxu0
        %v3152 = vadd.f32 0.0, %v3151
        %v3153 = vpop.f32.mrf.mxu0
        %3154 = vmatprep.mubr.f32.mxu0 0.0
        %3155 = vmatmul.mubr.f32.gmra.mxu0 %v2793
        %v3156 = vpop.f32.mrf.mxu0
        %v3157 = vadd.f32 0.0, %v3156
        %v3158 = vpop.f32.mrf.mxu0
        %3159 = vmatprep.mubr.f32.mxu0 0.0
        %3160 = vmatmul.mubr.f32.gmra.mxu0 %v2794
        %v3161 = vpop.f32.mrf.mxu0
        %v3162 = vadd.f32 0.0, %v3161
        %v3163 = vpop.f32.mrf.mxu0
        %3164 = vmatprep.mubr.f32.mxu0 0.0
        %3165 = vmatmul.mubr.f32.gmra.mxu0 %v2795
        %v3166 = vpop.f32.mrf.mxu0
        %v3167 = vadd.f32 0.0, %v3166
        %v3168 = vpop.f32.mrf.mxu0
        %3169 = vmatprep.mubr.f32.mxu0 0.0
        %3170 = vmatmul.mubr.f32.gmra.mxu0 %v2796
        %v3171 = vpop.f32.mrf.mxu0
        %v3172 = vadd.f32 0.0, %v3171
        %v3173 = vpop.f32.mrf.mxu0
        %3174 = vmatprep.mubr.f32.mxu0 0.0
        %3175 = vmatmul.mubr.f32.gmra.mxu0 %v2797
        %v3176 = vpop.f32.mrf.mxu0
        %v3177 = vadd.f32 0.0, %v3176
        %v3178 = vpop.f32.mrf.mxu0
        %3179 = vmatprep.mubr.f32.mxu0 0.0
        %3180 = vmatmul.mubr.f32.gmra.mxu0 %v2798
        %v3181 = vpop.f32.mrf.mxu0
        %v3182 = vadd.f32 0.0, %v3181
        %v3183 = vpop.f32.mrf.mxu0
        %3184 = vdwg.mxu0
        %3185 = vmatprep.subr.mxu0 0.0
        %3186 = vmatpush1.msra.mxu0 %v1481
        %3187 = vmatprep.subr.mxu0 0.0
        %3188 = vmatpush1.msra.mxu0 %v1480
        %3189 = vmatprep.subr.mxu0 0.0
        %3190 = vmatpush1.msra.mxu0 %v1479
        %3191 = vmatprep.subr.mxu0 0.0
        %3192 = vmatpush1.msra.mxu0 %v1478
        %3193 = vmatprep.subr.mxu0 0.0
        %3194 = vmatpush1.msra.mxu0 %v1477
        %3195 = vmatprep.subr.mxu0 0.0
        %3196 = vmatpush1.msra.mxu0 %v1476
        %3197 = vmatprep.subr.mxu0 0.0
        %3198 = vmatpush1.msra.mxu0 %v1475
        %3199 = vmatprep.subr.mxu0 0.0
        %3200 = vmatpush1.msra.mxu0 %v1474
        %3201 = vmatprep.subr.mxu0 0.0
        %3202 = vmatpush1.msra.mxu0 %v1473
        %3203 = vmatprep.subr.mxu0 0.0
        %3204 = vmatpush1.msra.mxu0 %v1472
        %3205 = vmatprep.subr.mxu0 0.0
        %3206 = vmatpush1.msra.mxu0 %v1471
        %3207 = vmatprep.subr.mxu0 0.0
        %3208 = vmatpush1.msra.mxu0 %v1470
        %3209 = vmatprep.subr.mxu0 0.0
        %3210 = vmatpush1.msra.mxu0 %v1469
        %3211 = vmatprep.subr.mxu0 0.0
        %3212 = vmatpush1.msra.mxu0 %v1468
        %3213 = vmatprep.subr.mxu0 0.0
        %3214 = vmatpush1.msra.mxu0 %v1467
        %3215 = vmatprep.subr.mxu0 0.0
        %3216 = vmatpush1.msra.mxu0 %v1466
        %3217 = vmatprep.subr.mxu0 0.0
        %3218 = vmatpush2.msra.mxu0 0.0
        %3219 = vmatprep.subr.mxu0 0.0
        %3220 = vmatpush2.msra.mxu0 0.0
        %3221 = vmatprep.subr.mxu0 0.0
        %3222 = vmatpush2.msra.mxu0 0.0
        %3223 = vmatprep.subr.mxu0 0.0
        %3224 = vmatpush2.msra.mxu0 0.0
        %3225 = vmatprep.subr.mxu0 0.0
        %3226 = vmatpush2.msra.mxu0 0.0
        %3227 = vmatprep.subr.mxu0 0.0
        %3228 = vmatpush2.msra.mxu0 0.0
        %3229 = vmatprep.subr.mxu0 0.0
        %3230 = vmatpush2.msra.mxu0 0.0
        %3231 = vmatprep.subr.mxu0 0.0
        %3232 = vmatpush2.msra.mxu0 0.0
        %3233 = vmatprep.subr.mxu0 0.0
        %3234 = vmatpush2.msra.mxu0 0.0
        %3235 = vmatprep.subr.mxu0 0.0
        %3236 = vmatpush2.msra.mxu0 0.0
        %3237 = vmatprep.subr.mxu0 0.0
        %3238 = vmatpush2.msra.mxu0 0.0
        %3239 = vmatprep.subr.mxu0 0.0
        %3240 = vmatpush2.msra.mxu0 0.0
        %3241 = vmatprep.subr.mxu0 0.0
        %3242 = vmatpush2.msra.mxu0 0.0
        %3243 = vmatprep.subr.mxu0 0.0
        %3244 = vmatpush2.msra.mxu0 0.0
        %3245 = vmatprep.subr.mxu0 0.0
        %3246 = vmatpush2.msra.mxu0 0.0
        %3247 = vmatprep.subr.mxu0 0.0
        %3248 = vmatpush2.msra.mxu0 0.0
        %3249 = vmatprep.mubr.f32.mxu0 0.0
        %3250 = vmatmul.mubr.f32.gmra.mxu0 %v2799
        %v3251 = vpop.f32.mrf.mxu0
        %v3252 = vadd.f32 0.0, %v3251
        %v3253 = vpop.f32.mrf.mxu0
        %3254 = vmatprep.mubr.f32.mxu0 0.0
        %3255 = vmatmul.mubr.f32.gmra.mxu0 %v2800
        %v3256 = vpop.f32.mrf.mxu0
        %v3257 = vadd.f32 0.0, %v3256
        %v3258 = vpop.f32.mrf.mxu0
        %3259 = vmatprep.mubr.f32.mxu0 0.0
        %3260 = vmatmul.mubr.f32.gmra.mxu0 %v2801
        %v3261 = vpop.f32.mrf.mxu0
        %v3262 = vadd.f32 0.0, %v3261
        %v3263 = vpop.f32.mrf.mxu0
        %3264 = vmatprep.mubr.f32.mxu0 0.0
        %3265 = vmatmul.mubr.f32.gmra.mxu0 %v2802
        %v3266 = vpop.f32.mrf.mxu0
        %v3267 = vadd.f32 0.0, %v3266
        %v3268 = vpop.f32.mrf.mxu0
        %3269 = vmatprep.mubr.f32.mxu0 0.0
        %3270 = vmatmul.mubr.f32.gmra.mxu0 %v2803
        %v3271 = vpop.f32.mrf.mxu0
        %v3272 = vadd.f32 0.0, %v3271
        %v3273 = vpop.f32.mrf.mxu0
        %3274 = vmatprep.mubr.f32.mxu0 0.0
        %3275 = vmatmul.mubr.f32.gmra.mxu0 %v2804
        %v3276 = vpop.f32.mrf.mxu0
        %v3277 = vadd.f32 0.0, %v3276
        %v3278 = vpop.f32.mrf.mxu0
        %3279 = vmatprep.mubr.f32.mxu0 0.0
        %3280 = vmatmul.mubr.f32.gmra.mxu0 %v2805
        %v3281 = vpop.f32.mrf.mxu0
        %v3282 = vadd.f32 0.0, %v3281
        %v3283 = vpop.f32.mrf.mxu0
        %3284 = vmatprep.mubr.f32.mxu0 0.0
        %3285 = vmatmul.mubr.f32.gmra.mxu0 %v2806
        %v3286 = vpop.f32.mrf.mxu0
        %v3287 = vadd.f32 0.0, %v3286
        %v3288 = vpop.f32.mrf.mxu0
        %3289 = vmatprep.mubr.f32.mxu0 0.0
        %3290 = vmatmul.mubr.f32.gmra.mxu0 %v2807
        %v3291 = vpop.f32.mrf.mxu0
        %v3292 = vadd.f32 0.0, %v3291
        %v3293 = vpop.f32.mrf.mxu0
        %3294 = vmatprep.mubr.f32.mxu0 0.0
        %3295 = vmatmul.mubr.f32.gmra.mxu0 %v2808
        %v3296 = vpop.f32.mrf.mxu0
        %v3297 = vadd.f32 0.0, %v3296
        %v3298 = vpop.f32.mrf.mxu0
        %3299 = vmatprep.mubr.f32.mxu0 0.0
        %3300 = vmatmul.mubr.f32.gmra.mxu0 %v2809
        %v3301 = vpop.f32.mrf.mxu0
        %v3302 = vadd.f32 0.0, %v3301
        %v3303 = vpop.f32.mrf.mxu0
        %3304 = vmatprep.mubr.f32.mxu0 0.0
        %3305 = vmatmul.mubr.f32.gmra.mxu0 %v2810
        %v3306 = vpop.f32.mrf.mxu0
        %v3307 = vadd.f32 0.0, %v3306
        %v3308 = vpop.f32.mrf.mxu0
        %3309 = vmatprep.mubr.f32.mxu0 0.0
        %3310 = vmatmul.mubr.f32.gmra.mxu0 %v2811
        %v3311 = vpop.f32.mrf.mxu0
        %v3312 = vadd.f32 0.0, %v3311
        %v3313 = vpop.f32.mrf.mxu0
        %3314 = vmatprep.mubr.f32.mxu0 0.0
        %3315 = vmatmul.mubr.f32.gmra.mxu0 %v2812
        %v3316 = vpop.f32.mrf.mxu0
        %v3317 = vadd.f32 0.0, %v3316
        %v3318 = vpop.f32.mrf.mxu0
        %3319 = vmatprep.mubr.f32.mxu0 0.0
        %3320 = vmatmul.mubr.f32.gmra.mxu0 %v2813
        %v3321 = vpop.f32.mrf.mxu0
        %v3322 = vadd.f32 0.0, %v3321
        %v3323 = vpop.f32.mrf.mxu0
        %3324 = vmatprep.mubr.f32.mxu0 0.0
        %3325 = vmatmul.mubr.f32.gmra.mxu0 %v2814
        %v3326 = vpop.f32.mrf.mxu0
        %v3327 = vadd.f32 0.0, %v3326
        %v3328 = vpop.f32.mrf.mxu0
        %3329 = vdwg.mxu0
        %3330 = vmatprep.subr.mxu0 0.0
        %3331 = vmatpush1.msra.mxu0 %v1497
        %3332 = vmatprep.subr.mxu0 0.0
        %3333 = vmatpush1.msra.mxu0 %v1496
        %3334 = vmatprep.subr.mxu0 0.0
        %3335 = vmatpush1.msra.mxu0 %v1495
        %3336 = vmatprep.subr.mxu0 0.0
        %3337 = vmatpush1.msra.mxu0 %v1494
        %3338 = vmatprep.subr.mxu0 0.0
        %3339 = vmatpush1.msra.mxu0 %v1493
        %3340 = vmatprep.subr.mxu0 0.0
        %3341 = vmatpush1.msra.mxu0 %v1492
        %3342 = vmatprep.subr.mxu0 0.0
        %3343 = vmatpush1.msra.mxu0 %v1491
        %3344 = vmatprep.subr.mxu0 0.0
        %3345 = vmatpush1.msra.mxu0 %v1490
        %3346 = vmatprep.subr.mxu0 0.0
        %3347 = vmatpush1.msra.mxu0 %v1489
        %3348 = vmatprep.subr.mxu0 0.0
        %3349 = vmatpush1.msra.mxu0 %v1488
        %3350 = vmatprep.subr.mxu0 0.0
        %3351 = vmatpush1.msra.mxu0 %v1487
        %3352 = vmatprep.subr.mxu0 0.0
        %3353 = vmatpush1.msra.mxu0 %v1486
        %3354 = vmatprep.subr.mxu0 0.0
        %3355 = vmatpush1.msra.mxu0 %v1485
        %3356 = vmatprep.subr.mxu0 0.0
        %3357 = vmatpush1.msra.mxu0 %v1484
        %3358 = vmatprep.subr.mxu0 0.0
        %3359 = vmatpush1.msra.mxu0 %v1483
        %3360 = vmatprep.subr.mxu0 0.0
        %3361 = vmatpush1.msra.mxu0 %v1482
        %3362 = vmatprep.subr.mxu0 0.0
        %3363 = vmatpush2.msra.mxu0 0.0
        %3364 = vmatprep.subr.mxu0 0.0
        %3365 = vmatpush2.msra.mxu0 0.0
        %3366 = vmatprep.subr.mxu0 0.0
        %3367 = vmatpush2.msra.mxu0 0.0
        %3368 = vmatprep.subr.mxu0 0.0
        %3369 = vmatpush2.msra.mxu0 0.0
        %3370 = vmatprep.subr.mxu0 0.0
        %3371 = vmatpush2.msra.mxu0 0.0
        %3372 = vmatprep.subr.mxu0 0.0
        %3373 = vmatpush2.msra.mxu0 0.0
        %3374 = vmatprep.subr.mxu0 0.0
        %3375 = vmatpush2.msra.mxu0 0.0
        %3376 = vmatprep.subr.mxu0 0.0
        %3377 = vmatpush2.msra.mxu0 0.0
        %3378 = vmatprep.subr.mxu0 0.0
        %3379 = vmatpush2.msra.mxu0 0.0
        %3380 = vmatprep.subr.mxu0 0.0
        %3381 = vmatpush2.msra.mxu0 0.0
        %3382 = vmatprep.subr.mxu0 0.0
        %3383 = vmatpush2.msra.mxu0 0.0
        %3384 = vmatprep.subr.mxu0 0.0
        %3385 = vmatpush2.msra.mxu0 0.0
        %3386 = vmatprep.subr.mxu0 0.0
        %3387 = vmatpush2.msra.mxu0 0.0
        %3388 = vmatprep.subr.mxu0 0.0
        %3389 = vmatpush2.msra.mxu0 0.0
        %3390 = vmatprep.subr.mxu0 0.0
        %3391 = vmatpush2.msra.mxu0 0.0
        %3392 = vmatprep.subr.mxu0 0.0
        %3393 = vmatpush2.msra.mxu0 0.0
        %3394 = vmatprep.mubr.f32.mxu0 0.0
        %3395 = vmatmul.mubr.f32.gmra.mxu0 %v2815
        %v3396 = vpop.f32.mrf.mxu0
        %v3397 = vadd.f32 0.0, %v3396
        %v3398 = vpop.f32.mrf.mxu0
        %3399 = vmatprep.mubr.f32.mxu0 0.0
        %3400 = vmatmul.mubr.f32.gmra.mxu0 %v2816
        %v3401 = vpop.f32.mrf.mxu0
        %v3402 = vadd.f32 0.0, %v3401
        %v3403 = vpop.f32.mrf.mxu0
        %3404 = vmatprep.mubr.f32.mxu0 0.0
        %3405 = vmatmul.mubr.f32.gmra.mxu0 %v2817
        %v3406 = vpop.f32.mrf.mxu0
        %v3407 = vadd.f32 0.0, %v3406
        %v3408 = vpop.f32.mrf.mxu0
        %3409 = vmatprep.mubr.f32.mxu0 0.0
        %3410 = vmatmul.mubr.f32.gmra.mxu0 %v2818
        %v3411 = vpop.f32.mrf.mxu0
        %v3412 = vadd.f32 0.0, %v3411
        %v3413 = vpop.f32.mrf.mxu0
        %3414 = vmatprep.mubr.f32.mxu0 0.0
        %3415 = vmatmul.mubr.f32.gmra.mxu0 %v2819
        %v3416 = vpop.f32.mrf.mxu0
        %v3417 = vadd.f32 0.0, %v3416
        %v3418 = vpop.f32.mrf.mxu0
        %3419 = vmatprep.mubr.f32.mxu0 0.0
        %3420 = vmatmul.mubr.f32.gmra.mxu0 %v2820
        %v3421 = vpop.f32.mrf.mxu0
        %v3422 = vadd.f32 0.0, %v3421
        %v3423 = vpop.f32.mrf.mxu0
        %3424 = vmatprep.mubr.f32.mxu0 0.0
        %3425 = vmatmul.mubr.f32.gmra.mxu0 %v2821
        %v3426 = vpop.f32.mrf.mxu0
        %v3427 = vadd.f32 0.0, %v3426
        %v3428 = vpop.f32.mrf.mxu0
        %3429 = vmatprep.mubr.f32.mxu0 0.0
        %3430 = vmatmul.mubr.f32.gmra.mxu0 %v2822
        %v3431 = vpop.f32.mrf.mxu0
        %v3432 = vadd.f32 0.0, %v3431
        %v3433 = vpop.f32.mrf.mxu0
        %3434 = vmatprep.mubr.f32.mxu0 0.0
        %3435 = vmatmul.mubr.f32.gmra.mxu0 %v2823
        %v3436 = vpop.f32.mrf.mxu0
        %v3437 = vadd.f32 0.0, %v3436
        %v3438 = vpop.f32.mrf.mxu0
        %3439 = vmatprep.mubr.f32.mxu0 0.0
        %3440 = vmatmul.mubr.f32.gmra.mxu0 %v2824
        %v3441 = vpop.f32.mrf.mxu0
        %v3442 = vadd.f32 0.0, %v3441
        %v3443 = vpop.f32.mrf.mxu0
        %3444 = vmatprep.mubr.f32.mxu0 0.0
        %3445 = vmatmul.mubr.f32.gmra.mxu0 %v2825
        %v3446 = vpop.f32.mrf.mxu0
        %v3447 = vadd.f32 0.0, %v3446
        %v3448 = vpop.f32.mrf.mxu0
        %3449 = vmatprep.mubr.f32.mxu0 0.0
        %3450 = vmatmul.mubr.f32.gmra.mxu0 %v2826
        %v3451 = vpop.f32.mrf.mxu0
        %v3452 = vadd.f32 0.0, %v3451
        %v3453 = vpop.f32.mrf.mxu0
        %3454 = vmatprep.mubr.f32.mxu0 0.0
        %3455 = vmatmul.mubr.f32.gmra.mxu0 %v2827
        %v3456 = vpop.f32.mrf.mxu0
        %v3457 = vadd.f32 0.0, %v3456
        %v3458 = vpop.f32.mrf.mxu0
        %3459 = vmatprep.mubr.f32.mxu0 0.0
        %3460 = vmatmul.mubr.f32.gmra.mxu0 %v2828
        %v3461 = vpop.f32.mrf.mxu0
        %v3462 = vadd.f32 0.0, %v3461
        %v3463 = vpop.f32.mrf.mxu0
        %3464 = vmatprep.mubr.f32.mxu0 0.0
        %3465 = vmatmul.mubr.f32.gmra.mxu0 %v2829
        %v3466 = vpop.f32.mrf.mxu0
        %v3467 = vadd.f32 0.0, %v3466
        %v3468 = vpop.f32.mrf.mxu0
        %3469 = vmatprep.mubr.f32.mxu0 0.0
        %3470 = vmatmul.mubr.f32.gmra.mxu0 %v2830
        %v3471 = vpop.f32.mrf.mxu0
        %v3472 = vadd.f32 0.0, %v3471
        %v3473 = vpop.f32.mrf.mxu0
        %3474 = vdwg.mxu0
        %v3475 = vadd.f32 %v2831, %v2962
        %v3476 = vadd.f32 %v2832, %v2967
        %v3477 = vadd.f32 %v2833, %v2972
        %v3478 = vadd.f32 %v2834, %v2977
        %v3479 = vadd.f32 %v2835, %v2982
        %v3480 = vadd.f32 %v2836, %v2987
        %v3481 = vadd.f32 %v2837, %v2992
        %v3482 = vadd.f32 %v2838, %v2997
        %v3483 = vadd.f32 %v2839, %v3002
        %v3484 = vadd.f32 %v2840, %v3007
        %v3485 = vadd.f32 %v2841, %v3012
        %v3486 = vadd.f32 %v2842, %v3017
        %v3487 = vadd.f32 %v2843, %v3022
        %v3488 = vadd.f32 %v2844, %v3027
        %v3489 = vadd.f32 %v2845, %v3032
        %v3490 = vadd.f32 %v2846, %v3037
        %v3491 = vadd.f32 %v2847, %v3107
        %v3492 = vadd.f32 %v2848, %v3112
        %v3493 = vadd.f32 %v2849, %v3117
        %v3494 = vadd.f32 %v2850, %v3122
        %v3495 = vadd.f32 %v2851, %v3127
        %v3496 = vadd.f32 %v2852, %v3132
        %v3497 = vadd.f32 %v2853, %v3137
        %v3498 = vadd.f32 %v2854, %v3142
        %v3499 = vadd.f32 %v2855, %v3147
        %v3500 = vadd.f32 %v2856, %v3152
        %v3501 = vadd.f32 %v2857, %v3157
        %v3502 = vadd.f32 %v2858, %v3162
        %v3503 = vadd.f32 %v2859, %v3167
        %v3504 = vadd.f32 %v2860, %v3172
        %v3505 = vadd.f32 %v2861, %v3177
        %v3506 = vadd.f32 %v2862, %v3182
        %v3507 = vadd.f32 %v2863, %v3252
        %v3508 = vadd.f32 %v2864, %v3257
        %v3509 = vadd.f32 %v2865, %v3262
        %v3510 = vadd.f32 %v2866, %v3267
        %v3511 = vadd.f32 %v2867, %v3272
        %v3512 = vadd.f32 %v2868, %v3277
        %v3513 = vadd.f32 %v2869, %v3282
        %v3514 = vadd.f32 %v2870, %v3287
        %v3515 = vadd.f32 %v2871, %v3292
        %v3516 = vadd.f32 %v2872, %v3297
        %v3517 = vadd.f32 %v2873, %v3302
        %v3518 = vadd.f32 %v2874, %v3307
        %v3519 = vadd.f32 %v2875, %v3312
        %v3520 = vadd.f32 %v2876, %v3317
        %v3521 = vadd.f32 %v2877, %v3322
        %v3522 = vadd.f32 %v2878, %v3327
        %v3523 = vadd.f32 %v2879, %v3397
        %v3524 = vadd.f32 %v2880, %v3402
        %v3525 = vadd.f32 %v2881, %v3407
        %v3526 = vadd.f32 %v2882, %v3412
        %v3527 = vadd.f32 %v2883, %v3417
        %v3528 = vadd.f32 %v2884, %v3422
        %v3529 = vadd.f32 %v2885, %v3427
        %v3530 = vadd.f32 %v2886, %v3432
        %v3531 = vadd.f32 %v2887, %v3437
        %v3532 = vadd.f32 %v2888, %v3442
        %v3533 = vadd.f32 %v2889, %v3447
        %v3534 = vadd.f32 %v2890, %v3452
        %v3535 = vadd.f32 %v2891, %v3457
        %v3536 = vadd.f32 %v2892, %v3462
        %v3537 = vadd.f32 %v2893, %v3467
        %v3538 = vadd.f32 %v2894, %v3472
        %3539 = vst.msk [vmem:[#allocation2] sm:$0xff] %vm1498, %v3475
        %3540 = vst.msk [vmem:[#allocation2 + $0x8] sm:$0xff] %vm1498, %v3476
        %3541 = vst.msk [vmem:[#allocation2 + $0x10] sm:$0xff] %vm1498, %v3477
        %3542 = vst.msk [vmem:[#allocation2 + $0x18] sm:$0xff] %vm1498, %v3478
        %3543 = vst.msk [vmem:[#allocation2 + $0x20] sm:$0xff] %vm1498, %v3479
        %3544 = vst.msk [vmem:[#allocation2 + $0x28] sm:$0xff] %vm1498, %v3480
        %3545 = vst.msk [vmem:[#allocation2 + $0x30] sm:$0xff] %vm1498, %v3481
        %3546 = vst.msk [vmem:[#allocation2 + $0x38] sm:$0xff] %vm1498, %v3482
        %3547 = vst.msk [vmem:[#allocation2 + $0x40] sm:$0xff] %vm1498, %v3483
        %3548 = vst.msk [vmem:[#allocation2 + $0x48] sm:$0xff] %vm1498, %v3484
        %3549 = vst.msk [vmem:[#allocation2 + $0x50] sm:$0xff] %vm1498, %v3485
        %3550 = vst.msk [vmem:[#allocation2 + $0x58] sm:$0xff] %vm1498, %v3486
        %3551 = vst.msk [vmem:[#allocation2 + $0x60] sm:$0xff] %vm1498, %v3487
        %3552 = vst.msk [vmem:[#allocation2 + $0x68] sm:$0xff] %vm1498, %v3488
        %3553 = vst.msk [vmem:[#allocation2 + $0x70] sm:$0xff] %vm1498, %v3489
        %3554 = vst.msk [vmem:[#allocation2 + $0x78] sm:$0xff] %vm1498, %v3490
        %3555 = vst.msk [vmem:[#allocation2 + $0x80] sm:$0xff] %vm1498, %v3491
        %3556 = vst.msk [vmem:[#allocation2 + $0x88] sm:$0xff] %vm1498, %v3492
        %3557 = vst.msk [vmem:[#allocation2 + $0x90] sm:$0xff] %vm1498, %v3493
        %3558 = vst.msk [vmem:[#allocation2 + $0x98] sm:$0xff] %vm1498, %v3494
        %3559 = vst.msk [vmem:[#allocation2 + $0xa0] sm:$0xff] %vm1498, %v3495
        %3560 = vst.msk [vmem:[#allocation2 + $0xa8] sm:$0xff] %vm1498, %v3496
        %3561 = vst.msk [vmem:[#allocation2 + $0xb0] sm:$0xff] %vm1498, %v3497
        %3562 = vst.msk [vmem:[#allocation2 + $0xb8] sm:$0xff] %vm1498, %v3498
        %3563 = vst.msk [vmem:[#allocation2 + $0xc0] sm:$0xff] %vm1498, %v3499
        %3564 = vst.msk [vmem:[#allocation2 + $0xc8] sm:$0xff] %vm1498, %v3500
        %3565 = vst.msk [vmem:[#allocation2 + $0xd0] sm:$0xff] %vm1498, %v3501
        %3566 = vst.msk [vmem:[#allocation2 + $0xd8] sm:$0xff] %vm1498, %v3502
        %3567 = vst.msk [vmem:[#allocation2 + $0xe0] sm:$0xff] %vm1498, %v3503
        %3568 = vst.msk [vmem:[#allocation2 + $0xe8] sm:$0xff] %vm1498, %v3504
        %3569 = vst.msk [vmem:[#allocation2 + $0xf0] sm:$0xff] %vm1498, %v3505
        %3570 = vst.msk [vmem:[#allocation2 + $0xf8] sm:$0xff] %vm1498, %v3506
        %3571 = vst.msk [vmem:[#allocation2 + $0x100] sm:$0xff] %vm1498, %v3507
        %3572 = vst.msk [vmem:[#allocation2 + $0x108] sm:$0xff] %vm1498, %v3508
        %3573 = vst.msk [vmem:[#allocation2 + $0x110] sm:$0xff] %vm1498, %v3509
        %3574 = vst.msk [vmem:[#allocation2 + $0x118] sm:$0xff] %vm1498, %v3510
        %3575 = vst.msk [vmem:[#allocation2 + $0x120] sm:$0xff] %vm1498, %v3511
        %3576 = vst.msk [vmem:[#allocation2 + $0x128] sm:$0xff] %vm1498, %v3512
        %3577 = vst.msk [vmem:[#allocation2 + $0x130] sm:$0xff] %vm1498, %v3513
        %3578 = vst.msk [vmem:[#allocation2 + $0x138] sm:$0xff] %vm1498, %v3514
        %3579 = vst.msk [vmem:[#allocation2 + $0x140] sm:$0xff] %vm1498, %v3515
        %3580 = vst.msk [vmem:[#allocation2 + $0x148] sm:$0xff] %vm1498, %v3516
        %3581 = vst.msk [vmem:[#allocation2 + $0x150] sm:$0xff] %vm1498, %v3517
        %3582 = vst.msk [vmem:[#allocation2 + $0x158] sm:$0xff] %vm1498, %v3518
        %3583 = vst.msk [vmem:[#allocation2 + $0x160] sm:$0xff] %vm1498, %v3519
        %3584 = vst.msk [vmem:[#allocation2 + $0x168] sm:$0xff] %vm1498, %v3520
        %3585 = vst.msk [vmem:[#allocation2 + $0x170] sm:$0xff] %vm1498, %v3521
        %3586 = vst.msk [vmem:[#allocation2 + $0x178] sm:$0xff] %vm1498, %v3522
        %3587 = vst.msk [vmem:[#allocation2 + $0x180] sm:$0xff] %vm1498, %v3523
        %3588 = vst.msk [vmem:[#allocation2 + $0x188] sm:$0xff] %vm1498, %v3524
        %3589 = vst.msk [vmem:[#allocation2 + $0x190] sm:$0xff] %vm1498, %v3525
        %3590 = vst.msk [vmem:[#allocation2 + $0x198] sm:$0xff] %vm1498, %v3526
        %3591 = vst.msk [vmem:[#allocation2 + $0x1a0] sm:$0xff] %vm1498, %v3527
        %3592 = vst.msk [vmem:[#allocation2 + $0x1a8] sm:$0xff] %vm1498, %v3528
        %3593 = vst.msk [vmem:[#allocation2 + $0x1b0] sm:$0xff] %vm1498, %v3529
        %3594 = vst.msk [vmem:[#allocation2 + $0x1b8] sm:$0xff] %vm1498, %v3530
        %3595 = vst.msk [vmem:[#allocation2 + $0x1c0] sm:$0xff] %vm1498, %v3531
        %3596 = vst.msk [vmem:[#allocation2 + $0x1c8] sm:$0xff] %vm1498, %v3532
        %3597 = vst.msk [vmem:[#allocation2 + $0x1d0] sm:$0xff] %vm1498, %v3533
        %3598 = vst.msk [vmem:[#allocation2 + $0x1d8] sm:$0xff] %vm1498, %v3534
        %3599 = vst.msk [vmem:[#allocation2 + $0x1e0] sm:$0xff] %vm1498, %v3535
        %3600 = vst.msk [vmem:[#allocation2 + $0x1e8] sm:$0xff] %vm1498, %v3536
        %3601 = vst.msk [vmem:[#allocation2 + $0x1f0] sm:$0xff] %vm1498, %v3537
        %3602 = vst.msk [vmem:[#allocation2 + $0x1f8] sm:$0xff] %vm1498, %v3538
        %p3603 = scmp.eq.s32.totalorder %s24, 1
        // Predicated region
        $region163: #{tpu_custom_call.1} parent=145 // pred_check
          %p3604 = pneg %p3603
        $region164: #{tpu_custom_call.1} parent=145 // pred_check_branch
          %3606 = sbr.rel (%p3604) target = $region166
        $region165: #{tpu_custom_call.1} parent=145 // pred_region
          %v3607 = vld [vmem:[#allocation2] sm:$0xff]
          %v3608 = vld [vmem:[#allocation2 + $0x8] sm:$0xff]
          %v3609 = vld [vmem:[#allocation2 + $0x10] sm:$0xff]
          %v3610 = vld [vmem:[#allocation2 + $0x18] sm:$0xff]
          %v3611 = vld [vmem:[#allocation2 + $0x20] sm:$0xff]
          %v3612 = vld [vmem:[#allocation2 + $0x28] sm:$0xff]
          %v3613 = vld [vmem:[#allocation2 + $0x30] sm:$0xff]
          %v3614 = vld [vmem:[#allocation2 + $0x38] sm:$0xff]
          %v3615 = vld [vmem:[#allocation2 + $0x40] sm:$0xff]
          %v3616 = vld [vmem:[#allocation2 + $0x48] sm:$0xff]
          %v3617 = vld [vmem:[#allocation2 + $0x50] sm:$0xff]
          %v3618 = vld [vmem:[#allocation2 + $0x58] sm:$0xff]
          %v3619 = vld [vmem:[#allocation2 + $0x60] sm:$0xff]
          %v3620 = vld [vmem:[#allocation2 + $0x68] sm:$0xff]
          %v3621 = vld [vmem:[#allocation2 + $0x70] sm:$0xff]
          %v3622 = vld [vmem:[#allocation2 + $0x78] sm:$0xff]
          %v3623 = vld [vmem:[#allocation2 + $0x80] sm:$0xff]
          %v3624 = vld [vmem:[#allocation2 + $0x88] sm:$0xff]
          %v3625 = vld [vmem:[#allocation2 + $0x90] sm:$0xff]
          %v3626 = vld [vmem:[#allocation2 + $0x98] sm:$0xff]
          %v3627 = vld [vmem:[#allocation2 + $0xa0] sm:$0xff]
          %v3628 = vld [vmem:[#allocation2 + $0xa8] sm:$0xff]
          %v3629 = vld [vmem:[#allocation2 + $0xb0] sm:$0xff]
          %v3630 = vld [vmem:[#allocation2 + $0xb8] sm:$0xff]
          %v3631 = vld [vmem:[#allocation2 + $0xc0] sm:$0xff]
          %v3632 = vld [vmem:[#allocation2 + $0xc8] sm:$0xff]
          %v3633 = vld [vmem:[#allocation2 + $0xd0] sm:$0xff]
          %v3634 = vld [vmem:[#allocation2 + $0xd8] sm:$0xff]
          %v3635 = vld [vmem:[#allocation2 + $0xe0] sm:$0xff]
          %v3636 = vld [vmem:[#allocation2 + $0xe8] sm:$0xff]
          %v3637 = vld [vmem:[#allocation2 + $0xf0] sm:$0xff]
          %v3638 = vld [vmem:[#allocation2 + $0xf8] sm:$0xff]
          %v3639 = vld [vmem:[#allocation2 + $0x100] sm:$0xff]
          %v3640 = vld [vmem:[#allocation2 + $0x108] sm:$0xff]
          %v3641 = vld [vmem:[#allocation2 + $0x110] sm:$0xff]
          %v3642 = vld [vmem:[#allocation2 + $0x118] sm:$0xff]
          %v3643 = vld [vmem:[#allocation2 + $0x120] sm:$0xff]
          %v3644 = vld [vmem:[#allocation2 + $0x128] sm:$0xff]
          %v3645 = vld [vmem:[#allocation2 + $0x130] sm:$0xff]
          %v3646 = vld [vmem:[#allocation2 + $0x138] sm:$0xff]
          %v3647 = vld [vmem:[#allocation2 + $0x140] sm:$0xff]
          %v3648 = vld [vmem:[#allocation2 + $0x148] sm:$0xff]
          %v3649 = vld [vmem:[#allocation2 + $0x150] sm:$0xff]
          %v3650 = vld [vmem:[#allocation2 + $0x158] sm:$0xff]
          %v3651 = vld [vmem:[#allocation2 + $0x160] sm:$0xff]
          %v3652 = vld [vmem:[#allocation2 + $0x168] sm:$0xff]
          %v3653 = vld [vmem:[#allocation2 + $0x170] sm:$0xff]
          %v3654 = vld [vmem:[#allocation2 + $0x178] sm:$0xff]
          %v3655 = vld [vmem:[#allocation2 + $0x180] sm:$0xff]
          %v3656 = vld [vmem:[#allocation2 + $0x188] sm:$0xff]
          %v3657 = vld [vmem:[#allocation2 + $0x190] sm:$0xff]
          %v3658 = vld [vmem:[#allocation2 + $0x198] sm:$0xff]
          %v3659 = vld [vmem:[#allocation2 + $0x1a0] sm:$0xff]
          %v3660 = vld [vmem:[#allocation2 + $0x1a8] sm:$0xff]
          %v3661 = vld [vmem:[#allocation2 + $0x1b0] sm:$0xff]
          %v3662 = vld [vmem:[#allocation2 + $0x1b8] sm:$0xff]
          %v3663 = vld [vmem:[#allocation2 + $0x1c0] sm:$0xff]
          %v3664 = vld [vmem:[#allocation2 + $0x1c8] sm:$0xff]
          %v3665 = vld [vmem:[#allocation2 + $0x1d0] sm:$0xff]
          %v3666 = vld [vmem:[#allocation2 + $0x1d8] sm:$0xff]
          %v3667 = vld [vmem:[#allocation2 + $0x1e0] sm:$0xff]
          %v3668 = vld [vmem:[#allocation2 + $0x1e8] sm:$0xff]
          %v3669 = vld [vmem:[#allocation2 + $0x1f0] sm:$0xff]
          %v3670 = vld [vmem:[#allocation2 + $0x1f8] sm:$0xff]
          %v3671 = vld [vmem:[%s4] sm:$0xff]
          %v3672 = vld [vmem:[%s4 + $0x8] sm:$0xff]
          %v3673 = vld [vmem:[%s4 + $0x10] sm:$0xff]
          %v3674 = vld [vmem:[%s4 + $0x18] sm:$0xff]
          %v3675 = vld [vmem:[%s4 + $0x20] sm:$0xff]
          %v3676 = vld [vmem:[%s4 + $0x28] sm:$0xff]
          %v3677 = vld [vmem:[%s4 + $0x30] sm:$0xff]
          %v3678 = vld [vmem:[%s4 + $0x38] sm:$0xff]
          %v3680 = vsel %vm1498, %v3607, 0
          %v3683 = vsel %vm1498, %v3608, 0
          %v3686 = vsel %vm1498, %v3609, 0
          %v3689 = vsel %vm1498, %v3610, 0
          %v3692 = vsel %vm1498, %v3611, 0
          %v3695 = vsel %vm1498, %v3612, 0
          %v3698 = vsel %vm1498, %v3613, 0
          %v3701 = vsel %vm1498, %v3614, 0
          %v3704 = vsel %vm1498, %v3615, 0
          %v3707 = vsel %vm1498, %v3616, 0
          %v3710 = vsel %vm1498, %v3617, 0
          %v3713 = vsel %vm1498, %v3618, 0
          %v3716 = vsel %vm1498, %v3619, 0
          %v3719 = vsel %vm1498, %v3620, 0
          %v3722 = vsel %vm1498, %v3621, 0
          %v3725 = vsel %vm1498, %v3622, 0
          %3727 = vmatprep.subr.mxu0 0.0
          %3728 = vmatpush1.msra.mxu0 0.0
          %3729 = vmatprep.subr.mxu0 0.0
          %3730 = vmatpush1.msra.mxu0 0.0
          %3731 = vmatprep.subr.mxu0 0.0
          %3732 = vmatpush1.msra.mxu0 0.0
          %3733 = vmatprep.subr.mxu0 0.0
          %3734 = vmatpush1.msra.mxu0 0.0
          %3735 = vmatprep.subr.mxu0 0.0
          %3736 = vmatpush1.msra.mxu0 0.0
          %3737 = vmatprep.subr.mxu0 0.0
          %3738 = vmatpush1.msra.mxu0 0.0
          %3739 = vmatprep.subr.mxu0 0.0
          %3740 = vmatpush1.msra.mxu0 0.0
          %3741 = vmatprep.subr.mxu0 0.0
          %3742 = vmatpush1.msra.mxu0 0.0
          %3743 = vmatprep.subr.mxu0 0.0
          %3744 = vmatpush1.msra.mxu0 0.0
          %3745 = vmatprep.subr.mxu0 0.0
          %3746 = vmatpush1.msra.mxu0 0.0
          %3747 = vmatprep.subr.mxu0 0.0
          %3748 = vmatpush1.msra.mxu0 0.0
          %3749 = vmatprep.subr.mxu0 0.0
          %3750 = vmatpush1.msra.mxu0 0.0
          %3751 = vmatprep.subr.mxu0 0.0
          %3752 = vmatpush1.msra.mxu0 0.0
          %3753 = vmatprep.subr.mxu0 0.0
          %3754 = vmatpush1.msra.mxu0 0.0
          %3755 = vmatprep.subr.mxu0 0.0
          %3756 = vmatpush1.msra.mxu0 %v3672
          %3757 = vmatprep.subr.mxu0 0.0
          %3758 = vmatpush1.msra.mxu0 %v3671
          %3759 = vmatprep.subr.mxu0 0.0
          %3760 = vmatpush2.msra.mxu0 0.0
          %3761 = vmatprep.subr.mxu0 0.0
          %3762 = vmatpush2.msra.mxu0 0.0
          %3763 = vmatprep.subr.mxu0 0.0
          %3764 = vmatpush2.msra.mxu0 0.0
          %3765 = vmatprep.subr.mxu0 0.0
          %3766 = vmatpush2.msra.mxu0 0.0
          %3767 = vmatprep.subr.mxu0 0.0
          %3768 = vmatpush2.msra.mxu0 0.0
          %3769 = vmatprep.subr.mxu0 0.0
          %3770 = vmatpush2.msra.mxu0 0.0
          %3771 = vmatprep.subr.mxu0 0.0
          %3772 = vmatpush2.msra.mxu0 0.0
          %3773 = vmatprep.subr.mxu0 0.0
          %3774 = vmatpush2.msra.mxu0 0.0
          %3775 = vmatprep.subr.mxu0 0.0
          %3776 = vmatpush2.msra.mxu0 0.0
          %3777 = vmatprep.subr.mxu0 0.0
          %3778 = vmatpush2.msra.mxu0 0.0
          %3779 = vmatprep.subr.mxu0 0.0
          %3780 = vmatpush2.msra.mxu0 0.0
          %3781 = vmatprep.subr.mxu0 0.0
          %3782 = vmatpush2.msra.mxu0 0.0
          %3783 = vmatprep.subr.mxu0 0.0
          %3784 = vmatpush2.msra.mxu0 0.0
          %3785 = vmatprep.subr.mxu0 0.0
          %3786 = vmatpush2.msra.mxu0 0.0
          %3787 = vmatprep.subr.mxu0 0.0
          %3788 = vmatpush2.msra.mxu0 0.0
          %3789 = vmatprep.subr.mxu0 0.0
          %3790 = vmatpush2.msra.mxu0 0.0
          %3791 = vmatprep.mubr.f32.mxu0 0.0
          %3792 = vmatmul.mubr.f32.gmra.mxu0 %v3680
          %v3793 = vpop.f32.mrf.mxu0
          %v3794 = vadd.f32 0.0, %v3793
          %v3795 = vpop.f32.mrf.mxu0
          %3796 = vmatprep.mubr.f32.mxu0 0.0
          %3797 = vmatmul.mubr.f32.gmra.mxu0 %v3683
          %v3798 = vpop.f32.mrf.mxu0
          %v3799 = vadd.f32 0.0, %v3798
          %v3800 = vpop.f32.mrf.mxu0
          %3801 = vmatprep.mubr.f32.mxu0 0.0
          %3802 = vmatmul.mubr.f32.gmra.mxu0 %v3686
          %v3803 = vpop.f32.mrf.mxu0
          %v3804 = vadd.f32 0.0, %v3803
          %v3805 = vpop.f32.mrf.mxu0
          %3806 = vmatprep.mubr.f32.mxu0 0.0
          %3807 = vmatmul.mubr.f32.gmra.mxu0 %v3689
          %v3808 = vpop.f32.mrf.mxu0
          %v3809 = vadd.f32 0.0, %v3808
          %v3810 = vpop.f32.mrf.mxu0
          %3811 = vmatprep.mubr.f32.mxu0 0.0
          %3812 = vmatmul.mubr.f32.gmra.mxu0 %v3692
          %v3813 = vpop.f32.mrf.mxu0
          %v3814 = vadd.f32 0.0, %v3813
          %v3815 = vpop.f32.mrf.mxu0
          %3816 = vmatprep.mubr.f32.mxu0 0.0
          %3817 = vmatmul.mubr.f32.gmra.mxu0 %v3695
          %v3818 = vpop.f32.mrf.mxu0
          %v3819 = vadd.f32 0.0, %v3818
          %v3820 = vpop.f32.mrf.mxu0
          %3821 = vmatprep.mubr.f32.mxu0 0.0
          %3822 = vmatmul.mubr.f32.gmra.mxu0 %v3698
          %v3823 = vpop.f32.mrf.mxu0
          %v3824 = vadd.f32 0.0, %v3823
          %v3825 = vpop.f32.mrf.mxu0
          %3826 = vmatprep.mubr.f32.mxu0 0.0
          %3827 = vmatmul.mubr.f32.gmra.mxu0 %v3701
          %v3828 = vpop.f32.mrf.mxu0
          %v3829 = vadd.f32 0.0, %v3828
          %v3830 = vpop.f32.mrf.mxu0
          %3831 = vmatprep.mubr.f32.mxu0 0.0
          %3832 = vmatmul.mubr.f32.gmra.mxu0 %v3704
          %v3833 = vpop.f32.mrf.mxu0
          %v3834 = vadd.f32 0.0, %v3833
          %v3835 = vpop.f32.mrf.mxu0
          %3836 = vmatprep.mubr.f32.mxu0 0.0
          %3837 = vmatmul.mubr.f32.gmra.mxu0 %v3707
          %v3838 = vpop.f32.mrf.mxu0
          %v3839 = vadd.f32 0.0, %v3838
          %v3840 = vpop.f32.mrf.mxu0
          %3841 = vmatprep.mubr.f32.mxu0 0.0
          %3842 = vmatmul.mubr.f32.gmra.mxu0 %v3710
          %v3843 = vpop.f32.mrf.mxu0
          %v3844 = vadd.f32 0.0, %v3843
          %v3845 = vpop.f32.mrf.mxu0
          %3846 = vmatprep.mubr.f32.mxu0 0.0
          %3847 = vmatmul.mubr.f32.gmra.mxu0 %v3713
          %v3848 = vpop.f32.mrf.mxu0
          %v3849 = vadd.f32 0.0, %v3848
          %v3850 = vpop.f32.mrf.mxu0
          %3851 = vmatprep.mubr.f32.mxu0 0.0
          %3852 = vmatmul.mubr.f32.gmra.mxu0 %v3716
          %v3853 = vpop.f32.mrf.mxu0
          %v3854 = vadd.f32 0.0, %v3853
          %v3855 = vpop.f32.mrf.mxu0
          %3856 = vmatprep.mubr.f32.mxu0 0.0
          %3857 = vmatmul.mubr.f32.gmra.mxu0 %v3719
          %v3858 = vpop.f32.mrf.mxu0
          %v3859 = vadd.f32 0.0, %v3858
          %v3860 = vpop.f32.mrf.mxu0
          %3861 = vmatprep.mubr.f32.mxu0 0.0
          %3862 = vmatmul.mubr.f32.gmra.mxu0 %v3722
          %v3863 = vpop.f32.mrf.mxu0
          %v3864 = vadd.f32 0.0, %v3863
          %v3865 = vpop.f32.mrf.mxu0
          %3866 = vmatprep.mubr.f32.mxu0 0.0
          %3867 = vmatmul.mubr.f32.gmra.mxu0 %v3725
          %v3868 = vpop.f32.mrf.mxu0
          %v3869 = vadd.f32 0.0, %v3868
          %v3870 = vpop.f32.mrf.mxu0
          %3871 = vdwg.mxu0
          %v3873 = vsel %vm1498, %v3623, 0
          %v3876 = vsel %vm1498, %v3624, 0
          %v3879 = vsel %vm1498, %v3625, 0
          %v3882 = vsel %vm1498, %v3626, 0
          %v3885 = vsel %vm1498, %v3627, 0
          %v3888 = vsel %vm1498, %v3628, 0
          %v3891 = vsel %vm1498, %v3629, 0
          %v3894 = vsel %vm1498, %v3630, 0
          %v3897 = vsel %vm1498, %v3631, 0
          %v3900 = vsel %vm1498, %v3632, 0
          %v3903 = vsel %vm1498, %v3633, 0
          %v3906 = vsel %vm1498, %v3634, 0
          %v3909 = vsel %vm1498, %v3635, 0
          %v3912 = vsel %vm1498, %v3636, 0
          %v3915 = vsel %vm1498, %v3637, 0
          %v3918 = vsel %vm1498, %v3638, 0
          %3920 = vmatprep.subr.mxu0 0.0
          %3921 = vmatpush1.msra.mxu0 0.0
          %3922 = vmatprep.subr.mxu0 0.0
          %3923 = vmatpush1.msra.mxu0 0.0
          %3924 = vmatprep.subr.mxu0 0.0
          %3925 = vmatpush1.msra.mxu0 0.0
          %3926 = vmatprep.subr.mxu0 0.0
          %3927 = vmatpush1.msra.mxu0 0.0
          %3928 = vmatprep.subr.mxu0 0.0
          %3929 = vmatpush1.msra.mxu0 0.0
          %3930 = vmatprep.subr.mxu0 0.0
          %3931 = vmatpush1.msra.mxu0 0.0
          %3932 = vmatprep.subr.mxu0 0.0
          %3933 = vmatpush1.msra.mxu0 0.0
          %3934 = vmatprep.subr.mxu0 0.0
          %3935 = vmatpush1.msra.mxu0 0.0
          %3936 = vmatprep.subr.mxu0 0.0
          %3937 = vmatpush1.msra.mxu0 0.0
          %3938 = vmatprep.subr.mxu0 0.0
          %3939 = vmatpush1.msra.mxu0 0.0
          %3940 = vmatprep.subr.mxu0 0.0
          %3941 = vmatpush1.msra.mxu0 0.0
          %3942 = vmatprep.subr.mxu0 0.0
          %3943 = vmatpush1.msra.mxu0 0.0
          %3944 = vmatprep.subr.mxu0 0.0
          %3945 = vmatpush1.msra.mxu0 0.0
          %3946 = vmatprep.subr.mxu0 0.0
          %3947 = vmatpush1.msra.mxu0 0.0
          %3948 = vmatprep.subr.mxu0 0.0
          %3949 = vmatpush1.msra.mxu0 %v3674
          %3950 = vmatprep.subr.mxu0 0.0
          %3951 = vmatpush1.msra.mxu0 %v3673
          %3952 = vmatprep.subr.mxu0 0.0
          %3953 = vmatpush2.msra.mxu0 0.0
          %3954 = vmatprep.subr.mxu0 0.0
          %3955 = vmatpush2.msra.mxu0 0.0
          %3956 = vmatprep.subr.mxu0 0.0
          %3957 = vmatpush2.msra.mxu0 0.0
          %3958 = vmatprep.subr.mxu0 0.0
          %3959 = vmatpush2.msra.mxu0 0.0
          %3960 = vmatprep.subr.mxu0 0.0
          %3961 = vmatpush2.msra.mxu0 0.0
          %3962 = vmatprep.subr.mxu0 0.0
          %3963 = vmatpush2.msra.mxu0 0.0
          %3964 = vmatprep.subr.mxu0 0.0
          %3965 = vmatpush2.msra.mxu0 0.0
          %3966 = vmatprep.subr.mxu0 0.0
          %3967 = vmatpush2.msra.mxu0 0.0
          %3968 = vmatprep.subr.mxu0 0.0
          %3969 = vmatpush2.msra.mxu0 0.0
          %3970 = vmatprep.subr.mxu0 0.0
          %3971 = vmatpush2.msra.mxu0 0.0
          %3972 = vmatprep.subr.mxu0 0.0
          %3973 = vmatpush2.msra.mxu0 0.0
          %3974 = vmatprep.subr.mxu0 0.0
          %3975 = vmatpush2.msra.mxu0 0.0
          %3976 = vmatprep.subr.mxu0 0.0
          %3977 = vmatpush2.msra.mxu0 0.0
          %3978 = vmatprep.subr.mxu0 0.0
          %3979 = vmatpush2.msra.mxu0 0.0
          %3980 = vmatprep.subr.mxu0 0.0
          %3981 = vmatpush2.msra.mxu0 0.0
          %3982 = vmatprep.subr.mxu0 0.0
          %3983 = vmatpush2.msra.mxu0 0.0
          %3984 = vmatprep.mubr.f32.mxu0 0.0
          %3985 = vmatmul.mubr.f32.gmra.mxu0 %v3873
          %v3986 = vpop.f32.mrf.mxu0
          %v3987 = vadd.f32 0.0, %v3986
          %v3988 = vpop.f32.mrf.mxu0
          %3989 = vmatprep.mubr.f32.mxu0 0.0
          %3990 = vmatmul.mubr.f32.gmra.mxu0 %v3876
          %v3991 = vpop.f32.mrf.mxu0
          %v3992 = vadd.f32 0.0, %v3991
          %v3993 = vpop.f32.mrf.mxu0
          %3994 = vmatprep.mubr.f32.mxu0 0.0
          %3995 = vmatmul.mubr.f32.gmra.mxu0 %v3879
          %v3996 = vpop.f32.mrf.mxu0
          %v3997 = vadd.f32 0.0, %v3996
          %v3998 = vpop.f32.mrf.mxu0
          %3999 = vmatprep.mubr.f32.mxu0 0.0
          %4000 = vmatmul.mubr.f32.gmra.mxu0 %v3882
          %v4001 = vpop.f32.mrf.mxu0
          %v4002 = vadd.f32 0.0, %v4001
          %v4003 = vpop.f32.mrf.mxu0
          %4004 = vmatprep.mubr.f32.mxu0 0.0
          %4005 = vmatmul.mubr.f32.gmra.mxu0 %v3885
          %v4006 = vpop.f32.mrf.mxu0
          %v4007 = vadd.f32 0.0, %v4006
          %v4008 = vpop.f32.mrf.mxu0
          %4009 = vmatprep.mubr.f32.mxu0 0.0
          %4010 = vmatmul.mubr.f32.gmra.mxu0 %v3888
          %v4011 = vpop.f32.mrf.mxu0
          %v4012 = vadd.f32 0.0, %v4011
          %v4013 = vpop.f32.mrf.mxu0
          %4014 = vmatprep.mubr.f32.mxu0 0.0
          %4015 = vmatmul.mubr.f32.gmra.mxu0 %v3891
          %v4016 = vpop.f32.mrf.mxu0
          %v4017 = vadd.f32 0.0, %v4016
          %v4018 = vpop.f32.mrf.mxu0
          %4019 = vmatprep.mubr.f32.mxu0 0.0
          %4020 = vmatmul.mubr.f32.gmra.mxu0 %v3894
          %v4021 = vpop.f32.mrf.mxu0
          %v4022 = vadd.f32 0.0, %v4021
          %v4023 = vpop.f32.mrf.mxu0
          %4024 = vmatprep.mubr.f32.mxu0 0.0
          %4025 = vmatmul.mubr.f32.gmra.mxu0 %v3897
          %v4026 = vpop.f32.mrf.mxu0
          %v4027 = vadd.f32 0.0, %v4026
          %v4028 = vpop.f32.mrf.mxu0
          %4029 = vmatprep.mubr.f32.mxu0 0.0
          %4030 = vmatmul.mubr.f32.gmra.mxu0 %v3900
          %v4031 = vpop.f32.mrf.mxu0
          %v4032 = vadd.f32 0.0, %v4031
          %v4033 = vpop.f32.mrf.mxu0
          %4034 = vmatprep.mubr.f32.mxu0 0.0
          %4035 = vmatmul.mubr.f32.gmra.mxu0 %v3903
          %v4036 = vpop.f32.mrf.mxu0
          %v4037 = vadd.f32 0.0, %v4036
          %v4038 = vpop.f32.mrf.mxu0
          %4039 = vmatprep.mubr.f32.mxu0 0.0
          %4040 = vmatmul.mubr.f32.gmra.mxu0 %v3906
          %v4041 = vpop.f32.mrf.mxu0
          %v4042 = vadd.f32 0.0, %v4041
          %v4043 = vpop.f32.mrf.mxu0
          %4044 = vmatprep.mubr.f32.mxu0 0.0
          %4045 = vmatmul.mubr.f32.gmra.mxu0 %v3909
          %v4046 = vpop.f32.mrf.mxu0
          %v4047 = vadd.f32 0.0, %v4046
          %v4048 = vpop.f32.mrf.mxu0
          %4049 = vmatprep.mubr.f32.mxu0 0.0
          %4050 = vmatmul.mubr.f32.gmra.mxu0 %v3912
          %v4051 = vpop.f32.mrf.mxu0
          %v4052 = vadd.f32 0.0, %v4051
          %v4053 = vpop.f32.mrf.mxu0
          %4054 = vmatprep.mubr.f32.mxu0 0.0
          %4055 = vmatmul.mubr.f32.gmra.mxu0 %v3915
          %v4056 = vpop.f32.mrf.mxu0
          %v4057 = vadd.f32 0.0, %v4056
          %v4058 = vpop.f32.mrf.mxu0
          %4059 = vmatprep.mubr.f32.mxu0 0.0
          %4060 = vmatmul.mubr.f32.gmra.mxu0 %v3918
          %v4061 = vpop.f32.mrf.mxu0
          %v4062 = vadd.f32 0.0, %v4061
          %v4063 = vpop.f32.mrf.mxu0
          %4064 = vdwg.mxu0
          %v4066 = vsel %vm1498, %v3639, 0
          %v4069 = vsel %vm1498, %v3640, 0
          %v4072 = vsel %vm1498, %v3641, 0
          %v4075 = vsel %vm1498, %v3642, 0
          %v4078 = vsel %vm1498, %v3643, 0
          %v4081 = vsel %vm1498, %v3644, 0
          %v4084 = vsel %vm1498, %v3645, 0
          %v4087 = vsel %vm1498, %v3646, 0
          %v4090 = vsel %vm1498, %v3647, 0
          %v4093 = vsel %vm1498, %v3648, 0
          %v4096 = vsel %vm1498, %v3649, 0
          %v4099 = vsel %vm1498, %v3650, 0
          %v4102 = vsel %vm1498, %v3651, 0
          %v4105 = vsel %vm1498, %v3652, 0
          %v4108 = vsel %vm1498, %v3653, 0
          %v4111 = vsel %vm1498, %v3654, 0
          %4113 = vmatprep.subr.mxu0 0.0
          %4114 = vmatpush1.msra.mxu0 0.0
          %4115 = vmatprep.subr.mxu0 0.0
          %4116 = vmatpush1.msra.mxu0 0.0
          %4117 = vmatprep.subr.mxu0 0.0
          %4118 = vmatpush1.msra.mxu0 0.0
          %4119 = vmatprep.subr.mxu0 0.0
          %4120 = vmatpush1.msra.mxu0 0.0
          %4121 = vmatprep.subr.mxu0 0.0
          %4122 = vmatpush1.msra.mxu0 0.0
          %4123 = vmatprep.subr.mxu0 0.0
          %4124 = vmatpush1.msra.mxu0 0.0
          %4125 = vmatprep.subr.mxu0 0.0
          %4126 = vmatpush1.msra.mxu0 0.0
          %4127 = vmatprep.subr.mxu0 0.0
          %4128 = vmatpush1.msra.mxu0 0.0
          %4129 = vmatprep.subr.mxu0 0.0
          %4130 = vmatpush1.msra.mxu0 0.0
          %4131 = vmatprep.subr.mxu0 0.0
          %4132 = vmatpush1.msra.mxu0 0.0
          %4133 = vmatprep.subr.mxu0 0.0
          %4134 = vmatpush1.msra.mxu0 0.0
          %4135 = vmatprep.subr.mxu0 0.0
          %4136 = vmatpush1.msra.mxu0 0.0
          %4137 = vmatprep.subr.mxu0 0.0
          %4138 = vmatpush1.msra.mxu0 0.0
          %4139 = vmatprep.subr.mxu0 0.0
          %4140 = vmatpush1.msra.mxu0 0.0
          %4141 = vmatprep.subr.mxu0 0.0
          %4142 = vmatpush1.msra.mxu0 %v3676
          %4143 = vmatprep.subr.mxu0 0.0
          %4144 = vmatpush1.msra.mxu0 %v3675
          %4145 = vmatprep.subr.mxu0 0.0
          %4146 = vmatpush2.msra.mxu0 0.0
          %4147 = vmatprep.subr.mxu0 0.0
          %4148 = vmatpush2.msra.mxu0 0.0
          %4149 = vmatprep.subr.mxu0 0.0
          %4150 = vmatpush2.msra.mxu0 0.0
          %4151 = vmatprep.subr.mxu0 0.0
          %4152 = vmatpush2.msra.mxu0 0.0
          %4153 = vmatprep.subr.mxu0 0.0
          %4154 = vmatpush2.msra.mxu0 0.0
          %4155 = vmatprep.subr.mxu0 0.0
          %4156 = vmatpush2.msra.mxu0 0.0
          %4157 = vmatprep.subr.mxu0 0.0
          %4158 = vmatpush2.msra.mxu0 0.0
          %4159 = vmatprep.subr.mxu0 0.0
          %4160 = vmatpush2.msra.mxu0 0.0
          %4161 = vmatprep.subr.mxu0 0.0
          %4162 = vmatpush2.msra.mxu0 0.0
          %4163 = vmatprep.subr.mxu0 0.0
          %4164 = vmatpush2.msra.mxu0 0.0
          %4165 = vmatprep.subr.mxu0 0.0
          %4166 = vmatpush2.msra.mxu0 0.0
          %4167 = vmatprep.subr.mxu0 0.0
          %4168 = vmatpush2.msra.mxu0 0.0
          %4169 = vmatprep.subr.mxu0 0.0
          %4170 = vmatpush2.msra.mxu0 0.0
          %4171 = vmatprep.subr.mxu0 0.0
          %4172 = vmatpush2.msra.mxu0 0.0
          %4173 = vmatprep.subr.mxu0 0.0
          %4174 = vmatpush2.msra.mxu0 0.0
          %4175 = vmatprep.subr.mxu0 0.0
          %4176 = vmatpush2.msra.mxu0 0.0
          %4177 = vmatprep.mubr.f32.mxu0 0.0
          %4178 = vmatmul.mubr.f32.gmra.mxu0 %v4066
          %v4179 = vpop.f32.mrf.mxu0
          %v4180 = vadd.f32 0.0, %v4179
          %v4181 = vpop.f32.mrf.mxu0
          %4182 = vmatprep.mubr.f32.mxu0 0.0
          %4183 = vmatmul.mubr.f32.gmra.mxu0 %v4069
          %v4184 = vpop.f32.mrf.mxu0
          %v4185 = vadd.f32 0.0, %v4184
          %v4186 = vpop.f32.mrf.mxu0
          %4187 = vmatprep.mubr.f32.mxu0 0.0
          %4188 = vmatmul.mubr.f32.gmra.mxu0 %v4072
          %v4189 = vpop.f32.mrf.mxu0
          %v4190 = vadd.f32 0.0, %v4189
          %v4191 = vpop.f32.mrf.mxu0
          %4192 = vmatprep.mubr.f32.mxu0 0.0
          %4193 = vmatmul.mubr.f32.gmra.mxu0 %v4075
          %v4194 = vpop.f32.mrf.mxu0
          %v4195 = vadd.f32 0.0, %v4194
          %v4196 = vpop.f32.mrf.mxu0
          %4197 = vmatprep.mubr.f32.mxu0 0.0
          %4198 = vmatmul.mubr.f32.gmra.mxu0 %v4078
          %v4199 = vpop.f32.mrf.mxu0
          %v4200 = vadd.f32 0.0, %v4199
          %v4201 = vpop.f32.mrf.mxu0
          %4202 = vmatprep.mubr.f32.mxu0 0.0
          %4203 = vmatmul.mubr.f32.gmra.mxu0 %v4081
          %v4204 = vpop.f32.mrf.mxu0
          %v4205 = vadd.f32 0.0, %v4204
          %v4206 = vpop.f32.mrf.mxu0
          %4207 = vmatprep.mubr.f32.mxu0 0.0
          %4208 = vmatmul.mubr.f32.gmra.mxu0 %v4084
          %v4209 = vpop.f32.mrf.mxu0
          %v4210 = vadd.f32 0.0, %v4209
          %v4211 = vpop.f32.mrf.mxu0
          %4212 = vmatprep.mubr.f32.mxu0 0.0
          %4213 = vmatmul.mubr.f32.gmra.mxu0 %v4087
          %v4214 = vpop.f32.mrf.mxu0
          %v4215 = vadd.f32 0.0, %v4214
          %v4216 = vpop.f32.mrf.mxu0
          %4217 = vmatprep.mubr.f32.mxu0 0.0
          %4218 = vmatmul.mubr.f32.gmra.mxu0 %v4090
          %v4219 = vpop.f32.mrf.mxu0
          %v4220 = vadd.f32 0.0, %v4219
          %v4221 = vpop.f32.mrf.mxu0
          %4222 = vmatprep.mubr.f32.mxu0 0.0
          %4223 = vmatmul.mubr.f32.gmra.mxu0 %v4093
          %v4224 = vpop.f32.mrf.mxu0
          %v4225 = vadd.f32 0.0, %v4224
          %v4226 = vpop.f32.mrf.mxu0
          %4227 = vmatprep.mubr.f32.mxu0 0.0
          %4228 = vmatmul.mubr.f32.gmra.mxu0 %v4096
          %v4229 = vpop.f32.mrf.mxu0
          %v4230 = vadd.f32 0.0, %v4229
          %v4231 = vpop.f32.mrf.mxu0
          %4232 = vmatprep.mubr.f32.mxu0 0.0
          %4233 = vmatmul.mubr.f32.gmra.mxu0 %v4099
          %v4234 = vpop.f32.mrf.mxu0
          %v4235 = vadd.f32 0.0, %v4234
          %v4236 = vpop.f32.mrf.mxu0
          %4237 = vmatprep.mubr.f32.mxu0 0.0
          %4238 = vmatmul.mubr.f32.gmra.mxu0 %v4102
          %v4239 = vpop.f32.mrf.mxu0
          %v4240 = vadd.f32 0.0, %v4239
          %v4241 = vpop.f32.mrf.mxu0
          %4242 = vmatprep.mubr.f32.mxu0 0.0
          %4243 = vmatmul.mubr.f32.gmra.mxu0 %v4105
          %v4244 = vpop.f32.mrf.mxu0
          %v4245 = vadd.f32 0.0, %v4244
          %v4246 = vpop.f32.mrf.mxu0
          %4247 = vmatprep.mubr.f32.mxu0 0.0
          %4248 = vmatmul.mubr.f32.gmra.mxu0 %v4108
          %v4249 = vpop.f32.mrf.mxu0
          %v4250 = vadd.f32 0.0, %v4249
          %v4251 = vpop.f32.mrf.mxu0
          %4252 = vmatprep.mubr.f32.mxu0 0.0
          %4253 = vmatmul.mubr.f32.gmra.mxu0 %v4111
          %v4254 = vpop.f32.mrf.mxu0
          %v4255 = vadd.f32 0.0, %v4254
          %v4256 = vpop.f32.mrf.mxu0
          %4257 = vdwg.mxu0
          %v4259 = vsel %vm1498, %v3655, 0
          %v4262 = vsel %vm1498, %v3656, 0
          %v4265 = vsel %vm1498, %v3657, 0
          %v4268 = vsel %vm1498, %v3658, 0
          %v4271 = vsel %vm1498, %v3659, 0
          %v4274 = vsel %vm1498, %v3660, 0
          %v4277 = vsel %vm1498, %v3661, 0
          %v4280 = vsel %vm1498, %v3662, 0
          %v4283 = vsel %vm1498, %v3663, 0
          %v4286 = vsel %vm1498, %v3664, 0
          %v4289 = vsel %vm1498, %v3665, 0
          %v4292 = vsel %vm1498, %v3666, 0
          %v4295 = vsel %vm1498, %v3667, 0
          %v4298 = vsel %vm1498, %v3668, 0
          %v4301 = vsel %vm1498, %v3669, 0
          %v4304 = vsel %vm1498, %v3670, 0
          %4306 = vmatprep.subr.mxu0 0.0
          %4307 = vmatpush1.msra.mxu0 0.0
          %4308 = vmatprep.subr.mxu0 0.0
          %4309 = vmatpush1.msra.mxu0 0.0
          %4310 = vmatprep.subr.mxu0 0.0
          %4311 = vmatpush1.msra.mxu0 0.0
          %4312 = vmatprep.subr.mxu0 0.0
          %4313 = vmatpush1.msra.mxu0 0.0
          %4314 = vmatprep.subr.mxu0 0.0
          %4315 = vmatpush1.msra.mxu0 0.0
          %4316 = vmatprep.subr.mxu0 0.0
          %4317 = vmatpush1.msra.mxu0 0.0
          %4318 = vmatprep.subr.mxu0 0.0
          %4319 = vmatpush1.msra.mxu0 0.0
          %4320 = vmatprep.subr.mxu0 0.0
          %4321 = vmatpush1.msra.mxu0 0.0
          %4322 = vmatprep.subr.mxu0 0.0
          %4323 = vmatpush1.msra.mxu0 0.0
          %4324 = vmatprep.subr.mxu0 0.0
          %4325 = vmatpush1.msra.mxu0 0.0
          %4326 = vmatprep.subr.mxu0 0.0
          %4327 = vmatpush1.msra.mxu0 0.0
          %4328 = vmatprep.subr.mxu0 0.0
          %4329 = vmatpush1.msra.mxu0 0.0
          %4330 = vmatprep.subr.mxu0 0.0
          %4331 = vmatpush1.msra.mxu0 0.0
          %4332 = vmatprep.subr.mxu0 0.0
          %4333 = vmatpush1.msra.mxu0 0.0
          %4334 = vmatprep.subr.mxu0 0.0
          %4335 = vmatpush1.msra.mxu0 %v3678
          %4336 = vmatprep.subr.mxu0 0.0
          %4337 = vmatpush1.msra.mxu0 %v3677
          %4338 = vmatprep.subr.mxu0 0.0
          %4339 = vmatpush2.msra.mxu0 0.0
          %4340 = vmatprep.subr.mxu0 0.0
          %4341 = vmatpush2.msra.mxu0 0.0
          %4342 = vmatprep.subr.mxu0 0.0
          %4343 = vmatpush2.msra.mxu0 0.0
          %4344 = vmatprep.subr.mxu0 0.0
          %4345 = vmatpush2.msra.mxu0 0.0
          %4346 = vmatprep.subr.mxu0 0.0
          %4347 = vmatpush2.msra.mxu0 0.0
          %4348 = vmatprep.subr.mxu0 0.0
          %4349 = vmatpush2.msra.mxu0 0.0
          %4350 = vmatprep.subr.mxu0 0.0
          %4351 = vmatpush2.msra.mxu0 0.0
          %4352 = vmatprep.subr.mxu0 0.0
          %4353 = vmatpush2.msra.mxu0 0.0
          %4354 = vmatprep.subr.mxu0 0.0
          %4355 = vmatpush2.msra.mxu0 0.0
          %4356 = vmatprep.subr.mxu0 0.0
          %4357 = vmatpush2.msra.mxu0 0.0
          %4358 = vmatprep.subr.mxu0 0.0
          %4359 = vmatpush2.msra.mxu0 0.0
          %4360 = vmatprep.subr.mxu0 0.0
          %4361 = vmatpush2.msra.mxu0 0.0
          %4362 = vmatprep.subr.mxu0 0.0
          %4363 = vmatpush2.msra.mxu0 0.0
          %4364 = vmatprep.subr.mxu0 0.0
          %4365 = vmatpush2.msra.mxu0 0.0
          %4366 = vmatprep.subr.mxu0 0.0
          %4367 = vmatpush2.msra.mxu0 0.0
          %4368 = vmatprep.subr.mxu0 0.0
          %4369 = vmatpush2.msra.mxu0 0.0
          %4370 = vmatprep.mubr.f32.mxu0 0.0
          %4371 = vmatmul.mubr.f32.gmra.mxu0 %v4259
          %v4372 = vpop.f32.mrf.mxu0
          %v4373 = vadd.f32 0.0, %v4372
          %v4374 = vpop.f32.mrf.mxu0
          %4375 = vmatprep.mubr.f32.mxu0 0.0
          %4376 = vmatmul.mubr.f32.gmra.mxu0 %v4262
          %v4377 = vpop.f32.mrf.mxu0
          %v4378 = vadd.f32 0.0, %v4377
          %v4379 = vpop.f32.mrf.mxu0
          %4380 = vmatprep.mubr.f32.mxu0 0.0
          %4381 = vmatmul.mubr.f32.gmra.mxu0 %v4265
          %v4382 = vpop.f32.mrf.mxu0
          %v4383 = vadd.f32 0.0, %v4382
          %v4384 = vpop.f32.mrf.mxu0
          %4385 = vmatprep.mubr.f32.mxu0 0.0
          %4386 = vmatmul.mubr.f32.gmra.mxu0 %v4268
          %v4387 = vpop.f32.mrf.mxu0
          %v4388 = vadd.f32 0.0, %v4387
          %v4389 = vpop.f32.mrf.mxu0
          %4390 = vmatprep.mubr.f32.mxu0 0.0
          %4391 = vmatmul.mubr.f32.gmra.mxu0 %v4271
          %v4392 = vpop.f32.mrf.mxu0
          %v4393 = vadd.f32 0.0, %v4392
          %v4394 = vpop.f32.mrf.mxu0
          %4395 = vmatprep.mubr.f32.mxu0 0.0
          %4396 = vmatmul.mubr.f32.gmra.mxu0 %v4274
          %v4397 = vpop.f32.mrf.mxu0
          %v4398 = vadd.f32 0.0, %v4397
          %v4399 = vpop.f32.mrf.mxu0
          %4400 = vmatprep.mubr.f32.mxu0 0.0
          %4401 = vmatmul.mubr.f32.gmra.mxu0 %v4277
          %v4402 = vpop.f32.mrf.mxu0
          %v4403 = vadd.f32 0.0, %v4402
          %v4404 = vpop.f32.mrf.mxu0
          %4405 = vmatprep.mubr.f32.mxu0 0.0
          %4406 = vmatmul.mubr.f32.gmra.mxu0 %v4280
          %v4407 = vpop.f32.mrf.mxu0
          %v4408 = vadd.f32 0.0, %v4407
          %v4409 = vpop.f32.mrf.mxu0
          %4410 = vmatprep.mubr.f32.mxu0 0.0
          %4411 = vmatmul.mubr.f32.gmra.mxu0 %v4283
          %v4412 = vpop.f32.mrf.mxu0
          %v4413 = vadd.f32 0.0, %v4412
          %v4414 = vpop.f32.mrf.mxu0
          %4415 = vmatprep.mubr.f32.mxu0 0.0
          %4416 = vmatmul.mubr.f32.gmra.mxu0 %v4286
          %v4417 = vpop.f32.mrf.mxu0
          %v4418 = vadd.f32 0.0, %v4417
          %v4419 = vpop.f32.mrf.mxu0
          %4420 = vmatprep.mubr.f32.mxu0 0.0
          %4421 = vmatmul.mubr.f32.gmra.mxu0 %v4289
          %v4422 = vpop.f32.mrf.mxu0
          %v4423 = vadd.f32 0.0, %v4422
          %v4424 = vpop.f32.mrf.mxu0
          %4425 = vmatprep.mubr.f32.mxu0 0.0
          %4426 = vmatmul.mubr.f32.gmra.mxu0 %v4292
          %v4427 = vpop.f32.mrf.mxu0
          %v4428 = vadd.f32 0.0, %v4427
          %v4429 = vpop.f32.mrf.mxu0
          %4430 = vmatprep.mubr.f32.mxu0 0.0
          %4431 = vmatmul.mubr.f32.gmra.mxu0 %v4295
          %v4432 = vpop.f32.mrf.mxu0
          %v4433 = vadd.f32 0.0, %v4432
          %v4434 = vpop.f32.mrf.mxu0
          %4435 = vmatprep.mubr.f32.mxu0 0.0
          %4436 = vmatmul.mubr.f32.gmra.mxu0 %v4298
          %v4437 = vpop.f32.mrf.mxu0
          %v4438 = vadd.f32 0.0, %v4437
          %v4439 = vpop.f32.mrf.mxu0
          %4440 = vmatprep.mubr.f32.mxu0 0.0
          %4441 = vmatmul.mubr.f32.gmra.mxu0 %v4301
          %v4442 = vpop.f32.mrf.mxu0
          %v4443 = vadd.f32 0.0, %v4442
          %v4444 = vpop.f32.mrf.mxu0
          %4445 = vmatprep.mubr.f32.mxu0 0.0
          %4446 = vmatmul.mubr.f32.gmra.mxu0 %v4304
          %v4447 = vpop.f32.mrf.mxu0
          %v4448 = vadd.f32 0.0, %v4447
          %v4449 = vpop.f32.mrf.mxu0
          %4450 = vdwg.mxu0
          %vm4451 = vcmask 523264
          %v4452 = vsel %vm4451, %v3794, 0.0
          %v4453 = vsel %vm4451, %v3987, 0.0
          %v4454 = vadd.f32 %v4452, %v4453
          %v4455 = vsel %vm4451, %v4180, 0.0
          %v4456 = vadd.f32 %v4454, %v4455
          %v4457 = vsel %vm4451, %v4373, 0.0
          %v4458 = vadd.f32 %v4456, %v4457
          %v4459 = vsel %vm4451, %v3799, 0.0
          %v4460 = vsel %vm4451, %v3992, 0.0
          %v4461 = vadd.f32 %v4459, %v4460
          %v4462 = vsel %vm4451, %v4185, 0.0
          %v4463 = vadd.f32 %v4461, %v4462
          %v4464 = vsel %vm4451, %v4378, 0.0
          %v4465 = vadd.f32 %v4463, %v4464
          %v4466 = vsel %vm4451, %v3804, 0.0
          %v4467 = vsel %vm4451, %v3997, 0.0
          %v4468 = vadd.f32 %v4466, %v4467
          %v4469 = vsel %vm4451, %v4190, 0.0
          %v4470 = vadd.f32 %v4468, %v4469
          %v4471 = vsel %vm4451, %v4383, 0.0
          %v4472 = vadd.f32 %v4470, %v4471
          %v4473 = vsel %vm4451, %v3809, 0.0
          %v4474 = vsel %vm4451, %v4002, 0.0
          %v4475 = vadd.f32 %v4473, %v4474
          %v4476 = vsel %vm4451, %v4195, 0.0
          %v4477 = vadd.f32 %v4475, %v4476
          %v4478 = vsel %vm4451, %v4388, 0.0
          %v4479 = vadd.f32 %v4477, %v4478
          %v4480 = vsel %vm4451, %v3814, 0.0
          %v4481 = vsel %vm4451, %v4007, 0.0
          %v4482 = vadd.f32 %v4480, %v4481
          %v4483 = vsel %vm4451, %v4200, 0.0
          %v4484 = vadd.f32 %v4482, %v4483
          %v4485 = vsel %vm4451, %v4393, 0.0
          %v4486 = vadd.f32 %v4484, %v4485
          %v4487 = vsel %vm4451, %v3819, 0.0
          %v4488 = vsel %vm4451, %v4012, 0.0
          %v4489 = vadd.f32 %v4487, %v4488
          %v4490 = vsel %vm4451, %v4205, 0.0
          %v4491 = vadd.f32 %v4489, %v4490
          %v4492 = vsel %vm4451, %v4398, 0.0
          %v4493 = vadd.f32 %v4491, %v4492
          %v4494 = vsel %vm4451, %v3824, 0.0
          %v4495 = vsel %vm4451, %v4017, 0.0
          %v4496 = vadd.f32 %v4494, %v4495
          %v4497 = vsel %vm4451, %v4210, 0.0
          %v4498 = vadd.f32 %v4496, %v4497
          %v4499 = vsel %vm4451, %v4403, 0.0
          %v4500 = vadd.f32 %v4498, %v4499
          %v4501 = vsel %vm4451, %v3829, 0.0
          %v4502 = vsel %vm4451, %v4022, 0.0
          %v4503 = vadd.f32 %v4501, %v4502
          %v4504 = vsel %vm4451, %v4215, 0.0
          %v4505 = vadd.f32 %v4503, %v4504
          %v4506 = vsel %vm4451, %v4408, 0.0
          %v4507 = vadd.f32 %v4505, %v4506
          %v4508 = vsel %vm4451, %v3834, 0.0
          %v4509 = vsel %vm4451, %v4027, 0.0
          %v4510 = vadd.f32 %v4508, %v4509
          %v4511 = vsel %vm4451, %v4220, 0.0
          %v4512 = vadd.f32 %v4510, %v4511
          %v4513 = vsel %vm4451, %v4413, 0.0
          %v4514 = vadd.f32 %v4512, %v4513
          %v4515 = vsel %vm4451, %v3839, 0.0
          %v4516 = vsel %vm4451, %v4032, 0.0
          %v4517 = vadd.f32 %v4515, %v4516
          %v4518 = vsel %vm4451, %v4225, 0.0
          %v4519 = vadd.f32 %v4517, %v4518
          %v4520 = vsel %vm4451, %v4418, 0.0
          %v4521 = vadd.f32 %v4519, %v4520
          %v4522 = vsel %vm4451, %v3844, 0.0
          %v4523 = vsel %vm4451, %v4037, 0.0
          %v4524 = vadd.f32 %v4522, %v4523
          %v4525 = vsel %vm4451, %v4230, 0.0
          %v4526 = vadd.f32 %v4524, %v4525
          %v4527 = vsel %vm4451, %v4423, 0.0
          %v4528 = vadd.f32 %v4526, %v4527
          %v4529 = vsel %vm4451, %v3849, 0.0
          %v4530 = vsel %vm4451, %v4042, 0.0
          %v4531 = vadd.f32 %v4529, %v4530
          %v4532 = vsel %vm4451, %v4235, 0.0
          %v4533 = vadd.f32 %v4531, %v4532
          %v4534 = vsel %vm4451, %v4428, 0.0
          %v4535 = vadd.f32 %v4533, %v4534
          %v4536 = vsel %vm4451, %v3854, 0.0
          %v4537 = vsel %vm4451, %v4047, 0.0
          %v4538 = vadd.f32 %v4536, %v4537
          %v4539 = vsel %vm4451, %v4240, 0.0
          %v4540 = vadd.f32 %v4538, %v4539
          %v4541 = vsel %vm4451, %v4433, 0.0
          %v4542 = vadd.f32 %v4540, %v4541
          %v4543 = vsel %vm4451, %v3859, 0.0
          %v4544 = vsel %vm4451, %v4052, 0.0
          %v4545 = vadd.f32 %v4543, %v4544
          %v4546 = vsel %vm4451, %v4245, 0.0
          %v4547 = vadd.f32 %v4545, %v4546
          %v4548 = vsel %vm4451, %v4438, 0.0
          %v4549 = vadd.f32 %v4547, %v4548
          %v4550 = vsel %vm4451, %v3864, 0.0
          %v4551 = vsel %vm4451, %v4057, 0.0
          %v4552 = vadd.f32 %v4550, %v4551
          %v4553 = vsel %vm4451, %v4250, 0.0
          %v4554 = vadd.f32 %v4552, %v4553
          %v4555 = vsel %vm4451, %v4443, 0.0
          %v4556 = vadd.f32 %v4554, %v4555
          %v4557 = vsel %vm4451, %v3869, 0.0
          %v4558 = vsel %vm4451, %v4062, 0.0
          %v4559 = vadd.f32 %v4557, %v4558
          %v4560 = vsel %vm4451, %v4255, 0.0
          %v4561 = vadd.f32 %v4559, %v4560
          %v4562 = vsel %vm4451, %v4448, 0.0
          %v4563 = vadd.f32 %v4561, %v4562
          %v4564 = vld [vmem:[%s5] sm:$0x1]
          %v4566 = vlaneseq
          %v4567 = vshrl.u32 %v4566, 7
          %v4568 = vsub.s32 0, %v4567
          %v4569 = vrot.slane %v4564, %v4568
          %v4571 = vadd.f32 %v4458, %v4569
          %v4572 = vadd.f32 %v4465, %v4569
          %v4573 = vadd.f32 %v4472, %v4569
          %v4574 = vadd.f32 %v4479, %v4569
          %v4575 = vadd.f32 %v4486, %v4569
          %v4576 = vadd.f32 %v4493, %v4569
          %v4577 = vadd.f32 %v4500, %v4569
          %v4578 = vadd.f32 %v4507, %v4569
          %v4579 = vadd.f32 %v4514, %v4569
          %v4580 = vadd.f32 %v4521, %v4569
          %v4581 = vadd.f32 %v4528, %v4569
          %v4582 = vadd.f32 %v4535, %v4569
          %v4583 = vadd.f32 %v4542, %v4569
          %v4584 = vadd.f32 %v4549, %v4569
          %v4585 = vadd.f32 %v4556, %v4569
          %v4586 = vadd.f32 %v4563, %v4569
          %v4587 = vld [vmem:[%s1222] sm:$0xff]
          %v4588 = vld [vmem:[%s1222 + $0x8] sm:$0xff]
          %v4589 = vld [vmem:[%s1222 + $0x10] sm:$0xff]
          %v4590 = vld [vmem:[%s1222 + $0x18] sm:$0xff]
          %v4591 = vld [vmem:[%s1222 + $0x20] sm:$0xff]
          %v4592 = vld [vmem:[%s1222 + $0x28] sm:$0xff]
          %v4593 = vld [vmem:[%s1222 + $0x30] sm:$0xff]
          %v4594 = vld [vmem:[%s1222 + $0x38] sm:$0xff]
          %v4595 = vld [vmem:[%s1222 + $0x40] sm:$0xff]
          %v4596 = vld [vmem:[%s1222 + $0x48] sm:$0xff]
          %v4597 = vld [vmem:[%s1222 + $0x50] sm:$0xff]
          %v4598 = vld [vmem:[%s1222 + $0x58] sm:$0xff]
          %v4599 = vld [vmem:[%s1222 + $0x60] sm:$0xff]
          %v4600 = vld [vmem:[%s1222 + $0x68] sm:$0xff]
          %v4601 = vld [vmem:[%s1222 + $0x70] sm:$0xff]
          %v4602 = vld [vmem:[%s1222 + $0x78] sm:$0xff]
          %v4603 = vadd.f32 %v4571, %v4587
          %v4604 = vadd.f32 %v4572, %v4588
          %v4605 = vadd.f32 %v4573, %v4589
          %v4606 = vadd.f32 %v4574, %v4590
          %v4607 = vadd.f32 %v4575, %v4591
          %v4608 = vadd.f32 %v4576, %v4592
          %v4609 = vadd.f32 %v4577, %v4593
          %v4610 = vadd.f32 %v4578, %v4594
          %v4611 = vadd.f32 %v4579, %v4595
          %v4612 = vadd.f32 %v4580, %v4596
          %v4613 = vadd.f32 %v4581, %v4597
          %v4614 = vadd.f32 %v4582, %v4598
          %v4615 = vadd.f32 %v4583, %v4599
          %v4616 = vadd.f32 %v4584, %v4600
          %v4617 = vadd.f32 %v4585, %v4601
          %v4618 = vadd.f32 %v4586, %v4602
          %4619 = vst.msk [vmem:[%s1235] sm:$0xff] %vm4451, %v4603
          %4620 = vst.msk [vmem:[%s1235 + $0x8] sm:$0xff] %vm4451, %v4604
          %4621 = vst.msk [vmem:[%s1235 + $0x10] sm:$0xff] %vm4451, %v4605
          %4622 = vst.msk [vmem:[%s1235 + $0x18] sm:$0xff] %vm4451, %v4606
          %4623 = vst.msk [vmem:[%s1235 + $0x20] sm:$0xff] %vm4451, %v4607
          %4624 = vst.msk [vmem:[%s1235 + $0x28] sm:$0xff] %vm4451, %v4608
          %4625 = vst.msk [vmem:[%s1235 + $0x30] sm:$0xff] %vm4451, %v4609
          %4626 = vst.msk [vmem:[%s1235 + $0x38] sm:$0xff] %vm4451, %v4610
          %4627 = vst.msk [vmem:[%s1235 + $0x40] sm:$0xff] %vm4451, %v4611
          %4628 = vst.msk [vmem:[%s1235 + $0x48] sm:$0xff] %vm4451, %v4612
          %4629 = vst.msk [vmem:[%s1235 + $0x50] sm:$0xff] %vm4451, %v4613
          %4630 = vst.msk [vmem:[%s1235 + $0x58] sm:$0xff] %vm4451, %v4614
          %4631 = vst.msk [vmem:[%s1235 + $0x60] sm:$0xff] %vm4451, %v4615
          %4632 = vst.msk [vmem:[%s1235 + $0x68] sm:$0xff] %vm4451, %v4616
          %4633 = vst.msk [vmem:[%s1235 + $0x70] sm:$0xff] %vm4451, %v4617
          %4634 = vst.msk [vmem:[%s1235 + $0x78] sm:$0xff] %vm4451, %v4618
        $region166: #{tpu_custom_call.1} parent=145 // pred_fallthru
          _
        %s4635 = smul.u32 16, %s23
        %p4636 = scmp.lt.s32.totalorder %s22, 1
        %s4637 = scalar_select %p4636, %s22, 1
        %p4638 = scmp.lt.s32.totalorder %s4635, 31
        %s4639 = scalar_select %p4638, %s4635, 31
        %s4640 = smul.addr %s4637, 32
        %s4641 = sadd.s32 %s4639, %s4640
        %s4642 = smul.addr %s4641, 8
        %s4643 = scalar_lea.vmem %s6, %s4642
        // Predicated region
        $region167: #{tpu_custom_call.1} parent=145 // pred_check
          %p4644 = pneg %p210
        $region168: #{tpu_custom_call.1} parent=145 // pred_check_branch
          %4646 = sbr.rel (%p4644) target = $region170
        $region169: #{tpu_custom_call.1} parent=145 // pred_region
          %s4647 = smul.u32 16, %s23
        $region170: #{tpu_custom_call.1} parent=145 // pred_fallthru
          _
      $region146: #{tpu_custom_call.1} parent=5 // pred_fallthru
        _
      %p4648 = scmp.le.s32.totalorder 2, %s12
      // Predicated region
      $region171: #{tpu_custom_call.1} parent=5 // pred_check
        %p4649 = pneg %p4648
      $region172: #{tpu_custom_call.1} parent=5 // pred_check_branch
        %4651 = sbr.rel (%p4649) target = $region174
      $region173: #{tpu_custom_call.1} parent=5 // pred_region
        %s4652 = ssub.s32 %s12, 2
        // Predicated region
        $region175: #{tpu_custom_call.1} parent=173 // pred_check
          %p4653 = pneg %p216
        $region176: #{tpu_custom_call.1} parent=173 // pred_check_branch
          %4655 = sbr.rel (%p4653) target = $region178
        $region177: #{tpu_custom_call.1} parent=173 // pred_region
          %s4656 = smul.u32 16, %s26
          %p4657 = scmp.lt.s32.totalorder %s25, 1
          %s4658 = scalar_select %p4657, %s25, 1
          %p4659 = scmp.lt.s32.totalorder %s4656, 31
          %s4660 = scalar_select %p4659, %s4656, 31
          %s4661 = smul.addr %s4658, 32
          %s4662 = sadd.s32 %s4660, %s4661
          %s4663 = smul.addr %s4662, 8
          %s4664 = scalar_lea.vmem %s6, %s4663
        $region178: #{tpu_custom_call.1} parent=173 // pred_fallthru
          _
      $region174: #{tpu_custom_call.1} parent=5 // pred_fallthru
        _
    $region6: #{tpu_custom_call.1} parent=1 // loop_footer
      %s16 = sadd.s32 1, %s12
    $region7: #{tpu_custom_call.1} parent=1 // loop_footer_branch
      %11 = sbr.rel target = $region3
    $region8: #{tpu_custom_call.1} parent=1 // loop_exit
      _

</llo_original>
